<compile_context>
chip_gen: v5e
topology: v5e:2x2
jax: 0.10.0
libtpu: 0.0.40
codegen_flags: <defaults>
</compile_context>

<pallas_src>
import math
import functools

import numpy as np
import jax
import jax.numpy as jnp
from jax import lax
from jax.experimental import pallas as pl
from jax.experimental.pallas import tpu as pltpu

EPS = 1e-5                  # PyTorch InstanceNorm3d default eps (affine=False)
MXU_DTYPE = jnp.float32     # set to jnp.bfloat16 on v6e/v7x if tolerance allows


def _round_up(x, m):
    return (x + m - 1) // m * m


def _build_tap_masks(D, H, W):
    """Host-precomputed (27, S) f32 validity masks + flat tap offsets.

    mask[t, p] == 1.0 iff position p shifted by tap t stays inside the
    (zero-padded) volume; the flat-S roll wrap is safe exactly because these
    masks zero every wrapped position.
    """
    S = D * H * W
    idx = np.arange(S)
    dd = idx // (H * W)
    hh = (idx // W) % H
    ww = idx % W
    masks, offsets = [], []
    for kd in (-1, 0, 1):
        for kh in (-1, 0, 1):
            for kw in (-1, 0, 1):
                off = kd * H * W + kh * W + kw
                valid = ((dd + kd >= 0) & (dd + kd < D) &
                         (hh + kh >= 0) & (hh + kh < H) &
                         (ww + kw >= 0) & (ww + kw < W))
                offsets.append(off)
                masks.append(valid.astype(np.float32))
    return jnp.asarray(np.stack(masks, axis=0)), tuple(offsets)


def _vgg_block_kernel(x_ref, w1_ref, w2_ref, masks_ref, o_ref, patches_ref,
                      *, offsets, c_in, c_mid):
    """Fused VGGBlock forward for one batch element.

    x_ref:       (1, c_in,  S)       NCDHW-flat, c_in padded to multiple of 8
    w1_ref:      (c_mid, 27*c_in)    tap-major / cin-minor columns
    w2_ref:      (Cout,  27*c_mid)
    masks_ref:   (27, S)             f32 0/1 boundary masks (resident)
    o_ref:       (1, Cout, S)
    patches_ref: (27*max(c_in,c_mid), S) f32 VMEM scratch (im2col)
    """
    S = x_ref.shape[-1]
    inv_s = 1.0 / S

    def im2col(src, C):
        # One XLU roll + one VPU multiply + one aligned store per tap; the
        # store bounds each temporary's live range.
        for t, off in enumerate(offsets):
            shift = (-off) % S
            shifted = pltpu.roll(src, shift=shift, axis=1) if shift else src
            if off == 0:
                masked = shifted                                # all-true mask
            else:
                masked = shifted * masks_ref[pl.ds(t, 1), :]    # (1,S) bcast
            patches_ref[pl.ds(t * C, C), :] = masked

    def norm_relu(acc):
        # InstanceNorm3d(affine=False), two-pass stats in f32, then ReLU.
        mean = jnp.sum(acc, axis=1, keepdims=True) * inv_s
        centered = acc - mean
        var = jnp.sum(centered * centered, axis=1, keepdims=True) * inv_s
        return jnp.maximum(centered * lax.rsqrt(var + EPS), 0.0)

    x = x_ref[0]                                                 # (c_in, S)
    im2col(x.astype(MXU_DTYPE), c_in)
    acc1 = jnp.dot(w1_ref[...], patches_ref[pl.ds(0, 27 * c_in), :],
                   preferred_element_type=jnp.float32)           # (c_mid, S)
    h = norm_relu(acc1)

    im2col(h.astype(MXU_DTYPE), c_mid)
    acc2 = jnp.dot(w2_ref[...], patches_ref[pl.ds(0, 27 * c_mid), :],
                   preferred_element_type=jnp.float32)           # (Cout, S)
    y = norm_relu(acc2)

    o_ref[0] = y.astype(o_ref.dtype)


def pt_weight_to_kernel(w_pt, cin_pad=None, cout_pad=None):
    """PyTorch Conv3d weight (Cout, Cin, 3,3,3) -> (Cout[_pad], 27*Cin_pad),
    column order tap-major (kd*9 + kh*3 + kw), cin-minor, zero-padded."""
    cout, cin = w_pt.shape[0], w_pt.shape[1]
    w = jnp.transpose(w_pt, (0, 2, 3, 4, 1))                    # (Cout,3,3,3,Cin)
    if cin_pad is not None and cin_pad > cin:
        w = jnp.pad(w, ((0, 0), (0, 0), (0, 0), (0, 0), (0, cin_pad - cin)))
    w = w.reshape(cout, -1)
    if cout_pad is not None and cout_pad > cout:
        w = jnp.pad(w, ((0, cout_pad - cout), (0, 0)))
    return w.astype(MXU_DTYPE)


def vgg_block(x_ncdhw, w1_pt, w2_pt):
    """Forward pass equivalent to the PyTorch VGGBlock. Input/output NCDHW.

    Conv biases are intentionally not taken: InstanceNorm3d(affine=False)
    cancels them exactly (see header comment).
    """
    N, Cin, D, H, W = x_ncdhw.shape
    S = D * H * W
    Cmid, Cout = w1_pt.shape[0], w2_pt.shape[0]

    cin_p = _round_up(Cin, 8)
    cmid_p = _round_up(Cmid, 8)

    w1 = pt_weight_to_kernel(w1_pt, cin_pad=cin_p, cout_pad=cmid_p)  # (cmid_p, 27*cin_p)
    w2 = pt_weight_to_kernel(w2_pt, cin_pad=cmid_p)                  # (Cout,  27*cmid_p)
    masks, offsets = _build_tap_masks(D, H, W)                       # (27, S)

    x_flat = x_ncdhw.reshape(N, Cin, S)          # free: NCDHW is already flat
    if cin_p > Cin:
        x_flat = jnp.pad(x_flat, ((0, 0), (0, cin_p - Cin), (0, 0)))

    kmax = 27 * max(cin_p, cmid_p)

    out = pl.pallas_call(
        functools.partial(_vgg_block_kernel, offsets=offsets,
                          c_in=cin_p, c_mid=cmid_p),
        out_shape=jax.ShapeDtypeStruct((N, Cout, S), x_ncdhw.dtype),
        grid_spec=pltpu.PrefetchScalarGridSpec(
            num_scalar_prefetch=0,
            grid=(N,),
            in_specs=[
                pl.BlockSpec((1, cin_p, S), lambda n: (n, 0, 0)),
                pl.BlockSpec((cmid_p, 27 * cin_p), lambda n: (0, 0)),
                pl.BlockSpec((Cout, 27 * cmid_p), lambda n: (0, 0)),
                pl.BlockSpec((27, S), lambda n: (0, 0)),   # resident masks
            ],
            out_specs=pl.BlockSpec((1, Cout, S), lambda n: (n, 0, 0)),
            scratch_shapes=[pltpu.VMEM((kmax, S), jnp.float32)],
        ),
        # TODO(synk): pltpu.CORE_PARALLEL here on v7x to split batch over 2 TCs.
        compiler_params=pltpu.CompilerParams(
            dimension_semantics=("parallel",)),
    )(x_flat, w1, w2, masks)
    return out.reshape(N, Cout, D, H, W)


# ---------------------------------------------------------------------------
# Reference path + deterministic init (PyTorch-equivalent), for self-check.
# ---------------------------------------------------------------------------

def init_conv_params(key, cin, cout):
    """Mimics PyTorch Conv3d default init (uniform +-1/sqrt(fan_in))."""
    kw, kb = jax.random.split(key)
    fan_in = cin * 27
    bound = 1.0 / math.sqrt(fan_in)
    w_pt = jax.random.uniform(kw, (cout, cin, 3, 3, 3), jnp.float32, -bound, bound)
    b = jax.random.uniform(kb, (cout,), jnp.float32, -bound, bound)
    return w_pt, b


def reference_stage(x_ncdhw, w_pt, b):
    y = lax.conv_general_dilated(
        x_ncdhw, w_pt, window_strides=(1, 1, 1),
        padding=((1, 1), (1, 1), (1, 1)),
        dimension_numbers=("NCDHW", "OIDHW", "NCDHW"))
    y = y + b[None, :, None, None, None]
    mean = jnp.mean(y, axis=(2, 3, 4), keepdims=True)
    var = jnp.mean((y - mean) ** 2, axis=(2, 3, 4), keepdims=True)
    y = (y - mean) * lax.rsqrt(var + EPS)
    return jnp.maximum(y, 0.0)


def reference_vgg_block(x_ncdhw, w1_pt, b1, w2_pt, b2):
    h = reference_stage(x_ncdhw, w1_pt, b1)
    return reference_stage(h, w2_pt, b2)


if __name__ == "__main__":
    # Small shapes consistent with the module: batch=2, in=4, mid=8, out=4, D=H=W=8.
    N, Cin, Cmid, Cout = 2, 4, 8, 4
    D = H = W = 8

    root = jax.random.PRNGKey(0)
    kx, k1, k2 = jax.random.split(root, 3)

    x = jax.random.normal(kx, (N, Cin, D, H, W), dtype=jnp.float32)  # NCDHW

    w1_pt, b1 = init_conv_params(k1, Cin, Cmid)
    w2_pt, b2 = init_conv_params(k2, Cmid, Cout)

    out = jax.block_until_ready(vgg_block(x, w1_pt, w2_pt))
    assert out.shape == (N, Cout, D, H, W), out.shape

    ref = jax.block_until_ready(reference_vgg_block(x, w1_pt, b1, w2_pt, b2))
    err = float(jnp.max(jnp.abs(out - ref)))
    assert jnp.allclose(out, ref, atol=1e-3, rtol=1e-3), err

    print("KERNEL_OK")
</pallas_src>

<mosaic_0001>
module attributes {stable_mosaic.version = 11 : i64} {
  func.func @_vgg_block_kernel(%arg0: i32, %arg1: memref<1x8x512xf32, #tpu.memory_space<vmem>>, %arg2: memref<8x216xf32, #tpu.memory_space<vmem>>, %arg3: memref<4x216xf32, #tpu.memory_space<vmem>>, %arg4: memref<27x512xf32, #tpu.memory_space<vmem>>, %arg5: memref<1x4x512xf32, #tpu.memory_space<vmem>>, %arg6: memref<216x512xf32, #tpu.memory_space<vmem>>) attributes {dimension_semantics = [#tpu.dimension_semantics<parallel>], iteration_bounds = array<i64: 2>, scalar_prefetch = 0 : i64, scratch_operands = 1 : i64, tpu.core_type = #tpu.core_type<tc>, window_params = [{transform_indices = @transform_0, window_bounds = array<i64: 1, 8, 512>}, {pipeline_mode = #tpu.pipeline_mode<synchronous>, transform_indices = @transform_1, window_bounds = array<i64: 8, 216>}, {pipeline_mode = #tpu.pipeline_mode<synchronous>, transform_indices = @transform_2, window_bounds = array<i64: 4, 216>}, {pipeline_mode = #tpu.pipeline_mode<synchronous>, transform_indices = @transform_3, window_bounds = array<i64: 27, 512>}, {transform_indices = @transform_4, window_bounds = array<i64: 1, 4, 512>}]} {
    %c0 = arith.constant 0 : index
    %c0_0 = arith.constant 0 : index
    %c0_1 = arith.constant 0 : index
    %0 = vector.load %arg1[%c0, %c0_0, %c0_1] : memref<1x8x512xf32, #tpu.memory_space<vmem>>, vector<1x8x512xf32>
    %1 = vector.shape_cast %0 : vector<1x8x512xf32> to vector<8x512xf32>
    %c73_i32 = arith.constant 73 : i32
    %2 = tpu.dynamic_rotate %1 by %c73_i32 dim 1 : vector<8x512xf32>, i32 -> vector<8x512xf32>
    %c0_2 = arith.constant 0 : index
    %c0_3 = arith.constant 0 : index
    %3 = vector.load %arg4[%c0_2, %c0_3] : memref<27x512xf32, #tpu.memory_space<vmem>>, vector<1x512xf32>
    %4 = vector.broadcast %3 : vector<1x512xf32> to vector<8x512xf32>
    %5 = arith.mulf %2, %4 : vector<8x512xf32>
    %c0_4 = arith.constant 0 : index
    %c0_5 = arith.constant 0 : index
    %6 = vector.load %arg6[%c0_4, %c0_5] : memref<216x512xf32, #tpu.memory_space<vmem>>, vector<8x512xf32>
    tpu.vector_store %arg6[%c0_4, %c0_5], %5 {strides = array<i32>} : memref<216x512xf32, #tpu.memory_space<vmem>>, vector<8x512xf32>,
    %c72_i32 = arith.constant 72 : i32
    %7 = tpu.dynamic_rotate %1 by %c72_i32 dim 1 : vector<8x512xf32>, i32 -> vector<8x512xf32>
    %c1 = arith.constant 1 : index
    %c0_6 = arith.constant 0 : index
    %8 = vector.load %arg4[%c1, %c0_6] : memref<27x512xf32, #tpu.memory_space<vmem>>, vector<1x512xf32>
    %9 = vector.broadcast %8 : vector<1x512xf32> to vector<8x512xf32>
    %10 = arith.mulf %7, %9 : vector<8x512xf32>
    %c8 = arith.constant 8 : index
    %c0_7 = arith.constant 0 : index
    %11 = vector.load %arg6[%c8, %c0_7] : memref<216x512xf32, #tpu.memory_space<vmem>>, vector<8x512xf32>
    tpu.vector_store %arg6[%c8, %c0_7], %10 {strides = array<i32>} : memref<216x512xf32, #tpu.memory_space<vmem>>, vector<8x512xf32>,
    %c71_i32 = arith.constant 71 : i32
    %12 = tpu.dynamic_rotate %1 by %c71_i32 dim 1 : vector<8x512xf32>, i32 -> vector<8x512xf32>
    %c2 = arith.constant 2 : index
    %c0_8 = arith.constant 0 : index
    %13 = vector.load %arg4[%c2, %c0_8] : memref<27x512xf32, #tpu.memory_space<vmem>>, vector<1x512xf32>
    %14 = vector.broadcast %13 : vector<1x512xf32> to vector<8x512xf32>
    %15 = arith.mulf %12, %14 : vector<8x512xf32>
    %c16 = arith.constant 16 : index
    %c0_9 = arith.constant 0 : index
    %16 = vector.load %arg6[%c16, %c0_9] : memref<216x512xf32, #tpu.memory_space<vmem>>, vector<8x512xf32>
    tpu.vector_store %arg6[%c16, %c0_9], %15 {strides = array<i32>} : memref<216x512xf32, #tpu.memory_space<vmem>>, vector<8x512xf32>,
    %c65_i32 = arith.constant 65 : i32
    %17 = tpu.dynamic_rotate %1 by %c65_i32 dim 1 : vector<8x512xf32>, i32 -> vector<8x512xf32>
    %c3 = arith.constant 3 : index
    %c0_10 = arith.constant 0 : index
    %18 = vector.load %arg4[%c3, %c0_10] : memref<27x512xf32, #tpu.memory_space<vmem>>, vector<1x512xf32>
    %19 = vector.broadcast %18 : vector<1x512xf32> to vector<8x512xf32>
    %20 = arith.mulf %17, %19 : vector<8x512xf32>
    %c24 = arith.constant 24 : index
    %c0_11 = arith.constant 0 : index
    %21 = vector.load %arg6[%c24, %c0_11] : memref<216x512xf32, #tpu.memory_space<vmem>>, vector<8x512xf32>
    tpu.vector_store %arg6[%c24, %c0_11], %20 {strides = array<i32>} : memref<216x512xf32, #tpu.memory_space<vmem>>, vector<8x512xf32>,
    %c64_i32 = arith.constant 64 : i32
    %22 = tpu.dynamic_rotate %1 by %c64_i32 dim 1 : vector<8x512xf32>, i32 -> vector<8x512xf32>
    %c4 = arith.constant 4 : index
    %c0_12 = arith.constant 0 : index
    %23 = vector.load %arg4[%c4, %c0_12] : memref<27x512xf32, #tpu.memory_space<vmem>>, vector<1x512xf32>
    %24 = vector.broadcast %23 : vector<1x512xf32> to vector<8x512xf32>
    %25 = arith.mulf %22, %24 : vector<8x512xf32>
    %c32 = arith.constant 32 : index
    %c0_13 = arith.constant 0 : index
    %26 = vector.load %arg6[%c32, %c0_13] : memref<216x512xf32, #tpu.memory_space<vmem>>, vector<8x512xf32>
    tpu.vector_store %arg6[%c32, %c0_13], %25 {strides = array<i32>} : memref<216x512xf32, #tpu.memory_space<vmem>>, vector<8x512xf32>,
    %c63_i32 = arith.constant 63 : i32
    %27 = tpu.dynamic_rotate %1 by %c63_i32 dim 1 : vector<8x512xf32>, i32 -> vector<8x512xf32>
    %c5 = arith.constant 5 : index
    %c0_14 = arith.constant 0 : index
    %28 = vector.load %arg4[%c5, %c0_14] : memref<27x512xf32, #tpu.memory_space<vmem>>, vector<1x512xf32>
    %29 = vector.broadcast %28 : vector<1x512xf32> to vector<8x512xf32>
    %30 = arith.mulf %27, %29 : vector<8x512xf32>
    %c40 = arith.constant 40 : index
    %c0_15 = arith.constant 0 : index
    %31 = vector.load %arg6[%c40, %c0_15] : memref<216x512xf32, #tpu.memory_space<vmem>>, vector<8x512xf32>
    tpu.vector_store %arg6[%c40, %c0_15], %30 {strides = array<i32>} : memref<216x512xf32, #tpu.memory_space<vmem>>, vector<8x512xf32>,
    %c57_i32 = arith.constant 57 : i32
    %32 = tpu.dynamic_rotate %1 by %c57_i32 dim 1 : vector<8x512xf32>, i32 -> vector<8x512xf32>
    %c6 = arith.constant 6 : index
    %c0_16 = arith.constant 0 : index
    %33 = vector.load %arg4[%c6, %c0_16] : memref<27x512xf32, #tpu.memory_space<vmem>>, vector<1x512xf32>
    %34 = vector.broadcast %33 : vector<1x512xf32> to vector<8x512xf32>
    %35 = arith.mulf %32, %34 : vector<8x512xf32>
    %c48 = arith.constant 48 : index
    %c0_17 = arith.constant 0 : index
    %36 = vector.load %arg6[%c48, %c0_17] : memref<216x512xf32, #tpu.memory_space<vmem>>, vector<8x512xf32>
    tpu.vector_store %arg6[%c48, %c0_17], %35 {strides = array<i32>} : memref<216x512xf32, #tpu.memory_space<vmem>>, vector<8x512xf32>,
    %c56_i32 = arith.constant 56 : i32
    %37 = tpu.dynamic_rotate %1 by %c56_i32 dim 1 : vector<8x512xf32>, i32 -> vector<8x512xf32>
    %c7 = arith.constant 7 : index
    %c0_18 = arith.constant 0 : index
    %38 = vector.load %arg4[%c7, %c0_18] : memref<27x512xf32, #tpu.memory_space<vmem>>, vector<1x512xf32>
    %39 = vector.broadcast %38 : vector<1x512xf32> to vector<8x512xf32>
    %40 = arith.mulf %37, %39 : vector<8x512xf32>
    %c56 = arith.constant 56 : index
    %c0_19 = arith.constant 0 : index
    %41 = vector.load %arg6[%c56, %c0_19] : memref<216x512xf32, #tpu.memory_space<vmem>>, vector<8x512xf32>
    tpu.vector_store %arg6[%c56, %c0_19], %40 {strides = array<i32>} : memref<216x512xf32, #tpu.memory_space<vmem>>, vector<8x512xf32>,
    %c55_i32 = arith.constant 55 : i32
    %42 = tpu.dynamic_rotate %1 by %c55_i32 dim 1 : vector<8x512xf32>, i32 -> vector<8x512xf32>
    %c8_20 = arith.constant 8 : index
    %c0_21 = arith.constant 0 : index
    %43 = vector.load %arg4[%c8_20, %c0_21] : memref<27x512xf32, #tpu.memory_space<vmem>>, vector<1x512xf32>
    %44 = vector.broadcast %43 : vector<1x512xf32> to vector<8x512xf32>
    %45 = arith.mulf %42, %44 : vector<8x512xf32>
    %c64 = arith.constant 64 : index
    %c0_22 = arith.constant 0 : index
    %46 = vector.load %arg6[%c64, %c0_22] : memref<216x512xf32, #tpu.memory_space<vmem>>, vector<8x512xf32>
    tpu.vector_store %arg6[%c64, %c0_22], %45 {strides = array<i32>} : memref<216x512xf32, #tpu.memory_space<vmem>>, vector<8x512xf32>,
    %c9_i32 = arith.constant 9 : i32
    %47 = tpu.dynamic_rotate %1 by %c9_i32 dim 1 : vector<8x512xf32>, i32 -> vector<8x512xf32>
    %c9 = arith.constant 9 : index
    %c0_23 = arith.constant 0 : index
    %48 = vector.load %arg4[%c9, %c0_23] : memref<27x512xf32, #tpu.memory_space<vmem>>, vector<1x512xf32>
    %49 = vector.broadcast %48 : vector<1x512xf32> to vector<8x512xf32>
    %50 = arith.mulf %47, %49 : vector<8x512xf32>
    %c72 = arith.constant 72 : index
    %c0_24 = arith.constant 0 : index
    %51 = vector.load %arg6[%c72, %c0_24] : memref<216x512xf32, #tpu.memory_space<vmem>>, vector<8x512xf32>
    tpu.vector_store %arg6[%c72, %c0_24], %50 {strides = array<i32>} : memref<216x512xf32, #tpu.memory_space<vmem>>, vector<8x512xf32>,
    %c8_i32 = arith.constant 8 : i32
    %52 = tpu.dynamic_rotate %1 by %c8_i32 dim 1 : vector<8x512xf32>, i32 -> vector<8x512xf32>
    %c10 = arith.constant 10 : index
    %c0_25 = arith.constant 0 : index
    %53 = vector.load %arg4[%c10, %c0_25] : memref<27x512xf32, #tpu.memory_space<vmem>>, vector<1x512xf32>
    %54 = vector.broadcast %53 : vector<1x512xf32> to vector<8x512xf32>
    %55 = arith.mulf %52, %54 : vector<8x512xf32>
    %c80 = arith.constant 80 : index
    %c0_26 = arith.constant 0 : index
    %56 = vector.load %arg6[%c80, %c0_26] : memref<216x512xf32, #tpu.memory_space<vmem>>, vector<8x512xf32>
    tpu.vector_store %arg6[%c80, %c0_26], %55 {strides = array<i32>} : memref<216x512xf32, #tpu.memory_space<vmem>>, vector<8x512xf32>,
    %c7_i32 = arith.constant 7 : i32
    %57 = tpu.dynamic_rotate %1 by %c7_i32 dim 1 : vector<8x512xf32>, i32 -> vector<8x512xf32>
    %c11 = arith.constant 11 : index
    %c0_27 = arith.constant 0 : index
    %58 = vector.load %arg4[%c11, %c0_27] : memref<27x512xf32, #tpu.memory_space<vmem>>, vector<1x512xf32>
    %59 = vector.broadcast %58 : vector<1x512xf32> to vector<8x512xf32>
    %60 = arith.mulf %57, %59 : vector<8x512xf32>
    %c88 = arith.constant 88 : index
    %c0_28 = arith.constant 0 : index
    %61 = vector.load %arg6[%c88, %c0_28] : memref<216x512xf32, #tpu.memory_space<vmem>>, vector<8x512xf32>
    tpu.vector_store %arg6[%c88, %c0_28], %60 {strides = array<i32>} : memref<216x512xf32, #tpu.memory_space<vmem>>, vector<8x512xf32>,
    %c1_i32 = arith.constant 1 : i32
    %62 = tpu.dynamic_rotate %1 by %c1_i32 dim 1 : vector<8x512xf32>, i32 -> vector<8x512xf32>
    %c12 = arith.constant 12 : index
    %c0_29 = arith.constant 0 : index
    %63 = vector.load %arg4[%c12, %c0_29] : memref<27x512xf32, #tpu.memory_space<vmem>>, vector<1x512xf32>
    %64 = vector.broadcast %63 : vector<1x512xf32> to vector<8x512xf32>
    %65 = arith.mulf %62, %64 : vector<8x512xf32>
    %c96 = arith.constant 96 : index
    %c0_30 = arith.constant 0 : index
    %66 = vector.load %arg6[%c96, %c0_30] : memref<216x512xf32, #tpu.memory_space<vmem>>, vector<8x512xf32>
    tpu.vector_store %arg6[%c96, %c0_30], %65 {strides = array<i32>} : memref<216x512xf32, #tpu.memory_space<vmem>>, vector<8x512xf32>,
    %c104 = arith.constant 104 : index
    %c0_31 = arith.constant 0 : index
    %67 = vector.load %arg6[%c104, %c0_31] : memref<216x512xf32, #tpu.memory_space<vmem>>, vector<8x512xf32>
    tpu.vector_store %arg6[%c104, %c0_31], %1 {strides = array<i32>} : memref<216x512xf32, #tpu.memory_space<vmem>>, vector<8x512xf32>,
    %c511_i32 = arith.constant 511 : i32
    %68 = tpu.dynamic_rotate %1 by %c511_i32 dim 1 : vector<8x512xf32>, i32 -> vector<8x512xf32>
    %c14 = arith.constant 14 : index
    %c0_32 = arith.constant 0 : index
    %69 = vector.load %arg4[%c14, %c0_32] : memref<27x512xf32, #tpu.memory_space<vmem>>, vector<1x512xf32>
    %70 = vector.broadcast %69 : vector<1x512xf32> to vector<8x512xf32>
    %71 = arith.mulf %68, %70 : vector<8x512xf32>
    %c112 = arith.constant 112 : index
    %c0_33 = arith.constant 0 : index
    %72 = vector.load %arg6[%c112, %c0_33] : memref<216x512xf32, #tpu.memory_space<vmem>>, vector<8x512xf32>
    tpu.vector_store %arg6[%c112, %c0_33], %71 {strides = array<i32>} : memref<216x512xf32, #tpu.memory_space<vmem>>, vector<8x512xf32>,
    %c505_i32 = arith.constant 505 : i32
    %73 = tpu.dynamic_rotate %1 by %c505_i32 dim 1 : vector<8x512xf32>, i32 -> vector<8x512xf32>
    %c15 = arith.constant 15 : index
    %c0_34 = arith.constant 0 : index
    %74 = vector.load %arg4[%c15, %c0_34] : memref<27x512xf32, #tpu.memory_space<vmem>>, vector<1x512xf32>
    %75 = vector.broadcast %74 : vector<1x512xf32> to vector<8x512xf32>
    %76 = arith.mulf %73, %75 : vector<8x512xf32>
    %c120 = arith.constant 120 : index
    %c0_35 = arith.constant 0 : index
    %77 = vector.load %arg6[%c120, %c0_35] : memref<216x512xf32, #tpu.memory_space<vmem>>, vector<8x512xf32>
    tpu.vector_store %arg6[%c120, %c0_35], %76 {strides = array<i32>} : memref<216x512xf32, #tpu.memory_space<vmem>>, vector<8x512xf32>,
    %c504_i32 = arith.constant 504 : i32
    %78 = tpu.dynamic_rotate %1 by %c504_i32 dim 1 : vector<8x512xf32>, i32 -> vector<8x512xf32>
    %c16_36 = arith.constant 16 : index
    %c0_37 = arith.constant 0 : index
    %79 = vector.load %arg4[%c16_36, %c0_37] : memref<27x512xf32, #tpu.memory_space<vmem>>, vector<1x512xf32>
    %80 = vector.broadcast %79 : vector<1x512xf32> to vector<8x512xf32>
    %81 = arith.mulf %78, %80 : vector<8x512xf32>
    %c128 = arith.constant 128 : index
    %c0_38 = arith.constant 0 : index
    %82 = vector.load %arg6[%c128, %c0_38] : memref<216x512xf32, #tpu.memory_space<vmem>>, vector<8x512xf32>
    tpu.vector_store %arg6[%c128, %c0_38], %81 {strides = array<i32>} : memref<216x512xf32, #tpu.memory_space<vmem>>, vector<8x512xf32>,
    %c503_i32 = arith.constant 503 : i32
    %83 = tpu.dynamic_rotate %1 by %c503_i32 dim 1 : vector<8x512xf32>, i32 -> vector<8x512xf32>
    %c17 = arith.constant 17 : index
    %c0_39 = arith.constant 0 : index
    %84 = vector.load %arg4[%c17, %c0_39] : memref<27x512xf32, #tpu.memory_space<vmem>>, vector<1x512xf32>
    %85 = vector.broadcast %84 : vector<1x512xf32> to vector<8x512xf32>
    %86 = arith.mulf %83, %85 : vector<8x512xf32>
    %c136 = arith.constant 136 : index
    %c0_40 = arith.constant 0 : index
    %87 = vector.load %arg6[%c136, %c0_40] : memref<216x512xf32, #tpu.memory_space<vmem>>, vector<8x512xf32>
    tpu.vector_store %arg6[%c136, %c0_40], %86 {strides = array<i32>} : memref<216x512xf32, #tpu.memory_space<vmem>>, vector<8x512xf32>,
    %c457_i32 = arith.constant 457 : i32
    %88 = tpu.dynamic_rotate %1 by %c457_i32 dim 1 : vector<8x512xf32>, i32 -> vector<8x512xf32>
    %c18 = arith.constant 18 : index
    %c0_41 = arith.constant 0 : index
    %89 = vector.load %arg4[%c18, %c0_41] : memref<27x512xf32, #tpu.memory_space<vmem>>, vector<1x512xf32>
    %90 = vector.broadcast %89 : vector<1x512xf32> to vector<8x512xf32>
    %91 = arith.mulf %88, %90 : vector<8x512xf32>
    %c144 = arith.constant 144 : index
    %c0_42 = arith.constant 0 : index
    %92 = vector.load %arg6[%c144, %c0_42] : memref<216x512xf32, #tpu.memory_space<vmem>>, vector<8x512xf32>
    tpu.vector_store %arg6[%c144, %c0_42], %91 {strides = array<i32>} : memref<216x512xf32, #tpu.memory_space<vmem>>, vector<8x512xf32>,
    %c456_i32 = arith.constant 456 : i32
    %93 = tpu.dynamic_rotate %1 by %c456_i32 dim 1 : vector<8x512xf32>, i32 -> vector<8x512xf32>
    %c19 = arith.constant 19 : index
    %c0_43 = arith.constant 0 : index
    %94 = vector.load %arg4[%c19, %c0_43] : memref<27x512xf32, #tpu.memory_space<vmem>>, vector<1x512xf32>
    %95 = vector.broadcast %94 : vector<1x512xf32> to vector<8x512xf32>
    %96 = arith.mulf %93, %95 : vector<8x512xf32>
    %c152 = arith.constant 152 : index
    %c0_44 = arith.constant 0 : index
    %97 = vector.load %arg6[%c152, %c0_44] : memref<216x512xf32, #tpu.memory_space<vmem>>, vector<8x512xf32>
    tpu.vector_store %arg6[%c152, %c0_44], %96 {strides = array<i32>} : memref<216x512xf32, #tpu.memory_space<vmem>>, vector<8x512xf32>,
    %c455_i32 = arith.constant 455 : i32
    %98 = tpu.dynamic_rotate %1 by %c455_i32 dim 1 : vector<8x512xf32>, i32 -> vector<8x512xf32>
    %c20 = arith.constant 20 : index
    %c0_45 = arith.constant 0 : index
    %99 = vector.load %arg4[%c20, %c0_45] : memref<27x512xf32, #tpu.memory_space<vmem>>, vector<1x512xf32>
    %100 = vector.broadcast %99 : vector<1x512xf32> to vector<8x512xf32>
    %101 = arith.mulf %98, %100 : vector<8x512xf32>
    %c160 = arith.constant 160 : index
    %c0_46 = arith.constant 0 : index
    %102 = vector.load %arg6[%c160, %c0_46] : memref<216x512xf32, #tpu.memory_space<vmem>>, vector<8x512xf32>
    tpu.vector_store %arg6[%c160, %c0_46], %101 {strides = array<i32>} : memref<216x512xf32, #tpu.memory_space<vmem>>, vector<8x512xf32>,
    %c449_i32 = arith.constant 449 : i32
    %103 = tpu.dynamic_rotate %1 by %c449_i32 dim 1 : vector<8x512xf32>, i32 -> vector<8x512xf32>
    %c21 = arith.constant 21 : index
    %c0_47 = arith.constant 0 : index
    %104 = vector.load %arg4[%c21, %c0_47] : memref<27x512xf32, #tpu.memory_space<vmem>>, vector<1x512xf32>
    %105 = vector.broadcast %104 : vector<1x512xf32> to vector<8x512xf32>
    %106 = arith.mulf %103, %105 : vector<8x512xf32>
    %c168 = arith.constant 168 : index
    %c0_48 = arith.constant 0 : index
    %107 = vector.load %arg6[%c168, %c0_48] : memref<216x512xf32, #tpu.memory_space<vmem>>, vector<8x512xf32>
    tpu.vector_store %arg6[%c168, %c0_48], %106 {strides = array<i32>} : memref<216x512xf32, #tpu.memory_space<vmem>>, vector<8x512xf32>,
    %c448_i32 = arith.constant 448 : i32
    %108 = tpu.dynamic_rotate %1 by %c448_i32 dim 1 : vector<8x512xf32>, i32 -> vector<8x512xf32>
    %c22 = arith.constant 22 : index
    %c0_49 = arith.constant 0 : index
    %109 = vector.load %arg4[%c22, %c0_49] : memref<27x512xf32, #tpu.memory_space<vmem>>, vector<1x512xf32>
    %110 = vector.broadcast %109 : vector<1x512xf32> to vector<8x512xf32>
    %111 = arith.mulf %108, %110 : vector<8x512xf32>
    %c176 = arith.constant 176 : index
    %c0_50 = arith.constant 0 : index
    %112 = vector.load %arg6[%c176, %c0_50] : memref<216x512xf32, #tpu.memory_space<vmem>>, vector<8x512xf32>
    tpu.vector_store %arg6[%c176, %c0_50], %111 {strides = array<i32>} : memref<216x512xf32, #tpu.memory_space<vmem>>, vector<8x512xf32>,
    %c447_i32 = arith.constant 447 : i32
    %113 = tpu.dynamic_rotate %1 by %c447_i32 dim 1 : vector<8x512xf32>, i32 -> vector<8x512xf32>
    %c23 = arith.constant 23 : index
    %c0_51 = arith.constant 0 : index
    %114 = vector.load %arg4[%c23, %c0_51] : memref<27x512xf32, #tpu.memory_space<vmem>>, vector<1x512xf32>
    %115 = vector.broadcast %114 : vector<1x512xf32> to vector<8x512xf32>
    %116 = arith.mulf %113, %115 : vector<8x512xf32>
    %c184 = arith.constant 184 : index
    %c0_52 = arith.constant 0 : index
    %117 = vector.load %arg6[%c184, %c0_52] : memref<216x512xf32, #tpu.memory_space<vmem>>, vector<8x512xf32>
    tpu.vector_store %arg6[%c184, %c0_52], %116 {strides = array<i32>} : memref<216x512xf32, #tpu.memory_space<vmem>>, vector<8x512xf32>,
    %c441_i32 = arith.constant 441 : i32
    %118 = tpu.dynamic_rotate %1 by %c441_i32 dim 1 : vector<8x512xf32>, i32 -> vector<8x512xf32>
    %c24_53 = arith.constant 24 : index
    %c0_54 = arith.constant 0 : index
    %119 = vector.load %arg4[%c24_53, %c0_54] : memref<27x512xf32, #tpu.memory_space<vmem>>, vector<1x512xf32>
    %120 = vector.broadcast %119 : vector<1x512xf32> to vector<8x512xf32>
    %121 = arith.mulf %118, %120 : vector<8x512xf32>
    %c192 = arith.constant 192 : index
    %c0_55 = arith.constant 0 : index
    %122 = vector.load %arg6[%c192, %c0_55] : memref<216x512xf32, #tpu.memory_space<vmem>>, vector<8x512xf32>
    tpu.vector_store %arg6[%c192, %c0_55], %121 {strides = array<i32>} : memref<216x512xf32, #tpu.memory_space<vmem>>, vector<8x512xf32>,
    %c440_i32 = arith.constant 440 : i32
    %123 = tpu.dynamic_rotate %1 by %c440_i32 dim 1 : vector<8x512xf32>, i32 -> vector<8x512xf32>
    %c25 = arith.constant 25 : index
    %c0_56 = arith.constant 0 : index
    %124 = vector.load %arg4[%c25, %c0_56] : memref<27x512xf32, #tpu.memory_space<vmem>>, vector<1x512xf32>
    %125 = vector.broadcast %124 : vector<1x512xf32> to vector<8x512xf32>
    %126 = arith.mulf %123, %125 : vector<8x512xf32>
    %c200 = arith.constant 200 : index
    %c0_57 = arith.constant 0 : index
    %127 = vector.load %arg6[%c200, %c0_57] : memref<216x512xf32, #tpu.memory_space<vmem>>, vector<8x512xf32>
    tpu.vector_store %arg6[%c200, %c0_57], %126 {strides = array<i32>} : memref<216x512xf32, #tpu.memory_space<vmem>>, vector<8x512xf32>,
    %c439_i32 = arith.constant 439 : i32
    %128 = tpu.dynamic_rotate %1 by %c439_i32 dim 1 : vector<8x512xf32>, i32 -> vector<8x512xf32>
    %c26 = arith.constant 26 : index
    %c0_58 = arith.constant 0 : index
    %129 = vector.load %arg4[%c26, %c0_58] : memref<27x512xf32, #tpu.memory_space<vmem>>, vector<1x512xf32>
    %130 = vector.broadcast %129 : vector<1x512xf32> to vector<8x512xf32>
    %131 = arith.mulf %128, %130 : vector<8x512xf32>
    %c208 = arith.constant 208 : index
    %c0_59 = arith.constant 0 : index
    %132 = vector.load %arg6[%c208, %c0_59] : memref<216x512xf32, #tpu.memory_space<vmem>>, vector<8x512xf32>
    tpu.vector_store %arg6[%c208, %c0_59], %131 {strides = array<i32>} : memref<216x512xf32, #tpu.memory_space<vmem>>, vector<8x512xf32>,
    %c0_60 = arith.constant 0 : index
    %c0_61 = arith.constant 0 : index
    %133 = vector.load %arg2[%c0_60, %c0_61] : memref<8x216xf32, #tpu.memory_space<vmem>>, vector<8x216xf32>
    %c0_62 = arith.constant 0 : index
    %c0_63 = arith.constant 0 : index
    %134 = vector.load %arg6[%c0_62, %c0_63] : memref<216x512xf32, #tpu.memory_space<vmem>>, vector<216x512xf32>
    %cst = arith.constant dense<0.000000e+00> : vector<8x512xf32>
    %135 = tpu.matmul %133, %134, %cst {dimension_numbers = #tpu.dot_dimension_numbers<[1], [0], [0], [1], [0, 0, 1, 1], [], []>} : vector<8x216xf32>, vector<216x512xf32>, vector<8x512xf32> -> vector<8x512xf32>
    %cst_64 = arith.constant dense<0.000000e+00> : vector<8xf32>
    %136 = vector.multi_reduction <add>, %135, %cst_64 [1] : vector<8x512xf32> to vector<8xf32>
    %137 = vector.shape_cast %136 : vector<8xf32> to vector<8x1xf32>
    %cst_65 = arith.constant 0.001953125 : f32
    %138 = vector.broadcast %cst_65 : f32 to vector<8x1xf32>
    %139 = arith.mulf %137, %138 : vector<8x1xf32>
    %140 = vector.broadcast %139 : vector<8x1xf32> to vector<8x512xf32>
    %141 = arith.subf %135, %140 : vector<8x512xf32>
    %142 = arith.mulf %141, %141 : vector<8x512xf32>
    %cst_66 = arith.constant dense<0.000000e+00> : vector<8xf32>
    %143 = vector.multi_reduction <add>, %142, %cst_66 [1] : vector<8x512xf32> to vector<8xf32>
    %144 = vector.shape_cast %143 : vector<8xf32> to vector<8x1xf32>
    %cst_67 = arith.constant 0.001953125 : f32
    %145 = vector.broadcast %cst_67 : f32 to vector<8x1xf32>
    %146 = arith.mulf %144, %145 : vector<8x1xf32>
    %cst_68 = arith.constant 9.99999974E-6 : f32
    %147 = vector.broadcast %cst_68 : f32 to vector<8x1xf32>
    %148 = arith.addf %146, %147 : vector<8x1xf32>
    %149 = math.rsqrt %148 : vector<8x1xf32>
    %150 = vector.broadcast %149 : vector<8x1xf32> to vector<8x512xf32>
    %151 = arith.mulf %141, %150 : vector<8x512xf32>
    %cst_69 = arith.constant 0.000000e+00 : f32
    %152 = vector.broadcast %cst_69 : f32 to vector<8x512xf32>
    %153 = arith.maximumf %151, %152 : vector<8x512xf32>
    %c73_i32_70 = arith.constant 73 : i32
    %154 = tpu.dynamic_rotate %153 by %c73_i32_70 dim 1 : vector<8x512xf32>, i32 -> vector<8x512xf32>
    %c0_71 = arith.constant 0 : index
    %c0_72 = arith.constant 0 : index
    %155 = vector.load %arg4[%c0_71, %c0_72] : memref<27x512xf32, #tpu.memory_space<vmem>>, vector<1x512xf32>
    %156 = vector.broadcast %155 : vector<1x512xf32> to vector<8x512xf32>
    %157 = arith.mulf %154, %156 : vector<8x512xf32>
    %c0_73 = arith.constant 0 : index
    %c0_74 = arith.constant 0 : index
    %158 = vector.load %arg6[%c0_73, %c0_74] : memref<216x512xf32, #tpu.memory_space<vmem>>, vector<8x512xf32>
    tpu.vector_store %arg6[%c0_73, %c0_74], %157 {strides = array<i32>} : memref<216x512xf32, #tpu.memory_space<vmem>>, vector<8x512xf32>,
    %c72_i32_75 = arith.constant 72 : i32
    %159 = tpu.dynamic_rotate %153 by %c72_i32_75 dim 1 : vector<8x512xf32>, i32 -> vector<8x512xf32>
    %c1_76 = arith.constant 1 : index
    %c0_77 = arith.constant 0 : index
    %160 = vector.load %arg4[%c1_76, %c0_77] : memref<27x512xf32, #tpu.memory_space<vmem>>, vector<1x512xf32>
    %161 = vector.broadcast %160 : vector<1x512xf32> to vector<8x512xf32>
    %162 = arith.mulf %159, %161 : vector<8x512xf32>
    %c8_78 = arith.constant 8 : index
    %c0_79 = arith.constant 0 : index
    %163 = vector.load %arg6[%c8_78, %c0_79] : memref<216x512xf32, #tpu.memory_space<vmem>>, vector<8x512xf32>
    tpu.vector_store %arg6[%c8_78, %c0_79], %162 {strides = array<i32>} : memref<216x512xf32, #tpu.memory_space<vmem>>, vector<8x512xf32>,
    %c71_i32_80 = arith.constant 71 : i32
    %164 = tpu.dynamic_rotate %153 by %c71_i32_80 dim 1 : vector<8x512xf32>, i32 -> vector<8x512xf32>
    %c2_81 = arith.constant 2 : index
    %c0_82 = arith.constant 0 : index
    %165 = vector.load %arg4[%c2_81, %c0_82] : memref<27x512xf32, #tpu.memory_space<vmem>>, vector<1x512xf32>
    %166 = vector.broadcast %165 : vector<1x512xf32> to vector<8x512xf32>
    %167 = arith.mulf %164, %166 : vector<8x512xf32>
    %c16_83 = arith.constant 16 : index
    %c0_84 = arith.constant 0 : index
    %168 = vector.load %arg6[%c16_83, %c0_84] : memref<216x512xf32, #tpu.memory_space<vmem>>, vector<8x512xf32>
    tpu.vector_store %arg6[%c16_83, %c0_84], %167 {strides = array<i32>} : memref<216x512xf32, #tpu.memory_space<vmem>>, vector<8x512xf32>,
    %c65_i32_85 = arith.constant 65 : i32
    %169 = tpu.dynamic_rotate %153 by %c65_i32_85 dim 1 : vector<8x512xf32>, i32 -> vector<8x512xf32>
    %c3_86 = arith.constant 3 : index
    %c0_87 = arith.constant 0 : index
    %170 = vector.load %arg4[%c3_86, %c0_87] : memref<27x512xf32, #tpu.memory_space<vmem>>, vector<1x512xf32>
    %171 = vector.broadcast %170 : vector<1x512xf32> to vector<8x512xf32>
    %172 = arith.mulf %169, %171 : vector<8x512xf32>
    %c24_88 = arith.constant 24 : index
    %c0_89 = arith.constant 0 : index
    %173 = vector.load %arg6[%c24_88, %c0_89] : memref<216x512xf32, #tpu.memory_space<vmem>>, vector<8x512xf32>
    tpu.vector_store %arg6[%c24_88, %c0_89], %172 {strides = array<i32>} : memref<216x512xf32, #tpu.memory_space<vmem>>, vector<8x512xf32>,
    %c64_i32_90 = arith.constant 64 : i32
    %174 = tpu.dynamic_rotate %153 by %c64_i32_90 dim 1 : vector<8x512xf32>, i32 -> vector<8x512xf32>
    %c4_91 = arith.constant 4 : index
    %c0_92 = arith.constant 0 : index
    %175 = vector.load %arg4[%c4_91, %c0_92] : memref<27x512xf32, #tpu.memory_space<vmem>>, vector<1x512xf32>
    %176 = vector.broadcast %175 : vector<1x512xf32> to vector<8x512xf32>
    %177 = arith.mulf %174, %176 : vector<8x512xf32>
    %c32_93 = arith.constant 32 : index
    %c0_94 = arith.constant 0 : index
    %178 = vector.load %arg6[%c32_93, %c0_94] : memref<216x512xf32, #tpu.memory_space<vmem>>, vector<8x512xf32>
    tpu.vector_store %arg6[%c32_93, %c0_94], %177 {strides = array<i32>} : memref<216x512xf32, #tpu.memory_space<vmem>>, vector<8x512xf32>,
    %c63_i32_95 = arith.constant 63 : i32
    %179 = tpu.dynamic_rotate %153 by %c63_i32_95 dim 1 : vector<8x512xf32>, i32 -> vector<8x512xf32>
    %c5_96 = arith.constant 5 : index
    %c0_97 = arith.constant 0 : index
    %180 = vector.load %arg4[%c5_96, %c0_97] : memref<27x512xf32, #tpu.memory_space<vmem>>, vector<1x512xf32>
    %181 = vector.broadcast %180 : vector<1x512xf32> to vector<8x512xf32>
    %182 = arith.mulf %179, %181 : vector<8x512xf32>
    %c40_98 = arith.constant 40 : index
    %c0_99 = arith.constant 0 : index
    %183 = vector.load %arg6[%c40_98, %c0_99] : memref<216x512xf32, #tpu.memory_space<vmem>>, vector<8x512xf32>
    tpu.vector_store %arg6[%c40_98, %c0_99], %182 {strides = array<i32>} : memref<216x512xf32, #tpu.memory_space<vmem>>, vector<8x512xf32>,
    %c57_i32_100 = arith.constant 57 : i32
    %184 = tpu.dynamic_rotate %153 by %c57_i32_100 dim 1 : vector<8x512xf32>, i32 -> vector<8x512xf32>
    %c6_101 = arith.constant 6 : index
    %c0_102 = arith.constant 0 : index
    %185 = vector.load %arg4[%c6_101, %c0_102] : memref<27x512xf32, #tpu.memory_space<vmem>>, vector<1x512xf32>
    %186 = vector.broadcast %185 : vector<1x512xf32> to vector<8x512xf32>
    %187 = arith.mulf %184, %186 : vector<8x512xf32>
    %c48_103 = arith.constant 48 : index
    %c0_104 = arith.constant 0 : index
    %188 = vector.load %arg6[%c48_103, %c0_104] : memref<216x512xf32, #tpu.memory_space<vmem>>, vector<8x512xf32>
    tpu.vector_store %arg6[%c48_103, %c0_104], %187 {strides = array<i32>} : memref<216x512xf32, #tpu.memory_space<vmem>>, vector<8x512xf32>,
    %c56_i32_105 = arith.constant 56 : i32
    %189 = tpu.dynamic_rotate %153 by %c56_i32_105 dim 1 : vector<8x512xf32>, i32 -> vector<8x512xf32>
    %c7_106 = arith.constant 7 : index
    %c0_107 = arith.constant 0 : index
    %190 = vector.load %arg4[%c7_106, %c0_107] : memref<27x512xf32, #tpu.memory_space<vmem>>, vector<1x512xf32>
    %191 = vector.broadcast %190 : vector<1x512xf32> to vector<8x512xf32>
    %192 = arith.mulf %189, %191 : vector<8x512xf32>
    %c56_108 = arith.constant 56 : index
    %c0_109 = arith.constant 0 : index
    %193 = vector.load %arg6[%c56_108, %c0_109] : memref<216x512xf32, #tpu.memory_space<vmem>>, vector<8x512xf32>
    tpu.vector_store %arg6[%c56_108, %c0_109], %192 {strides = array<i32>} : memref<216x512xf32, #tpu.memory_space<vmem>>, vector<8x512xf32>,
    %c55_i32_110 = arith.constant 55 : i32
    %194 = tpu.dynamic_rotate %153 by %c55_i32_110 dim 1 : vector<8x512xf32>, i32 -> vector<8x512xf32>
    %c8_111 = arith.constant 8 : index
    %c0_112 = arith.constant 0 : index
    %195 = vector.load %arg4[%c8_111, %c0_112] : memref<27x512xf32, #tpu.memory_space<vmem>>, vector<1x512xf32>
    %196 = vector.broadcast %195 : vector<1x512xf32> to vector<8x512xf32>
    %197 = arith.mulf %194, %196 : vector<8x512xf32>
    %c64_113 = arith.constant 64 : index
    %c0_114 = arith.constant 0 : index
    %198 = vector.load %arg6[%c64_113, %c0_114] : memref<216x512xf32, #tpu.memory_space<vmem>>, vector<8x512xf32>
    tpu.vector_store %arg6[%c64_113, %c0_114], %197 {strides = array<i32>} : memref<216x512xf32, #tpu.memory_space<vmem>>, vector<8x512xf32>,
    %c9_i32_115 = arith.constant 9 : i32
    %199 = tpu.dynamic_rotate %153 by %c9_i32_115 dim 1 : vector<8x512xf32>, i32 -> vector<8x512xf32>
    %c9_116 = arith.constant 9 : index
    %c0_117 = arith.constant 0 : index
    %200 = vector.load %arg4[%c9_116, %c0_117] : memref<27x512xf32, #tpu.memory_space<vmem>>, vector<1x512xf32>
    %201 = vector.broadcast %200 : vector<1x512xf32> to vector<8x512xf32>
    %202 = arith.mulf %199, %201 : vector<8x512xf32>
    %c72_118 = arith.constant 72 : index
    %c0_119 = arith.constant 0 : index
    %203 = vector.load %arg6[%c72_118, %c0_119] : memref<216x512xf32, #tpu.memory_space<vmem>>, vector<8x512xf32>
    tpu.vector_store %arg6[%c72_118, %c0_119], %202 {strides = array<i32>} : memref<216x512xf32, #tpu.memory_space<vmem>>, vector<8x512xf32>,
    %c8_i32_120 = arith.constant 8 : i32
    %204 = tpu.dynamic_rotate %153 by %c8_i32_120 dim 1 : vector<8x512xf32>, i32 -> vector<8x512xf32>
    %c10_121 = arith.constant 10 : index
    %c0_122 = arith.constant 0 : index
    %205 = vector.load %arg4[%c10_121, %c0_122] : memref<27x512xf32, #tpu.memory_space<vmem>>, vector<1x512xf32>
    %206 = vector.broadcast %205 : vector<1x512xf32> to vector<8x512xf32>
    %207 = arith.mulf %204, %206 : vector<8x512xf32>
    %c80_123 = arith.constant 80 : index
    %c0_124 = arith.constant 0 : index
    %208 = vector.load %arg6[%c80_123, %c0_124] : memref<216x512xf32, #tpu.memory_space<vmem>>, vector<8x512xf32>
    tpu.vector_store %arg6[%c80_123, %c0_124], %207 {strides = array<i32>} : memref<216x512xf32, #tpu.memory_space<vmem>>, vector<8x512xf32>,
    %c7_i32_125 = arith.constant 7 : i32
    %209 = tpu.dynamic_rotate %153 by %c7_i32_125 dim 1 : vector<8x512xf32>, i32 -> vector<8x512xf32>
    %c11_126 = arith.constant 11 : index
    %c0_127 = arith.constant 0 : index
    %210 = vector.load %arg4[%c11_126, %c0_127] : memref<27x512xf32, #tpu.memory_space<vmem>>, vector<1x512xf32>
    %211 = vector.broadcast %210 : vector<1x512xf32> to vector<8x512xf32>
    %212 = arith.mulf %209, %211 : vector<8x512xf32>
    %c88_128 = arith.constant 88 : index
    %c0_129 = arith.constant 0 : index
    %213 = vector.load %arg6[%c88_128, %c0_129] : memref<216x512xf32, #tpu.memory_space<vmem>>, vector<8x512xf32>
    tpu.vector_store %arg6[%c88_128, %c0_129], %212 {strides = array<i32>} : memref<216x512xf32, #tpu.memory_space<vmem>>, vector<8x512xf32>,
    %c1_i32_130 = arith.constant 1 : i32
    %214 = tpu.dynamic_rotate %153 by %c1_i32_130 dim 1 : vector<8x512xf32>, i32 -> vector<8x512xf32>
    %c12_131 = arith.constant 12 : index
    %c0_132 = arith.constant 0 : index
    %215 = vector.load %arg4[%c12_131, %c0_132] : memref<27x512xf32, #tpu.memory_space<vmem>>, vector<1x512xf32>
    %216 = vector.broadcast %215 : vector<1x512xf32> to vector<8x512xf32>
    %217 = arith.mulf %214, %216 : vector<8x512xf32>
    %c96_133 = arith.constant 96 : index
    %c0_134 = arith.constant 0 : index
    %218 = vector.load %arg6[%c96_133, %c0_134] : memref<216x512xf32, #tpu.memory_space<vmem>>, vector<8x512xf32>
    tpu.vector_store %arg6[%c96_133, %c0_134], %217 {strides = array<i32>} : memref<216x512xf32, #tpu.memory_space<vmem>>, vector<8x512xf32>,
    %c104_135 = arith.constant 104 : index
    %c0_136 = arith.constant 0 : index
    %219 = vector.load %arg6[%c104_135, %c0_136] : memref<216x512xf32, #tpu.memory_space<vmem>>, vector<8x512xf32>
    tpu.vector_store %arg6[%c104_135, %c0_136], %153 {strides = array<i32>} : memref<216x512xf32, #tpu.memory_space<vmem>>, vector<8x512xf32>,
    %c511_i32_137 = arith.constant 511 : i32
    %220 = tpu.dynamic_rotate %153 by %c511_i32_137 dim 1 : vector<8x512xf32>, i32 -> vector<8x512xf32>
    %c14_138 = arith.constant 14 : index
    %c0_139 = arith.constant 0 : index
    %221 = vector.load %arg4[%c14_138, %c0_139] : memref<27x512xf32, #tpu.memory_space<vmem>>, vector<1x512xf32>
    %222 = vector.broadcast %221 : vector<1x512xf32> to vector<8x512xf32>
    %223 = arith.mulf %220, %222 : vector<8x512xf32>
    %c112_140 = arith.constant 112 : index
    %c0_141 = arith.constant 0 : index
    %224 = vector.load %arg6[%c112_140, %c0_141] : memref<216x512xf32, #tpu.memory_space<vmem>>, vector<8x512xf32>
    tpu.vector_store %arg6[%c112_140, %c0_141], %223 {strides = array<i32>} : memref<216x512xf32, #tpu.memory_space<vmem>>, vector<8x512xf32>,
    %c505_i32_142 = arith.constant 505 : i32
    %225 = tpu.dynamic_rotate %153 by %c505_i32_142 dim 1 : vector<8x512xf32>, i32 -> vector<8x512xf32>
    %c15_143 = arith.constant 15 : index
    %c0_144 = arith.constant 0 : index
    %226 = vector.load %arg4[%c15_143, %c0_144] : memref<27x512xf32, #tpu.memory_space<vmem>>, vector<1x512xf32>
    %227 = vector.broadcast %226 : vector<1x512xf32> to vector<8x512xf32>
    %228 = arith.mulf %225, %227 : vector<8x512xf32>
    %c120_145 = arith.constant 120 : index
    %c0_146 = arith.constant 0 : index
    %229 = vector.load %arg6[%c120_145, %c0_146] : memref<216x512xf32, #tpu.memory_space<vmem>>, vector<8x512xf32>
    tpu.vector_store %arg6[%c120_145, %c0_146], %228 {strides = array<i32>} : memref<216x512xf32, #tpu.memory_space<vmem>>, vector<8x512xf32>,
    %c504_i32_147 = arith.constant 504 : i32
    %230 = tpu.dynamic_rotate %153 by %c504_i32_147 dim 1 : vector<8x512xf32>, i32 -> vector<8x512xf32>
    %c16_148 = arith.constant 16 : index
    %c0_149 = arith.constant 0 : index
    %231 = vector.load %arg4[%c16_148, %c0_149] : memref<27x512xf32, #tpu.memory_space<vmem>>, vector<1x512xf32>
    %232 = vector.broadcast %231 : vector<1x512xf32> to vector<8x512xf32>
    %233 = arith.mulf %230, %232 : vector<8x512xf32>
    %c128_150 = arith.constant 128 : index
    %c0_151 = arith.constant 0 : index
    %234 = vector.load %arg6[%c128_150, %c0_151] : memref<216x512xf32, #tpu.memory_space<vmem>>, vector<8x512xf32>
    tpu.vector_store %arg6[%c128_150, %c0_151], %233 {strides = array<i32>} : memref<216x512xf32, #tpu.memory_space<vmem>>, vector<8x512xf32>,
    %c503_i32_152 = arith.constant 503 : i32
    %235 = tpu.dynamic_rotate %153 by %c503_i32_152 dim 1 : vector<8x512xf32>, i32 -> vector<8x512xf32>
    %c17_153 = arith.constant 17 : index
    %c0_154 = arith.constant 0 : index
    %236 = vector.load %arg4[%c17_153, %c0_154] : memref<27x512xf32, #tpu.memory_space<vmem>>, vector<1x512xf32>
    %237 = vector.broadcast %236 : vector<1x512xf32> to vector<8x512xf32>
    %238 = arith.mulf %235, %237 : vector<8x512xf32>
    %c136_155 = arith.constant 136 : index
    %c0_156 = arith.constant 0 : index
    %239 = vector.load %arg6[%c136_155, %c0_156] : memref<216x512xf32, #tpu.memory_space<vmem>>, vector<8x512xf32>
    tpu.vector_store %arg6[%c136_155, %c0_156], %238 {strides = array<i32>} : memref<216x512xf32, #tpu.memory_space<vmem>>, vector<8x512xf32>,
    %c457_i32_157 = arith.constant 457 : i32
    %240 = tpu.dynamic_rotate %153 by %c457_i32_157 dim 1 : vector<8x512xf32>, i32 -> vector<8x512xf32>
    %c18_158 = arith.constant 18 : index
    %c0_159 = arith.constant 0 : index
    %241 = vector.load %arg4[%c18_158, %c0_159] : memref<27x512xf32, #tpu.memory_space<vmem>>, vector<1x512xf32>
    %242 = vector.broadcast %241 : vector<1x512xf32> to vector<8x512xf32>
    %243 = arith.mulf %240, %242 : vector<8x512xf32>
    %c144_160 = arith.constant 144 : index
    %c0_161 = arith.constant 0 : index
    %244 = vector.load %arg6[%c144_160, %c0_161] : memref<216x512xf32, #tpu.memory_space<vmem>>, vector<8x512xf32>
    tpu.vector_store %arg6[%c144_160, %c0_161], %243 {strides = array<i32>} : memref<216x512xf32, #tpu.memory_space<vmem>>, vector<8x512xf32>,
    %c456_i32_162 = arith.constant 456 : i32
    %245 = tpu.dynamic_rotate %153 by %c456_i32_162 dim 1 : vector<8x512xf32>, i32 -> vector<8x512xf32>
    %c19_163 = arith.constant 19 : index
    %c0_164 = arith.constant 0 : index
    %246 = vector.load %arg4[%c19_163, %c0_164] : memref<27x512xf32, #tpu.memory_space<vmem>>, vector<1x512xf32>
    %247 = vector.broadcast %246 : vector<1x512xf32> to vector<8x512xf32>
    %248 = arith.mulf %245, %247 : vector<8x512xf32>
    %c152_165 = arith.constant 152 : index
    %c0_166 = arith.constant 0 : index
    %249 = vector.load %arg6[%c152_165, %c0_166] : memref<216x512xf32, #tpu.memory_space<vmem>>, vector<8x512xf32>
    tpu.vector_store %arg6[%c152_165, %c0_166], %248 {strides = array<i32>} : memref<216x512xf32, #tpu.memory_space<vmem>>, vector<8x512xf32>,
    %c455_i32_167 = arith.constant 455 : i32
    %250 = tpu.dynamic_rotate %153 by %c455_i32_167 dim 1 : vector<8x512xf32>, i32 -> vector<8x512xf32>
    %c20_168 = arith.constant 20 : index
    %c0_169 = arith.constant 0 : index
    %251 = vector.load %arg4[%c20_168, %c0_169] : memref<27x512xf32, #tpu.memory_space<vmem>>, vector<1x512xf32>
    %252 = vector.broadcast %251 : vector<1x512xf32> to vector<8x512xf32>
    %253 = arith.mulf %250, %252 : vector<8x512xf32>
    %c160_170 = arith.constant 160 : index
    %c0_171 = arith.constant 0 : index
    %254 = vector.load %arg6[%c160_170, %c0_171] : memref<216x512xf32, #tpu.memory_space<vmem>>, vector<8x512xf32>
    tpu.vector_store %arg6[%c160_170, %c0_171], %253 {strides = array<i32>} : memref<216x512xf32, #tpu.memory_space<vmem>>, vector<8x512xf32>,
    %c449_i32_172 = arith.constant 449 : i32
    %255 = tpu.dynamic_rotate %153 by %c449_i32_172 dim 1 : vector<8x512xf32>, i32 -> vector<8x512xf32>
    %c21_173 = arith.constant 21 : index
    %c0_174 = arith.constant 0 : index
    %256 = vector.load %arg4[%c21_173, %c0_174] : memref<27x512xf32, #tpu.memory_space<vmem>>, vector<1x512xf32>
    %257 = vector.broadcast %256 : vector<1x512xf32> to vector<8x512xf32>
    %258 = arith.mulf %255, %257 : vector<8x512xf32>
    %c168_175 = arith.constant 168 : index
    %c0_176 = arith.constant 0 : index
    %259 = vector.load %arg6[%c168_175, %c0_176] : memref<216x512xf32, #tpu.memory_space<vmem>>, vector<8x512xf32>
    tpu.vector_store %arg6[%c168_175, %c0_176], %258 {strides = array<i32>} : memref<216x512xf32, #tpu.memory_space<vmem>>, vector<8x512xf32>,
    %c448_i32_177 = arith.constant 448 : i32
    %260 = tpu.dynamic_rotate %153 by %c448_i32_177 dim 1 : vector<8x512xf32>, i32 -> vector<8x512xf32>
    %c22_178 = arith.constant 22 : index
    %c0_179 = arith.constant 0 : index
    %261 = vector.load %arg4[%c22_178, %c0_179] : memref<27x512xf32, #tpu.memory_space<vmem>>, vector<1x512xf32>
    %262 = vector.broadcast %261 : vector<1x512xf32> to vector<8x512xf32>
    %263 = arith.mulf %260, %262 : vector<8x512xf32>
    %c176_180 = arith.constant 176 : index
    %c0_181 = arith.constant 0 : index
    %264 = vector.load %arg6[%c176_180, %c0_181] : memref<216x512xf32, #tpu.memory_space<vmem>>, vector<8x512xf32>
    tpu.vector_store %arg6[%c176_180, %c0_181], %263 {strides = array<i32>} : memref<216x512xf32, #tpu.memory_space<vmem>>, vector<8x512xf32>,
    %c447_i32_182 = arith.constant 447 : i32
    %265 = tpu.dynamic_rotate %153 by %c447_i32_182 dim 1 : vector<8x512xf32>, i32 -> vector<8x512xf32>
    %c23_183 = arith.constant 23 : index
    %c0_184 = arith.constant 0 : index
    %266 = vector.load %arg4[%c23_183, %c0_184] : memref<27x512xf32, #tpu.memory_space<vmem>>, vector<1x512xf32>
    %267 = vector.broadcast %266 : vector<1x512xf32> to vector<8x512xf32>
    %268 = arith.mulf %265, %267 : vector<8x512xf32>
    %c184_185 = arith.constant 184 : index
    %c0_186 = arith.constant 0 : index
    %269 = vector.load %arg6[%c184_185, %c0_186] : memref<216x512xf32, #tpu.memory_space<vmem>>, vector<8x512xf32>
    tpu.vector_store %arg6[%c184_185, %c0_186], %268 {strides = array<i32>} : memref<216x512xf32, #tpu.memory_space<vmem>>, vector<8x512xf32>,
    %c441_i32_187 = arith.constant 441 : i32
    %270 = tpu.dynamic_rotate %153 by %c441_i32_187 dim 1 : vector<8x512xf32>, i32 -> vector<8x512xf32>
    %c24_188 = arith.constant 24 : index
    %c0_189 = arith.constant 0 : index
    %271 = vector.load %arg4[%c24_188, %c0_189] : memref<27x512xf32, #tpu.memory_space<vmem>>, vector<1x512xf32>
    %272 = vector.broadcast %271 : vector<1x512xf32> to vector<8x512xf32>
    %273 = arith.mulf %270, %272 : vector<8x512xf32>
    %c192_190 = arith.constant 192 : index
    %c0_191 = arith.constant 0 : index
    %274 = vector.load %arg6[%c192_190, %c0_191] : memref<216x512xf32, #tpu.memory_space<vmem>>, vector<8x512xf32>
    tpu.vector_store %arg6[%c192_190, %c0_191], %273 {strides = array<i32>} : memref<216x512xf32, #tpu.memory_space<vmem>>, vector<8x512xf32>,
    %c440_i32_192 = arith.constant 440 : i32
    %275 = tpu.dynamic_rotate %153 by %c440_i32_192 dim 1 : vector<8x512xf32>, i32 -> vector<8x512xf32>
    %c25_193 = arith.constant 25 : index
    %c0_194 = arith.constant 0 : index
    %276 = vector.load %arg4[%c25_193, %c0_194] : memref<27x512xf32, #tpu.memory_space<vmem>>, vector<1x512xf32>
    %277 = vector.broadcast %276 : vector<1x512xf32> to vector<8x512xf32>
    %278 = arith.mulf %275, %277 : vector<8x512xf32>
    %c200_195 = arith.constant 200 : index
    %c0_196 = arith.constant 0 : index
    %279 = vector.load %arg6[%c200_195, %c0_196] : memref<216x512xf32, #tpu.memory_space<vmem>>, vector<8x512xf32>
    tpu.vector_store %arg6[%c200_195, %c0_196], %278 {strides = array<i32>} : memref<216x512xf32, #tpu.memory_space<vmem>>, vector<8x512xf32>,
    %c439_i32_197 = arith.constant 439 : i32
    %280 = tpu.dynamic_rotate %153 by %c439_i32_197 dim 1 : vector<8x512xf32>, i32 -> vector<8x512xf32>
    %c26_198 = arith.constant 26 : index
    %c0_199 = arith.constant 0 : index
    %281 = vector.load %arg4[%c26_198, %c0_199] : memref<27x512xf32, #tpu.memory_space<vmem>>, vector<1x512xf32>
    %282 = vector.broadcast %281 : vector<1x512xf32> to vector<8x512xf32>
    %283 = arith.mulf %280, %282 : vector<8x512xf32>
    %c208_200 = arith.constant 208 : index
    %c0_201 = arith.constant 0 : index
    %284 = vector.load %arg6[%c208_200, %c0_201] : memref<216x512xf32, #tpu.memory_space<vmem>>, vector<8x512xf32>
    tpu.vector_store %arg6[%c208_200, %c0_201], %283 {strides = array<i32>} : memref<216x512xf32, #tpu.memory_space<vmem>>, vector<8x512xf32>,
    %c0_202 = arith.constant 0 : index
    %c0_203 = arith.constant 0 : index
    %285 = vector.load %arg3[%c0_202, %c0_203] : memref<4x216xf32, #tpu.memory_space<vmem>>, vector<4x216xf32>
    %c0_204 = arith.constant 0 : index
    %c0_205 = arith.constant 0 : index
    %286 = vector.load %arg6[%c0_204, %c0_205] : memref<216x512xf32, #tpu.memory_space<vmem>>, vector<216x512xf32>
    %cst_206 = arith.constant dense<0.000000e+00> : vector<4x512xf32>
    %287 = tpu.matmul %285, %286, %cst_206 {dimension_numbers = #tpu.dot_dimension_numbers<[1], [0], [0], [1], [0, 0, 1, 1], [], []>} : vector<4x216xf32>, vector<216x512xf32>, vector<4x512xf32> -> vector<4x512xf32>
    %cst_207 = arith.constant dense<0.000000e+00> : vector<4xf32>
    %288 = vector.multi_reduction <add>, %287, %cst_207 [1] : vector<4x512xf32> to vector<4xf32>
    %289 = vector.shape_cast %288 : vector<4xf32> to vector<4x1xf32>
    %cst_208 = arith.constant 0.001953125 : f32
    %290 = vector.broadcast %cst_208 : f32 to vector<4x1xf32>
    %291 = arith.mulf %289, %290 : vector<4x1xf32>
    %292 = vector.broadcast %291 : vector<4x1xf32> to vector<4x512xf32>
    %293 = arith.subf %287, %292 : vector<4x512xf32>
    %294 = arith.mulf %293, %293 : vector<4x512xf32>
    %cst_209 = arith.constant dense<0.000000e+00> : vector<4xf32>
    %295 = vector.multi_reduction <add>, %294, %cst_209 [1] : vector<4x512xf32> to vector<4xf32>
    %296 = vector.shape_cast %295 : vector<4xf32> to vector<4x1xf32>
    %cst_210 = arith.constant 0.001953125 : f32
    %297 = vector.broadcast %cst_210 : f32 to vector<4x1xf32>
    %298 = arith.mulf %296, %297 : vector<4x1xf32>
    %cst_211 = arith.constant 9.99999974E-6 : f32
    %299 = vector.broadcast %cst_211 : f32 to vector<4x1xf32>
    %300 = arith.addf %298, %299 : vector<4x1xf32>
    %301 = math.rsqrt %300 : vector<4x1xf32>
    %302 = vector.broadcast %301 : vector<4x1xf32> to vector<4x512xf32>
    %303 = arith.mulf %293, %302 : vector<4x512xf32>
    %cst_212 = arith.constant 0.000000e+00 : f32
    %304 = vector.broadcast %cst_212 : f32 to vector<4x512xf32>
    %305 = arith.maximumf %303, %304 : vector<4x512xf32>
    %c0_213 = arith.constant 0 : index
    %c0_214 = arith.constant 0 : index
    %c0_215 = arith.constant 0 : index
    %306 = vector.load %arg5[%c0_213, %c0_214, %c0_215] : memref<1x4x512xf32, #tpu.memory_space<vmem>>, vector<1x4x512xf32>
    %307 = vector.shape_cast %306 : vector<1x4x512xf32> to vector<4x512xf32>
    %308 = vector.shape_cast %305 : vector<4x512xf32> to vector<1x4x512xf32>
    tpu.vector_store %arg5[%c0_213, %c0_214, %c0_215], %308 {strides = array<i32>} : memref<1x4x512xf32, #tpu.memory_space<vmem>>, vector<1x4x512xf32>,
    return
  }
  func.func @transform_0(%arg0: i32) -> (i32, i32, i32) {
    %c0_i32 = arith.constant 0 : i32
    %c0_i32_0 = arith.constant 0 : i32
    %c0_i32_1 = arith.constant 0 : i32
    return %arg0, %c0_i32, %c0_i32_0 : i32, i32, i32
  }
  func.func @transform_1(%arg0: i32) -> (i32, i32) {
    %c0_i32 = arith.constant 0 : i32
    %c0_i32_0 = arith.constant 0 : i32
    %c0_i32_1 = arith.constant 0 : i32
    return %c0_i32, %c0_i32_0 : i32, i32
  }
  func.func @transform_2(%arg0: i32) -> (i32, i32) {
    %c0_i32 = arith.constant 0 : i32
    %c0_i32_0 = arith.constant 0 : i32
    %c0_i32_1 = arith.constant 0 : i32
    return %c0_i32, %c0_i32_0 : i32, i32
  }
  func.func @transform_3(%arg0: i32) -> (i32, i32) {
    %c0_i32 = arith.constant 0 : i32
    %c0_i32_0 = arith.constant 0 : i32
    %c0_i32_1 = arith.constant 0 : i32
    return %c0_i32, %c0_i32_0 : i32, i32
  }
  func.func @transform_4(%arg0: i32) -> (i32, i32, i32) {
    %c0_i32 = arith.constant 0 : i32
    %c0_i32_0 = arith.constant 0 : i32
    %c0_i32_1 = arith.constant 0 : i32
    return %arg0, %c0_i32, %c0_i32_0 : i32, i32, i32
  }
}

</mosaic_0001>

<llo_original>
// kernel: tpu_custom_call.1
$region0: #{tpu_custom_call.1}
  #allocation0 [shape = 'u32[]', space=smem, size = 0x4, offset = 0x4, fixed_abs, tag = 'smem constant byte address 0x4 - core index']
  #allocation1 [shape = 'u32[72,128]{1,0:T(1,128)}', space=vmem, size = 0x9000, scoped, tag = 'internal scratch']
  #allocation2 [shape = 'f32[216,512]{1,0:T(8,128)}', space=vmem, size = 0x6c000, scoped, tag = 'scratch operand']
  %s0 = inlined_call_operand.hbm [shape: f32[2,8,512], index: 0, kind: input, shape index: {}]
  %s1 = inlined_call_operand.hbm [shape: f32[8,216], index: 1, kind: input, shape index: {}]
  %s2 = inlined_call_operand.hbm [shape: f32[4,216], index: 2, kind: input, shape index: {}]
  %s3 = inlined_call_operand.hbm [shape: f32[27,512], index: 3, kind: input, shape index: {}]
  %s4 = inlined_call_operand.hbm [shape: f32[2,4,512], index: 4, kind: output, shape index: {}]
  %s5 = sld [smem:[#allocation0]]
  $region65: #{tpu_custom_call.1} parent=0
    _
  %s7 = ssub.s32 1, %s5
  %s8 = scalar_select 0, %s7, %s5
  $region1: #{tpu_custom_call.1} parent=0
    #allocation3 [shape = 'u8[32768]{0}', space=vmem, size = 0x8000, scoped, tag = 'input window, operand 0']
    #allocation4 [shape = 's32[2]{0}', space=sflag, size = 0x8, scoped, tag = 'scoped memory for tpu_custom_call.1']
    #allocation5 [shape = 's32[2]{0}', space=sflag, size = 0x8, scoped, tag = 'scoped memory for tpu_custom_call.1']
    #allocation6 [shape = 'u8[8192]{0}', space=vmem, size = 0x2000, scoped, tag = 'input window, operand 1, single buffered']
    #allocation7 [shape = 's32[1]{0}', space=sflag, size = 0x4, scoped, tag = 'scoped memory for tpu_custom_call.1']
    #allocation8 [shape = 'u8[4096]{0}', space=vmem, size = 0x1000, scoped, tag = 'input window, operand 2, single buffered']
    #allocation9 [shape = 'u8[65536]{0}', space=vmem, size = 0x10000, scoped, tag = 'input window, operand 3, single buffered']
    #allocation10 [shape = 's32[1]{0}', space=sflag, size = 0x4, scoped, tag = 'scoped memory for tpu_custom_call.1']
    #allocation11 [shape = 'u8[16384]{0}', space=vmem, size = 0x4000, scoped, tag = 'output window, operand 0']
    %9 = vsyncpa [#allocation4], 0
    %s10 = scalar_lea.sflag [#allocation4], 1
    %11 = vsyncpa %s10, 0
    %12 = vsyncpa [#allocation7], 0
    %13 = vsyncpa [#allocation10], 0
    %14 = vsyncpa [#allocation5], 0
    %s15 = scalar_lea.sflag [#allocation5], 1
    %16 = vsyncpa %s15, 0
    loop: start=0, step=1, limit=4
    $region2: #{tpu_custom_call.1} parent=1 // loop_pre_header
      _
    $region3: #{tpu_custom_call.1} parent=1 // loop_header
      %s18 = sphi 0, %s22
      %p19 = scmp.ge.s32.totalorder %s18, 4
      %s28 = sphi 0, %s30
      %s31 = sphi 0, %s28
      %s32 = sphi 0, %s31
      %s48 = sphi 0, %s32
      %s52 = sphi 0, %s52
      %s54 = sphi 0, %s52
      %s55 = sphi 0, %s54
      %s69 = sphi 0, %s55
      %s73 = sphi 0, %s73
      %s75 = sphi 0, %s73
      %s76 = sphi 0, %s75
      %s90 = sphi 0, %s76
      %s94 = sphi 0, %s94
      %s96 = sphi 0, %s94
      %s97 = sphi 0, %s96
      %s111 = sphi 0, %s97
      %s117 = sphi 0, %s119
      %s120 = sphi 0, %s117
      %s121 = sphi 0, %s120
      %s137 = sphi 0, %s121
    $region4: #{tpu_custom_call.1} parent=1 // loop_header_branch
      %21 = sbr.rel (%p19) target = $region8
    $region5: #{tpu_custom_call.1} parent=1 // loop_body
      %s23 = ssub.s32 %s18, 1
      %s24 = ssub.s32 %s18, 2
      %s25 = sadd.s32 %s18, 1
      %s26 = ssub.s32 %s18, %s25
      %p27 = scmp.eq.s32.totalorder %s26, 0
      %s29 = sadd.s32 %s28, 1
      %s30 = scalar_select %p27, %s28, %s29
      %p33 = pneg %p27
      %p34 = scmp.eq.s32.totalorder %s18, 1
      %p35 = por %p33, %p34
      %p36 = scmp.ne.s32.totalorder %s28, %s31
      %p37 = scmp.eq.s32.totalorder %s18, 0
      %p38 = por %p36, %p37
      %p39 = scmp.ne.s32.totalorder %s28, %s31
      %p40 = scmp.eq.s32.totalorder %s23, 1
      %p41 = por %p39, %p40
      %p42 = scmp.ne.s32.totalorder %s31, %s32
      %p43 = scmp.eq.s32.totalorder %s23, 0
      %p44 = por %p42, %p43
      %p45 = scmp.ne.s32.totalorder %s31, %s32
      %p46 = scmp.eq.s32.totalorder %s24, 1
      %p47 = por %p45, %p46
      %p49 = scmp.ne.s32.totalorder %s32, %s48
      %p50 = scmp.eq.s32.totalorder %s24, 0
      %p51 = por %p49, %p50
      %s53 = sadd.s32 %s52, 1
      %p56 = scmp.eq.s32.totalorder %s18, 1
      %p57 = scmp.ne.s32.totalorder %s52, %s54
      %p58 = scmp.eq.s32.totalorder %s18, 0
      %p59 = por %p57, %p58
      %p60 = scmp.ne.s32.totalorder %s52, %s54
      %p61 = scmp.eq.s32.totalorder %s23, 1
      %p62 = por %p60, %p61
      %p63 = scmp.ne.s32.totalorder %s54, %s55
      %p64 = scmp.eq.s32.totalorder %s23, 0
      %p65 = por %p63, %p64
      %p66 = scmp.ne.s32.totalorder %s54, %s55
      %p67 = scmp.eq.s32.totalorder %s24, 1
      %p68 = por %p66, %p67
      %p70 = scmp.ne.s32.totalorder %s55, %s69
      %p71 = scmp.eq.s32.totalorder %s24, 0
      %p72 = por %p70, %p71
      %s74 = sadd.s32 %s73, 1
      %p77 = scmp.eq.s32.totalorder %s18, 1
      %p78 = scmp.ne.s32.totalorder %s73, %s75
      %p79 = scmp.eq.s32.totalorder %s18, 0
      %p80 = por %p78, %p79
      %p81 = scmp.ne.s32.totalorder %s73, %s75
      %p82 = scmp.eq.s32.totalorder %s23, 1
      %p83 = por %p81, %p82
      %p84 = scmp.ne.s32.totalorder %s75, %s76
      %p85 = scmp.eq.s32.totalorder %s23, 0
      %p86 = por %p84, %p85
      %p87 = scmp.ne.s32.totalorder %s75, %s76
      %p88 = scmp.eq.s32.totalorder %s24, 1
      %p89 = por %p87, %p88
      %p91 = scmp.ne.s32.totalorder %s76, %s90
      %p92 = scmp.eq.s32.totalorder %s24, 0
      %p93 = por %p91, %p92
      %s95 = sadd.s32 %s94, 1
      %p98 = scmp.eq.s32.totalorder %s18, 1
      %p99 = scmp.ne.s32.totalorder %s94, %s96
      %p100 = scmp.eq.s32.totalorder %s18, 0
      %p101 = por %p99, %p100
      %p102 = scmp.ne.s32.totalorder %s94, %s96
      %p103 = scmp.eq.s32.totalorder %s23, 1
      %p104 = por %p102, %p103
      %p105 = scmp.ne.s32.totalorder %s96, %s97
      %p106 = scmp.eq.s32.totalorder %s23, 0
      %p107 = por %p105, %p106
      %p108 = scmp.ne.s32.totalorder %s96, %s97
      %p109 = scmp.eq.s32.totalorder %s24, 1
      %p110 = por %p108, %p109
      %p112 = scmp.ne.s32.totalorder %s97, %s111
      %p113 = scmp.eq.s32.totalorder %s24, 0
      %p114 = por %p112, %p113
      %s115 = ssub.s32 %s18, %s25
      %p116 = scmp.eq.s32.totalorder %s115, 0
      %s118 = sadd.s32 %s117, 1
      %s119 = scalar_select %p116, %s117, %s118
      %p122 = pneg %p116
      %p123 = scmp.eq.s32.totalorder %s18, 1
      %p124 = por %p122, %p123
      %p125 = scmp.ne.s32.totalorder %s117, %s120
      %p126 = scmp.eq.s32.totalorder %s18, 0
      %p127 = por %p125, %p126
      %p128 = scmp.ne.s32.totalorder %s117, %s120
      %p129 = scmp.eq.s32.totalorder %s23, 1
      %p130 = por %p128, %p129
      %p131 = scmp.ne.s32.totalorder %s120, %s121
      %p132 = scmp.eq.s32.totalorder %s23, 0
      %p133 = por %p131, %p132
      %p134 = scmp.ne.s32.totalorder %s120, %s121
      %p135 = scmp.eq.s32.totalorder %s24, 1
      %p136 = por %p134, %p135
      %p138 = scmp.ne.s32.totalorder %s121, %s137
      %p139 = scmp.eq.s32.totalorder %s24, 0
      %p140 = por %p138, %p139
      %p141 = scmp.le.s32.totalorder 1, %s18
      %p142 = scmp.lt.s32.totalorder %s18, 3
      %p143 = pnand %p141, %p142
      %p144 = pneg %p143
      // Predicated region
      $region9: #{tpu_custom_call.1} parent=5 // pred_check
        _
      $region10: #{tpu_custom_call.1} parent=5 // pred_check_branch
        %146 = sbr.rel (%p143) target = $region12
      $region11: #{tpu_custom_call.1} parent=5 // pred_region
        %s147 = ssub.s32 %s18, 1
        // Predicated region
        $region13: #{tpu_custom_call.1} parent=11 // pred_check
          %p148 = pneg %p65
        $region14: #{tpu_custom_call.1} parent=11 // pred_check_branch
          %150 = sbr.rel (%p148) target = $region16
        $region15: #{tpu_custom_call.1} parent=11 // pred_region
          %152 = vsyncadd [#allocation7], 0
          %s154 = sshll.u32 %s1, 4
          %s155 = int_to_ptr.hbm [resolvable:$true] %s154
          %s156 = sshll.u32 [#allocation6], 4
          %s157 = int_to_ptr.vmem [resolvable:$true] %s156
          %159 = dma.hbm_to_vmem [thread:$0]  %s155, 256, %s157, [#allocation7]
        $region16: #{tpu_custom_call.1} parent=11 // pred_fallthru
          _
        // Predicated region
        $region17: #{tpu_custom_call.1} parent=11 // pred_check
          %p160 = pneg %p86
        $region18: #{tpu_custom_call.1} parent=11 // pred_check_branch
          %162 = sbr.rel (%p160) target = $region20
        $region19: #{tpu_custom_call.1} parent=11 // pred_region
          %164 = vsyncadd [#allocation7], 0
          %s166 = sshll.u32 %s2, 4
          %s167 = int_to_ptr.hbm [resolvable:$true] %s166
          %s168 = sshll.u32 [#allocation8], 4
          %s169 = int_to_ptr.vmem [resolvable:$true] %s168
          %171 = dma.hbm_to_vmem [thread:$0]  %s167, 128, %s169, [#allocation7]
        $region20: #{tpu_custom_call.1} parent=11 // pred_fallthru
          _
        // Predicated region
        $region21: #{tpu_custom_call.1} parent=11 // pred_check
          %p172 = pneg %p107
        $region22: #{tpu_custom_call.1} parent=11 // pred_check_branch
          %174 = sbr.rel (%p172) target = $region24
        $region23: #{tpu_custom_call.1} parent=11 // pred_region
          %176 = vsyncadd [#allocation10], 0
          %s177 = sshll.u32 %s3, 4
          %s178 = int_to_ptr.hbm [resolvable:$true] %s177
          %s179 = sshll.u32 [#allocation9], 4
          %s180 = int_to_ptr.vmem [resolvable:$true] %s179
          %185 = dma.hbm_to_vmem [thread:$0]  %s178, 2048, %s180, [#allocation10], 512, 512, 32
        $region24: #{tpu_custom_call.1} parent=11 // pred_fallthru
          _
      $region12: #{tpu_custom_call.1} parent=5 // pred_fallthru
        _
      %p186 = scmp.lt.s32.totalorder %s18, 2
      // Predicated region
      $region25: #{tpu_custom_call.1} parent=5 // pred_check
        %p187 = pneg %p186
      $region26: #{tpu_custom_call.1} parent=5 // pred_check_branch
        %189 = sbr.rel (%p187) target = $region28
      $region27: #{tpu_custom_call.1} parent=5 // pred_region
        // Predicated region
        $region29: #{tpu_custom_call.1} parent=27 // pred_check
          %p190 = pneg %p38
        $region30: #{tpu_custom_call.1} parent=27 // pred_check_branch
          %192 = sbr.rel (%p190) target = $region32
        $region31: #{tpu_custom_call.1} parent=27 // pred_region
          %s193 = sand.u32 %s28, 1
          %s194 = scalar_lea.sflag [#allocation4], %s193
          %s195 = sand.u32 %s28, 1
          %s196 = smul.addr %s195, 32
          %s197 = scalar_lea.vmem [#allocation3], %s196
          %199 = vsyncadd %s194, 0
          %s200 = smul.addr %s18, 4
          %s201 = smul.addr %s200, 8
          %s202 = scalar_lea.hbm %s0, %s201
          %s204 = sshll.u32 %s202, 4
          %s205 = int_to_ptr.hbm [resolvable:$true] %s204
          %s206 = sshll.u32 %s197, 4
          %s207 = int_to_ptr.vmem [resolvable:$true] %s206
          %209 = dma.hbm_to_vmem [thread:$0]  %s205, 512, %s207, %s194
        $region32: #{tpu_custom_call.1} parent=27 // pred_fallthru
          _
      $region28: #{tpu_custom_call.1} parent=5 // pred_fallthru
        _
      %p210 = scmp.le.s32.totalorder 1, %s18
      %p211 = scmp.lt.s32.totalorder %s18, 3
      %p212 = pnand %p210, %p211
      %p213 = pneg %p212
      // Predicated region
      $region33: #{tpu_custom_call.1} parent=5 // pred_check
        _
      $region34: #{tpu_custom_call.1} parent=5 // pred_check_branch
        %215 = sbr.rel (%p212) target = $region36
      $region35: #{tpu_custom_call.1} parent=5 // pred_region
        %s216 = ssub.s32 %s18, 1
        %s217 = sand.u32 %s31, 1
        %s218 = scalar_lea.sflag [#allocation4], %s217
        %s219 = sand.u32 %s31, 1
        %s220 = smul.addr %s219, 32
        %s221 = scalar_lea.vmem [#allocation3], %s220
        // Predicated region
        $region37: #{tpu_custom_call.1} parent=35 // pred_check
          %p222 = pneg %p44
        $region38: #{tpu_custom_call.1} parent=35 // pred_check_branch
          %224 = sbr.rel (%p222) target = $region40
        $region39: #{tpu_custom_call.1} parent=35 // pred_region
          %226 = dma.done %s218, 512
        $region40: #{tpu_custom_call.1} parent=35 // pred_fallthru
          _
        // Predicated region
        $region41: #{tpu_custom_call.1} parent=35 // pred_check
          %p227 = pneg %p65
        $region42: #{tpu_custom_call.1} parent=35 // pred_check_branch
          %229 = sbr.rel (%p227) target = $region44
        $region43: #{tpu_custom_call.1} parent=35 // pred_region
          %231 = dma.done [#allocation7], 256
        $region44: #{tpu_custom_call.1} parent=35 // pred_fallthru
          _
        // Predicated region
        $region45: #{tpu_custom_call.1} parent=35 // pred_check
          %p232 = pneg %p86
        $region46: #{tpu_custom_call.1} parent=35 // pred_check_branch
          %234 = sbr.rel (%p232) target = $region48
        $region47: #{tpu_custom_call.1} parent=35 // pred_region
          %236 = dma.done [#allocation7], 128
        $region48: #{tpu_custom_call.1} parent=35 // pred_fallthru
          _
        // Predicated region
        $region49: #{tpu_custom_call.1} parent=35 // pred_check
          %p237 = pneg %p107
        $region50: #{tpu_custom_call.1} parent=35 // pred_check_branch
          %239 = sbr.rel (%p237) target = $region52
        $region51: #{tpu_custom_call.1} parent=35 // pred_region
          %241 = dma.done [#allocation10], 2048
        $region52: #{tpu_custom_call.1} parent=35 // pred_fallthru
          _
        %s242 = sand.u32 %s31, 1
        %s243 = scalar_lea.sflag [#allocation4], %s242
        %s244 = sand.u32 %s31, 1
        %s245 = smul.addr %s244, 32
        %s246 = scalar_lea.vmem [#allocation3], %s245
        %p247 = pneg %p44
        %p248 = pneg %p41
        %p249 = pneg %p65
        %p250 = pneg %p62
        %p251 = pneg %p86
        %p252 = pneg %p83
        %p253 = pneg %p107
        %p254 = pneg %p104
        %p255 = pneg %p133
        %p256 = pneg %p130
        %s257 = sand.u32 %s120, 1
        %s258 = scalar_lea.sflag [#allocation5], %s257
        %s259 = sand.u32 %s120, 1
        %s260 = smul.addr %s259, 16
        %s261 = scalar_lea.vmem [#allocation11], %s260
        %v262 = vld [vmem:[%s221] sm:$0xff]
        %v263 = vld [vmem:[%s221 + $0x8] sm:$0xff]
        %v264 = vld [vmem:[%s221 + $0x10] sm:$0xff]
        %v265 = vld [vmem:[%s221 + $0x18] sm:$0xff]
        %266 = vrot.lane.b32.xlu0 %v262, 73
        %v267 = vpop.permute.xlu0 %266
        %268 = vrot.lane.b32.xlu0 %v263, 73
        %v269 = vpop.permute.xlu0 %268
        %270 = vrot.lane.b32.xlu0 %v264, 73
        %v271 = vpop.permute.xlu0 %270
        %272 = vrot.lane.b32.xlu0 %v265, 73
        %v273 = vpop.permute.xlu0 %272
        %v274 = vlaneseq
        %v275 = vand.u32 %v274, 127
        %vm276 = vcmp.lt.s32.totalorder %v275, 73
        %v277 = vsel %vm276, %v271, %v273
        %v278 = vsel %vm276, %v269, %v271
        %v279 = vsel %vm276, %v267, %v269
        %v280 = vsel %vm276, %v273, %v267
        %v281 = vld [vmem:[#allocation9] ss:$8 sm:$0xf]
        %v283 = vperm.slane %v281, 0
        %v284 = vperm.slane %v281, 1
        %v285 = vperm.slane %v281, 2
        %v286 = vperm.slane %v281, 3
        %v291 = vmul.f32 %v280, %v283
        %v292 = vmul.f32 %v279, %v284
        %v293 = vmul.f32 %v278, %v285
        %v294 = vmul.f32 %v277, %v286
        %295 = vst [vmem:[#allocation2] sm:$0xff] %v291
        %296 = vst [vmem:[#allocation2 + $0x8] sm:$0xff] %v292
        %297 = vst [vmem:[#allocation2 + $0x10] sm:$0xff] %v293
        %298 = vst [vmem:[#allocation2 + $0x18] sm:$0xff] %v294
        %299 = vrot.lane.b32.xlu0 %v262, 72
        %v300 = vpop.permute.xlu0 %299
        %301 = vrot.lane.b32.xlu0 %v263, 72
        %v302 = vpop.permute.xlu0 %301
        %303 = vrot.lane.b32.xlu0 %v264, 72
        %v304 = vpop.permute.xlu0 %303
        %305 = vrot.lane.b32.xlu0 %v265, 72
        %v306 = vpop.permute.xlu0 %305
        %vm307 = vcmp.lt.s32.totalorder %v275, 72
        %v308 = vsel %vm307, %v304, %v306
        %v309 = vsel %vm307, %v302, %v304
        %v310 = vsel %vm307, %v300, %v302
        %v311 = vsel %vm307, %v306, %v300
        %s312 = scalar_lea.vmem [#allocation9], 1
        %v313 = vld [vmem:[%s312] ss:$8 sm:$0xf]
        %v315 = vperm.slane %v313, 0
        %v316 = vperm.slane %v313, 1
        %v317 = vperm.slane %v313, 2
        %v318 = vperm.slane %v313, 3
        %v323 = vmul.f32 %v311, %v315
        %v324 = vmul.f32 %v310, %v316
        %v325 = vmul.f32 %v309, %v317
        %v326 = vmul.f32 %v308, %v318
        %327 = vst [vmem:[#allocation2 + $0x20] sm:$0xff] %v323
        %328 = vst [vmem:[#allocation2 + $0x28] sm:$0xff] %v324
        %329 = vst [vmem:[#allocation2 + $0x30] sm:$0xff] %v325
        %330 = vst [vmem:[#allocation2 + $0x38] sm:$0xff] %v326
        %331 = vrot.lane.b32.xlu0 %v262, 71
        %v332 = vpop.permute.xlu0 %331
        %333 = vrot.lane.b32.xlu0 %v263, 71
        %v334 = vpop.permute.xlu0 %333
        %335 = vrot.lane.b32.xlu0 %v264, 71
        %v336 = vpop.permute.xlu0 %335
        %337 = vrot.lane.b32.xlu0 %v265, 71
        %v338 = vpop.permute.xlu0 %337
        %vm339 = vcmp.lt.s32.totalorder %v275, 71
        %v340 = vsel %vm339, %v336, %v338
        %v341 = vsel %vm339, %v334, %v336
        %v342 = vsel %vm339, %v332, %v334
        %v343 = vsel %vm339, %v338, %v332
        %s344 = scalar_lea.vmem [#allocation9], 2
        %v345 = vld [vmem:[%s344] ss:$8 sm:$0xf]
        %v347 = vperm.slane %v345, 0
        %v348 = vperm.slane %v345, 1
        %v349 = vperm.slane %v345, 2
        %v350 = vperm.slane %v345, 3
        %v355 = vmul.f32 %v343, %v347
        %v356 = vmul.f32 %v342, %v348
        %v357 = vmul.f32 %v341, %v349
        %v358 = vmul.f32 %v340, %v350
        %359 = vst [vmem:[#allocation2 + $0x40] sm:$0xff] %v355
        %360 = vst [vmem:[#allocation2 + $0x48] sm:$0xff] %v356
        %361 = vst [vmem:[#allocation2 + $0x50] sm:$0xff] %v357
        %362 = vst [vmem:[#allocation2 + $0x58] sm:$0xff] %v358
        %363 = vrot.lane.b32.xlu0 %v262, 65
        %v364 = vpop.permute.xlu0 %363
        %365 = vrot.lane.b32.xlu0 %v263, 65
        %v366 = vpop.permute.xlu0 %365
        %367 = vrot.lane.b32.xlu0 %v264, 65
        %v368 = vpop.permute.xlu0 %367
        %369 = vrot.lane.b32.xlu0 %v265, 65
        %v370 = vpop.permute.xlu0 %369
        %vm371 = vcmp.lt.s32.totalorder %v275, 65
        %v372 = vsel %vm371, %v368, %v370
        %v373 = vsel %vm371, %v366, %v368
        %v374 = vsel %vm371, %v364, %v366
        %v375 = vsel %vm371, %v370, %v364
        %s376 = scalar_lea.vmem [#allocation9], 3
        %v377 = vld [vmem:[%s376] ss:$8 sm:$0xf]
        %v379 = vperm.slane %v377, 0
        %v380 = vperm.slane %v377, 1
        %v381 = vperm.slane %v377, 2
        %v382 = vperm.slane %v377, 3
        %v387 = vmul.f32 %v375, %v379
        %v388 = vmul.f32 %v374, %v380
        %v389 = vmul.f32 %v373, %v381
        %v390 = vmul.f32 %v372, %v382
        %391 = vst [vmem:[#allocation2 + $0x60] sm:$0xff] %v387
        %392 = vst [vmem:[#allocation2 + $0x68] sm:$0xff] %v388
        %393 = vst [vmem:[#allocation2 + $0x70] sm:$0xff] %v389
        %394 = vst [vmem:[#allocation2 + $0x78] sm:$0xff] %v390
        %395 = vrot.lane.b32.xlu0 %v262, 64
        %v396 = vpop.permute.xlu0 %395
        %397 = vrot.lane.b32.xlu0 %v263, 64
        %v398 = vpop.permute.xlu0 %397
        %399 = vrot.lane.b32.xlu0 %v264, 64
        %v400 = vpop.permute.xlu0 %399
        %401 = vrot.lane.b32.xlu0 %v265, 64
        %v402 = vpop.permute.xlu0 %401
        %vm403 = vcmp.lt.s32.totalorder %v275, 64
        %v404 = vsel %vm403, %v400, %v402
        %v405 = vsel %vm403, %v398, %v400
        %v406 = vsel %vm403, %v396, %v398
        %v407 = vsel %vm403, %v402, %v396
        %s408 = scalar_lea.vmem [#allocation9], 4
        %v409 = vld [vmem:[%s408] ss:$8 sm:$0xf]
        %v411 = vperm.slane %v409, 0
        %v412 = vperm.slane %v409, 1
        %v413 = vperm.slane %v409, 2
        %v414 = vperm.slane %v409, 3
        %v419 = vmul.f32 %v407, %v411
        %v420 = vmul.f32 %v406, %v412
        %v421 = vmul.f32 %v405, %v413
        %v422 = vmul.f32 %v404, %v414
        %423 = vst [vmem:[#allocation2 + $0x80] sm:$0xff] %v419
        %424 = vst [vmem:[#allocation2 + $0x88] sm:$0xff] %v420
        %425 = vst [vmem:[#allocation2 + $0x90] sm:$0xff] %v421
        %426 = vst [vmem:[#allocation2 + $0x98] sm:$0xff] %v422
        %427 = vrot.lane.b32.xlu0 %v262, 63
        %v428 = vpop.permute.xlu0 %427
        %429 = vrot.lane.b32.xlu0 %v263, 63
        %v430 = vpop.permute.xlu0 %429
        %431 = vrot.lane.b32.xlu0 %v264, 63
        %v432 = vpop.permute.xlu0 %431
        %433 = vrot.lane.b32.xlu0 %v265, 63
        %v434 = vpop.permute.xlu0 %433
        %vm435 = vcmp.lt.s32.totalorder %v275, 63
        %v436 = vsel %vm435, %v432, %v434
        %v437 = vsel %vm435, %v430, %v432
        %v438 = vsel %vm435, %v428, %v430
        %v439 = vsel %vm435, %v434, %v428
        %s440 = scalar_lea.vmem [#allocation9], 5
        %v441 = vld [vmem:[%s440] ss:$8 sm:$0xf]
        %v443 = vperm.slane %v441, 0
        %v444 = vperm.slane %v441, 1
        %v445 = vperm.slane %v441, 2
        %v446 = vperm.slane %v441, 3
        %v451 = vmul.f32 %v439, %v443
        %v452 = vmul.f32 %v438, %v444
        %v453 = vmul.f32 %v437, %v445
        %v454 = vmul.f32 %v436, %v446
        %455 = vst [vmem:[#allocation2 + $0xa0] sm:$0xff] %v451
        %456 = vst [vmem:[#allocation2 + $0xa8] sm:$0xff] %v452
        %457 = vst [vmem:[#allocation2 + $0xb0] sm:$0xff] %v453
        %458 = vst [vmem:[#allocation2 + $0xb8] sm:$0xff] %v454
        %459 = vrot.lane.b32.xlu0 %v262, 57
        %v460 = vpop.permute.xlu0 %459
        %461 = vrot.lane.b32.xlu0 %v263, 57
        %v462 = vpop.permute.xlu0 %461
        %463 = vrot.lane.b32.xlu0 %v264, 57
        %v464 = vpop.permute.xlu0 %463
        %465 = vrot.lane.b32.xlu0 %v265, 57
        %v466 = vpop.permute.xlu0 %465
        %vm467 = vcmp.lt.s32.totalorder %v275, 57
        %v468 = vsel %vm467, %v464, %v466
        %v469 = vsel %vm467, %v462, %v464
        %v470 = vsel %vm467, %v460, %v462
        %v471 = vsel %vm467, %v466, %v460
        %s472 = scalar_lea.vmem [#allocation9], 6
        %v473 = vld [vmem:[%s472] ss:$8 sm:$0xf]
        %v475 = vperm.slane %v473, 0
        %v476 = vperm.slane %v473, 1
        %v477 = vperm.slane %v473, 2
        %v478 = vperm.slane %v473, 3
        %v483 = vmul.f32 %v471, %v475
        %v484 = vmul.f32 %v470, %v476
        %v485 = vmul.f32 %v469, %v477
        %v486 = vmul.f32 %v468, %v478
        %487 = vst [vmem:[#allocation2 + $0xc0] sm:$0xff] %v483
        %488 = vst [vmem:[#allocation2 + $0xc8] sm:$0xff] %v484
        %489 = vst [vmem:[#allocation2 + $0xd0] sm:$0xff] %v485
        %490 = vst [vmem:[#allocation2 + $0xd8] sm:$0xff] %v486
        %491 = vrot.lane.b32.xlu0 %v262, 56
        %v492 = vpop.permute.xlu0 %491
        %493 = vrot.lane.b32.xlu0 %v263, 56
        %v494 = vpop.permute.xlu0 %493
        %495 = vrot.lane.b32.xlu0 %v264, 56
        %v496 = vpop.permute.xlu0 %495
        %497 = vrot.lane.b32.xlu0 %v265, 56
        %v498 = vpop.permute.xlu0 %497
        %vm499 = vcmp.lt.s32.totalorder %v275, 56
        %v500 = vsel %vm499, %v496, %v498
        %v501 = vsel %vm499, %v494, %v496
        %v502 = vsel %vm499, %v492, %v494
        %v503 = vsel %vm499, %v498, %v492
        %s504 = scalar_lea.vmem [#allocation9], 7
        %v505 = vld [vmem:[%s504] ss:$8 sm:$0xf]
        %v507 = vperm.slane %v505, 0
        %v508 = vperm.slane %v505, 1
        %v509 = vperm.slane %v505, 2
        %v510 = vperm.slane %v505, 3
        %v515 = vmul.f32 %v503, %v507
        %v516 = vmul.f32 %v502, %v508
        %v517 = vmul.f32 %v501, %v509
        %v518 = vmul.f32 %v500, %v510
        %519 = vst [vmem:[#allocation2 + $0xe0] sm:$0xff] %v515
        %520 = vst [vmem:[#allocation2 + $0xe8] sm:$0xff] %v516
        %521 = vst [vmem:[#allocation2 + $0xf0] sm:$0xff] %v517
        %522 = vst [vmem:[#allocation2 + $0xf8] sm:$0xff] %v518
        %523 = vrot.lane.b32.xlu0 %v262, 55
        %v524 = vpop.permute.xlu0 %523
        %525 = vrot.lane.b32.xlu0 %v263, 55
        %v526 = vpop.permute.xlu0 %525
        %527 = vrot.lane.b32.xlu0 %v264, 55
        %v528 = vpop.permute.xlu0 %527
        %529 = vrot.lane.b32.xlu0 %v265, 55
        %v530 = vpop.permute.xlu0 %529
        %vm531 = vcmp.lt.s32.totalorder %v275, 55
        %v532 = vsel %vm531, %v528, %v530
        %v533 = vsel %vm531, %v526, %v528
        %v534 = vsel %vm531, %v524, %v526
        %v535 = vsel %vm531, %v530, %v524
        %s536 = scalar_lea.vmem [#allocation9], 32
        %v537 = vld [vmem:[%s536] ss:$8 sm:$0xf]
        %v539 = vperm.slane %v537, 0
        %v540 = vperm.slane %v537, 1
        %v541 = vperm.slane %v537, 2
        %v542 = vperm.slane %v537, 3
        %v547 = vmul.f32 %v535, %v539
        %v548 = vmul.f32 %v534, %v540
        %v549 = vmul.f32 %v533, %v541
        %v550 = vmul.f32 %v532, %v542
        %551 = vst [vmem:[#allocation2 + $0x100] sm:$0xff] %v547
        %552 = vst [vmem:[#allocation2 + $0x108] sm:$0xff] %v548
        %553 = vst [vmem:[#allocation2 + $0x110] sm:$0xff] %v549
        %554 = vst [vmem:[#allocation2 + $0x118] sm:$0xff] %v550
        %555 = vrot.lane.b32.xlu0 %v262, 9
        %v556 = vpop.permute.xlu0 %555
        %557 = vrot.lane.b32.xlu0 %v263, 9
        %v558 = vpop.permute.xlu0 %557
        %559 = vrot.lane.b32.xlu0 %v264, 9
        %v560 = vpop.permute.xlu0 %559
        %561 = vrot.lane.b32.xlu0 %v265, 9
        %v562 = vpop.permute.xlu0 %561
        %vm563 = vcmp.lt.s32.totalorder %v275, 9
        %v564 = vsel %vm563, %v560, %v562
        %v565 = vsel %vm563, %v558, %v560
        %v566 = vsel %vm563, %v556, %v558
        %v567 = vsel %vm563, %v562, %v556
        %s568 = scalar_lea.vmem [#allocation9], 33
        %v569 = vld [vmem:[%s568] ss:$8 sm:$0xf]
        %v571 = vperm.slane %v569, 0
        %v572 = vperm.slane %v569, 1
        %v573 = vperm.slane %v569, 2
        %v574 = vperm.slane %v569, 3
        %v579 = vmul.f32 %v567, %v571
        %v580 = vmul.f32 %v566, %v572
        %v581 = vmul.f32 %v565, %v573
        %v582 = vmul.f32 %v564, %v574
        %583 = vst [vmem:[#allocation2 + $0x120] sm:$0xff] %v579
        %584 = vst [vmem:[#allocation2 + $0x128] sm:$0xff] %v580
        %585 = vst [vmem:[#allocation2 + $0x130] sm:$0xff] %v581
        %586 = vst [vmem:[#allocation2 + $0x138] sm:$0xff] %v582
        %587 = vrot.lane.b32.xlu0 %v262, 8
        %v588 = vpop.permute.xlu0 %587
        %589 = vrot.lane.b32.xlu0 %v263, 8
        %v590 = vpop.permute.xlu0 %589
        %591 = vrot.lane.b32.xlu0 %v264, 8
        %v592 = vpop.permute.xlu0 %591
        %593 = vrot.lane.b32.xlu0 %v265, 8
        %v594 = vpop.permute.xlu0 %593
        %vm595 = vcmp.lt.s32.totalorder %v275, 8
        %v596 = vsel %vm595, %v592, %v594
        %v597 = vsel %vm595, %v590, %v592
        %v598 = vsel %vm595, %v588, %v590
        %v599 = vsel %vm595, %v594, %v588
        %s600 = scalar_lea.vmem [#allocation9], 34
        %v601 = vld [vmem:[%s600] ss:$8 sm:$0xf]
        %v603 = vperm.slane %v601, 0
        %v604 = vperm.slane %v601, 1
        %v605 = vperm.slane %v601, 2
        %v606 = vperm.slane %v601, 3
        %v611 = vmul.f32 %v599, %v603
        %v612 = vmul.f32 %v598, %v604
        %v613 = vmul.f32 %v597, %v605
        %v614 = vmul.f32 %v596, %v606
        %615 = vst [vmem:[#allocation2 + $0x140] sm:$0xff] %v611
        %616 = vst [vmem:[#allocation2 + $0x148] sm:$0xff] %v612
        %617 = vst [vmem:[#allocation2 + $0x150] sm:$0xff] %v613
        %618 = vst [vmem:[#allocation2 + $0x158] sm:$0xff] %v614
        %619 = vrot.lane.b32.xlu0 %v262, 7
        %v620 = vpop.permute.xlu0 %619
        %621 = vrot.lane.b32.xlu0 %v263, 7
        %v622 = vpop.permute.xlu0 %621
        %623 = vrot.lane.b32.xlu0 %v264, 7
        %v624 = vpop.permute.xlu0 %623
        %625 = vrot.lane.b32.xlu0 %v265, 7
        %v626 = vpop.permute.xlu0 %625
        %vm627 = vcmp.lt.s32.totalorder %v275, 7
        %v628 = vsel %vm627, %v624, %v626
        %v629 = vsel %vm627, %v622, %v624
        %v630 = vsel %vm627, %v620, %v622
        %v631 = vsel %vm627, %v626, %v620
        %s632 = scalar_lea.vmem [#allocation9], 35
        %v633 = vld [vmem:[%s632] ss:$8 sm:$0xf]
        %v635 = vperm.slane %v633, 0
        %v636 = vperm.slane %v633, 1
        %v637 = vperm.slane %v633, 2
        %v638 = vperm.slane %v633, 3
        %v643 = vmul.f32 %v631, %v635
        %v644 = vmul.f32 %v630, %v636
        %v645 = vmul.f32 %v629, %v637
        %v646 = vmul.f32 %v628, %v638
        %647 = vst [vmem:[#allocation2 + $0x160] sm:$0xff] %v643
        %648 = vst [vmem:[#allocation2 + $0x168] sm:$0xff] %v644
        %649 = vst [vmem:[#allocation2 + $0x170] sm:$0xff] %v645
        %650 = vst [vmem:[#allocation2 + $0x178] sm:$0xff] %v646
        %651 = vrot.lane.b32.xlu0 %v262, 1
        %v652 = vpop.permute.xlu0 %651
        %653 = vrot.lane.b32.xlu0 %v263, 1
        %v654 = vpop.permute.xlu0 %653
        %655 = vrot.lane.b32.xlu0 %v264, 1
        %v656 = vpop.permute.xlu0 %655
        %657 = vrot.lane.b32.xlu0 %v265, 1
        %v658 = vpop.permute.xlu0 %657
        %vm659 = vcmp.lt.s32.totalorder %v275, 1
        %v660 = vsel %vm659, %v656, %v658
        %v661 = vsel %vm659, %v654, %v656
        %v662 = vsel %vm659, %v652, %v654
        %v663 = vsel %vm659, %v658, %v652
        %s664 = scalar_lea.vmem [#allocation9], 36
        %v665 = vld [vmem:[%s664] ss:$8 sm:$0xf]
        %v667 = vperm.slane %v665, 0
        %v668 = vperm.slane %v665, 1
        %v669 = vperm.slane %v665, 2
        %v670 = vperm.slane %v665, 3
        %v675 = vmul.f32 %v663, %v667
        %v676 = vmul.f32 %v662, %v668
        %v677 = vmul.f32 %v661, %v669
        %v678 = vmul.f32 %v660, %v670
        %679 = vst [vmem:[#allocation2 + $0x180] sm:$0xff] %v675
        %680 = vst [vmem:[#allocation2 + $0x188] sm:$0xff] %v676
        %681 = vst [vmem:[#allocation2 + $0x190] sm:$0xff] %v677
        %682 = vst [vmem:[#allocation2 + $0x198] sm:$0xff] %v678
        %683 = vst [vmem:[#allocation2 + $0x1a0] sm:$0xff] %v262
        %684 = vst [vmem:[#allocation2 + $0x1a8] sm:$0xff] %v263
        %685 = vst [vmem:[#allocation2 + $0x1b0] sm:$0xff] %v264
        %686 = vst [vmem:[#allocation2 + $0x1b8] sm:$0xff] %v265
        %687 = vrot.lane.b32.xlu0 %v262, 127
        %v688 = vpop.permute.xlu0 %687
        %689 = vrot.lane.b32.xlu0 %v263, 127
        %v690 = vpop.permute.xlu0 %689
        %691 = vrot.lane.b32.xlu0 %v264, 127
        %v692 = vpop.permute.xlu0 %691
        %693 = vrot.lane.b32.xlu0 %v265, 127
        %v694 = vpop.permute.xlu0 %693
        %vm695 = vcmp.lt.s32.totalorder %v275, 127
        %v696 = vsel %vm695, %v692, %v694
        %v697 = vsel %vm695, %v690, %v692
        %v698 = vsel %vm695, %v688, %v690
        %v699 = vsel %vm695, %v694, %v688
        %s700 = scalar_lea.vmem [#allocation9], 38
        %v701 = vld [vmem:[%s700] ss:$8 sm:$0xf]
        %v703 = vperm.slane %v701, 0
        %v704 = vperm.slane %v701, 1
        %v705 = vperm.slane %v701, 2
        %v706 = vperm.slane %v701, 3
        %v711 = vmul.f32 %v698, %v703
        %v712 = vmul.f32 %v697, %v704
        %v713 = vmul.f32 %v696, %v705
        %v714 = vmul.f32 %v699, %v706
        %715 = vst [vmem:[#allocation2 + $0x1c0] sm:$0xff] %v711
        %716 = vst [vmem:[#allocation2 + $0x1c8] sm:$0xff] %v712
        %717 = vst [vmem:[#allocation2 + $0x1d0] sm:$0xff] %v713
        %718 = vst [vmem:[#allocation2 + $0x1d8] sm:$0xff] %v714
        %719 = vrot.lane.b32.xlu0 %v262, 121
        %v720 = vpop.permute.xlu0 %719
        %721 = vrot.lane.b32.xlu0 %v263, 121
        %v722 = vpop.permute.xlu0 %721
        %723 = vrot.lane.b32.xlu0 %v264, 121
        %v724 = vpop.permute.xlu0 %723
        %725 = vrot.lane.b32.xlu0 %v265, 121
        %v726 = vpop.permute.xlu0 %725
        %vm727 = vcmp.lt.s32.totalorder %v275, 121
        %v728 = vsel %vm727, %v724, %v726
        %v729 = vsel %vm727, %v722, %v724
        %v730 = vsel %vm727, %v720, %v722
        %v731 = vsel %vm727, %v726, %v720
        %s732 = scalar_lea.vmem [#allocation9], 39
        %v733 = vld [vmem:[%s732] ss:$8 sm:$0xf]
        %v735 = vperm.slane %v733, 0
        %v736 = vperm.slane %v733, 1
        %v737 = vperm.slane %v733, 2
        %v738 = vperm.slane %v733, 3
        %v743 = vmul.f32 %v730, %v735
        %v744 = vmul.f32 %v729, %v736
        %v745 = vmul.f32 %v728, %v737
        %v746 = vmul.f32 %v731, %v738
        %747 = vst [vmem:[#allocation2 + $0x1e0] sm:$0xff] %v743
        %748 = vst [vmem:[#allocation2 + $0x1e8] sm:$0xff] %v744
        %749 = vst [vmem:[#allocation2 + $0x1f0] sm:$0xff] %v745
        %750 = vst [vmem:[#allocation2 + $0x1f8] sm:$0xff] %v746
        %751 = vrot.lane.b32.xlu0 %v262, 120
        %v752 = vpop.permute.xlu0 %751
        %753 = vrot.lane.b32.xlu0 %v263, 120
        %v754 = vpop.permute.xlu0 %753
        %755 = vrot.lane.b32.xlu0 %v264, 120
        %v756 = vpop.permute.xlu0 %755
        %757 = vrot.lane.b32.xlu0 %v265, 120
        %v758 = vpop.permute.xlu0 %757
        %vm759 = vcmp.lt.s32.totalorder %v275, 120
        %v760 = vsel %vm759, %v756, %v758
        %v761 = vsel %vm759, %v754, %v756
        %v762 = vsel %vm759, %v752, %v754
        %v763 = vsel %vm759, %v758, %v752
        %s764 = scalar_lea.vmem [#allocation9], 64
        %v765 = vld [vmem:[%s764] ss:$8 sm:$0xf]
        %v767 = vperm.slane %v765, 0
        %v768 = vperm.slane %v765, 1
        %v769 = vperm.slane %v765, 2
        %v770 = vperm.slane %v765, 3
        %v775 = vmul.f32 %v762, %v767
        %v776 = vmul.f32 %v761, %v768
        %v777 = vmul.f32 %v760, %v769
        %v778 = vmul.f32 %v763, %v770
        %779 = vst [vmem:[#allocation2 + $0x200] sm:$0xff] %v775
        %780 = vst [vmem:[#allocation2 + $0x208] sm:$0xff] %v776
        %781 = vst [vmem:[#allocation2 + $0x210] sm:$0xff] %v777
        %782 = vst [vmem:[#allocation2 + $0x218] sm:$0xff] %v778
        %783 = vrot.lane.b32.xlu0 %v262, 119
        %v784 = vpop.permute.xlu0 %783
        %785 = vrot.lane.b32.xlu0 %v263, 119
        %v786 = vpop.permute.xlu0 %785
        %787 = vrot.lane.b32.xlu0 %v264, 119
        %v788 = vpop.permute.xlu0 %787
        %789 = vrot.lane.b32.xlu0 %v265, 119
        %v790 = vpop.permute.xlu0 %789
        %vm791 = vcmp.lt.s32.totalorder %v275, 119
        %v792 = vsel %vm791, %v788, %v790
        %v793 = vsel %vm791, %v786, %v788
        %v794 = vsel %vm791, %v784, %v786
        %v795 = vsel %vm791, %v790, %v784
        %s796 = scalar_lea.vmem [#allocation9], 65
        %v797 = vld [vmem:[%s796] ss:$8 sm:$0xf]
        %v799 = vperm.slane %v797, 0
        %v800 = vperm.slane %v797, 1
        %v801 = vperm.slane %v797, 2
        %v802 = vperm.slane %v797, 3
        %v807 = vmul.f32 %v794, %v799
        %v808 = vmul.f32 %v793, %v800
        %v809 = vmul.f32 %v792, %v801
        %v810 = vmul.f32 %v795, %v802
        %811 = vst [vmem:[#allocation2 + $0x220] sm:$0xff] %v807
        %812 = vst [vmem:[#allocation2 + $0x228] sm:$0xff] %v808
        %813 = vst [vmem:[#allocation2 + $0x230] sm:$0xff] %v809
        %814 = vst [vmem:[#allocation2 + $0x238] sm:$0xff] %v810
        %s815 = scalar_lea.vmem [#allocation9], 66
        %v816 = vld [vmem:[%s815] ss:$8 sm:$0xf]
        %v818 = vperm.slane %v816, 0
        %v819 = vperm.slane %v816, 1
        %v820 = vperm.slane %v816, 2
        %v821 = vperm.slane %v816, 3
        %v826 = vmul.f32 %v279, %v818
        %v827 = vmul.f32 %v278, %v819
        %v828 = vmul.f32 %v277, %v820
        %v829 = vmul.f32 %v280, %v821
        %830 = vst [vmem:[#allocation2 + $0x240] sm:$0xff] %v826
        %831 = vst [vmem:[#allocation2 + $0x248] sm:$0xff] %v827
        %832 = vst [vmem:[#allocation2 + $0x250] sm:$0xff] %v828
        %833 = vst [vmem:[#allocation2 + $0x258] sm:$0xff] %v829
        %s834 = scalar_lea.vmem [#allocation9], 67
        %v835 = vld [vmem:[%s834] ss:$8 sm:$0xf]
        %v837 = vperm.slane %v835, 0
        %v838 = vperm.slane %v835, 1
        %v839 = vperm.slane %v835, 2
        %v840 = vperm.slane %v835, 3
        %v845 = vmul.f32 %v310, %v837
        %v846 = vmul.f32 %v309, %v838
        %v847 = vmul.f32 %v308, %v839
        %v848 = vmul.f32 %v311, %v840
        %849 = vst [vmem:[#allocation2 + $0x260] sm:$0xff] %v845
        %850 = vst [vmem:[#allocation2 + $0x268] sm:$0xff] %v846
        %851 = vst [vmem:[#allocation2 + $0x270] sm:$0xff] %v847
        %852 = vst [vmem:[#allocation2 + $0x278] sm:$0xff] %v848
        %s853 = scalar_lea.vmem [#allocation9], 68
        %v854 = vld [vmem:[%s853] ss:$8 sm:$0xf]
        %v856 = vperm.slane %v854, 0
        %v857 = vperm.slane %v854, 1
        %v858 = vperm.slane %v854, 2
        %v859 = vperm.slane %v854, 3
        %v864 = vmul.f32 %v342, %v856
        %v865 = vmul.f32 %v341, %v857
        %v866 = vmul.f32 %v340, %v858
        %v867 = vmul.f32 %v343, %v859
        %868 = vst [vmem:[#allocation2 + $0x280] sm:$0xff] %v864
        %869 = vst [vmem:[#allocation2 + $0x288] sm:$0xff] %v865
        %870 = vst [vmem:[#allocation2 + $0x290] sm:$0xff] %v866
        %871 = vst [vmem:[#allocation2 + $0x298] sm:$0xff] %v867
        %s872 = scalar_lea.vmem [#allocation9], 69
        %v873 = vld [vmem:[%s872] ss:$8 sm:$0xf]
        %v875 = vperm.slane %v873, 0
        %v876 = vperm.slane %v873, 1
        %v877 = vperm.slane %v873, 2
        %v878 = vperm.slane %v873, 3
        %v883 = vmul.f32 %v374, %v875
        %v884 = vmul.f32 %v373, %v876
        %v885 = vmul.f32 %v372, %v877
        %v886 = vmul.f32 %v375, %v878
        %887 = vst [vmem:[#allocation2 + $0x2a0] sm:$0xff] %v883
        %888 = vst [vmem:[#allocation2 + $0x2a8] sm:$0xff] %v884
        %889 = vst [vmem:[#allocation2 + $0x2b0] sm:$0xff] %v885
        %890 = vst [vmem:[#allocation2 + $0x2b8] sm:$0xff] %v886
        %s891 = scalar_lea.vmem [#allocation9], 70
        %v892 = vld [vmem:[%s891] ss:$8 sm:$0xf]
        %v894 = vperm.slane %v892, 0
        %v895 = vperm.slane %v892, 1
        %v896 = vperm.slane %v892, 2
        %v897 = vperm.slane %v892, 3
        %v902 = vmul.f32 %v406, %v894
        %v903 = vmul.f32 %v405, %v895
        %v904 = vmul.f32 %v404, %v896
        %v905 = vmul.f32 %v407, %v897
        %906 = vst [vmem:[#allocation2 + $0x2c0] sm:$0xff] %v902
        %907 = vst [vmem:[#allocation2 + $0x2c8] sm:$0xff] %v903
        %908 = vst [vmem:[#allocation2 + $0x2d0] sm:$0xff] %v904
        %909 = vst [vmem:[#allocation2 + $0x2d8] sm:$0xff] %v905
        %s910 = scalar_lea.vmem [#allocation9], 71
        %v911 = vld [vmem:[%s910] ss:$8 sm:$0xf]
        %v913 = vperm.slane %v911, 0
        %v914 = vperm.slane %v911, 1
        %v915 = vperm.slane %v911, 2
        %v916 = vperm.slane %v911, 3
        %v921 = vmul.f32 %v438, %v913
        %v922 = vmul.f32 %v437, %v914
        %v923 = vmul.f32 %v436, %v915
        %v924 = vmul.f32 %v439, %v916
        %925 = vst [vmem:[#allocation2 + $0x2e0] sm:$0xff] %v921
        %926 = vst [vmem:[#allocation2 + $0x2e8] sm:$0xff] %v922
        %927 = vst [vmem:[#allocation2 + $0x2f0] sm:$0xff] %v923
        %928 = vst [vmem:[#allocation2 + $0x2f8] sm:$0xff] %v924
        %s929 = scalar_lea.vmem [#allocation9], 96
        %v930 = vld [vmem:[%s929] ss:$8 sm:$0xf]
        %v932 = vperm.slane %v930, 0
        %v933 = vperm.slane %v930, 1
        %v934 = vperm.slane %v930, 2
        %v935 = vperm.slane %v930, 3
        %v940 = vmul.f32 %v470, %v932
        %v941 = vmul.f32 %v469, %v933
        %v942 = vmul.f32 %v468, %v934
        %v943 = vmul.f32 %v471, %v935
        %944 = vst [vmem:[#allocation2 + $0x300] sm:$0xff] %v940
        %945 = vst [vmem:[#allocation2 + $0x308] sm:$0xff] %v941
        %946 = vst [vmem:[#allocation2 + $0x310] sm:$0xff] %v942
        %947 = vst [vmem:[#allocation2 + $0x318] sm:$0xff] %v943
        %s948 = scalar_lea.vmem [#allocation9], 97
        %v949 = vld [vmem:[%s948] ss:$8 sm:$0xf]
        %v951 = vperm.slane %v949, 0
        %v952 = vperm.slane %v949, 1
        %v953 = vperm.slane %v949, 2
        %v954 = vperm.slane %v949, 3
        %v959 = vmul.f32 %v502, %v951
        %v960 = vmul.f32 %v501, %v952
        %v961 = vmul.f32 %v500, %v953
        %v962 = vmul.f32 %v503, %v954
        %963 = vst [vmem:[#allocation2 + $0x320] sm:$0xff] %v959
        %964 = vst [vmem:[#allocation2 + $0x328] sm:$0xff] %v960
        %965 = vst [vmem:[#allocation2 + $0x330] sm:$0xff] %v961
        %966 = vst [vmem:[#allocation2 + $0x338] sm:$0xff] %v962
        %s967 = scalar_lea.vmem [#allocation9], 98
        %v968 = vld [vmem:[%s967] ss:$8 sm:$0xf]
        %v970 = vperm.slane %v968, 0
        %v971 = vperm.slane %v968, 1
        %v972 = vperm.slane %v968, 2
        %v973 = vperm.slane %v968, 3
        %v978 = vmul.f32 %v534, %v970
        %v979 = vmul.f32 %v533, %v971
        %v980 = vmul.f32 %v532, %v972
        %v981 = vmul.f32 %v535, %v973
        %982 = vst [vmem:[#allocation2 + $0x340] sm:$0xff] %v978
        %983 = vst [vmem:[#allocation2 + $0x348] sm:$0xff] %v979
        %984 = vst [vmem:[#allocation2 + $0x350] sm:$0xff] %v980
        %985 = vst [vmem:[#allocation2 + $0x358] sm:$0xff] %v981
        %v986 = vld [vmem:[#allocation6] sm:$0xff]
        %v987 = vld [vmem:[#allocation6 + $0x8] sm:$0xff]
        %v988 = vld [vmem:[#allocation2] sm:$0xff]
        %v989 = vld [vmem:[#allocation2 + $0x8] sm:$0xff]
        %v990 = vld [vmem:[#allocation2 + $0x10] sm:$0xff]
        %v991 = vld [vmem:[#allocation2 + $0x18] sm:$0xff]
        %v992 = vld [vmem:[#allocation2 + $0x20] sm:$0xff]
        %v993 = vld [vmem:[#allocation2 + $0x28] sm:$0xff]
        %v994 = vld [vmem:[#allocation2 + $0x30] sm:$0xff]
        %v995 = vld [vmem:[#allocation2 + $0x38] sm:$0xff]
        %v996 = vld [vmem:[#allocation2 + $0x40] sm:$0xff]
        %v997 = vld [vmem:[#allocation2 + $0x48] sm:$0xff]
        %v998 = vld [vmem:[#allocation2 + $0x50] sm:$0xff]
        %v999 = vld [vmem:[#allocation2 + $0x58] sm:$0xff]
        %v1000 = vld [vmem:[#allocation2 + $0x60] sm:$0xff]
        %v1001 = vld [vmem:[#allocation2 + $0x68] sm:$0xff]
        %v1002 = vld [vmem:[#allocation2 + $0x70] sm:$0xff]
        %v1003 = vld [vmem:[#allocation2 + $0x78] sm:$0xff]
        %v1004 = vld [vmem:[#allocation2 + $0x80] sm:$0xff]
        %v1005 = vld [vmem:[#allocation2 + $0x88] sm:$0xff]
        %v1006 = vld [vmem:[#allocation2 + $0x90] sm:$0xff]
        %v1007 = vld [vmem:[#allocation2 + $0x98] sm:$0xff]
        %v1008 = vld [vmem:[#allocation2 + $0xa0] sm:$0xff]
        %v1009 = vld [vmem:[#allocation2 + $0xa8] sm:$0xff]
        %v1010 = vld [vmem:[#allocation2 + $0xb0] sm:$0xff]
        %v1011 = vld [vmem:[#allocation2 + $0xb8] sm:$0xff]
        %v1012 = vld [vmem:[#allocation2 + $0xc0] sm:$0xff]
        %v1013 = vld [vmem:[#allocation2 + $0xc8] sm:$0xff]
        %v1014 = vld [vmem:[#allocation2 + $0xd0] sm:$0xff]
        %v1015 = vld [vmem:[#allocation2 + $0xd8] sm:$0xff]
        %v1016 = vld [vmem:[#allocation2 + $0xe0] sm:$0xff]
        %v1017 = vld [vmem:[#allocation2 + $0xe8] sm:$0xff]
        %v1018 = vld [vmem:[#allocation2 + $0xf0] sm:$0xff]
        %v1019 = vld [vmem:[#allocation2 + $0xf8] sm:$0xff]
        %v1020 = vld [vmem:[#allocation2 + $0x100] sm:$0xff]
        %v1021 = vld [vmem:[#allocation2 + $0x108] sm:$0xff]
        %v1022 = vld [vmem:[#allocation2 + $0x110] sm:$0xff]
        %v1023 = vld [vmem:[#allocation2 + $0x118] sm:$0xff]
        %v1024 = vld [vmem:[#allocation2 + $0x120] sm:$0xff]
        %v1025 = vld [vmem:[#allocation2 + $0x128] sm:$0xff]
        %v1026 = vld [vmem:[#allocation2 + $0x130] sm:$0xff]
        %v1027 = vld [vmem:[#allocation2 + $0x138] sm:$0xff]
        %v1028 = vld [vmem:[#allocation2 + $0x140] sm:$0xff]
        %v1029 = vld [vmem:[#allocation2 + $0x148] sm:$0xff]
        %v1030 = vld [vmem:[#allocation2 + $0x150] sm:$0xff]
        %v1031 = vld [vmem:[#allocation2 + $0x158] sm:$0xff]
        %v1032 = vld [vmem:[#allocation2 + $0x160] sm:$0xff]
        %v1033 = vld [vmem:[#allocation2 + $0x168] sm:$0xff]
        %v1034 = vld [vmem:[#allocation2 + $0x170] sm:$0xff]
        %v1035 = vld [vmem:[#allocation2 + $0x178] sm:$0xff]
        %v1036 = vld [vmem:[#allocation2 + $0x180] sm:$0xff]
        %v1037 = vld [vmem:[#allocation2 + $0x188] sm:$0xff]
        %v1038 = vld [vmem:[#allocation2 + $0x190] sm:$0xff]
        %v1039 = vld [vmem:[#allocation2 + $0x198] sm:$0xff]
        %v1040 = vld [vmem:[#allocation2 + $0x1a0] sm:$0xff]
        %v1041 = vld [vmem:[#allocation2 + $0x1a8] sm:$0xff]
        %v1042 = vld [vmem:[#allocation2 + $0x1b0] sm:$0xff]
        %v1043 = vld [vmem:[#allocation2 + $0x1b8] sm:$0xff]
        %v1044 = vld [vmem:[#allocation2 + $0x1c0] sm:$0xff]
        %v1045 = vld [vmem:[#allocation2 + $0x1c8] sm:$0xff]
        %v1046 = vld [vmem:[#allocation2 + $0x1d0] sm:$0xff]
        %v1047 = vld [vmem:[#allocation2 + $0x1d8] sm:$0xff]
        %v1048 = vld [vmem:[#allocation2 + $0x1e0] sm:$0xff]
        %v1049 = vld [vmem:[#allocation2 + $0x1e8] sm:$0xff]
        %v1050 = vld [vmem:[#allocation2 + $0x1f0] sm:$0xff]
        %v1051 = vld [vmem:[#allocation2 + $0x1f8] sm:$0xff]
        %v1052 = vld [vmem:[#allocation2 + $0x200] sm:$0xff]
        %v1053 = vld [vmem:[#allocation2 + $0x208] sm:$0xff]
        %v1054 = vld [vmem:[#allocation2 + $0x210] sm:$0xff]
        %v1055 = vld [vmem:[#allocation2 + $0x218] sm:$0xff]
        %v1056 = vld [vmem:[#allocation2 + $0x220] sm:$0xff]
        %v1057 = vld [vmem:[#allocation2 + $0x228] sm:$0xff]
        %v1058 = vld [vmem:[#allocation2 + $0x230] sm:$0xff]
        %v1059 = vld [vmem:[#allocation2 + $0x238] sm:$0xff]
        %v1060 = vld [vmem:[#allocation2 + $0x240] sm:$0xff]
        %v1061 = vld [vmem:[#allocation2 + $0x248] sm:$0xff]
        %v1062 = vld [vmem:[#allocation2 + $0x250] sm:$0xff]
        %v1063 = vld [vmem:[#allocation2 + $0x258] sm:$0xff]
        %v1064 = vld [vmem:[#allocation2 + $0x260] sm:$0xff]
        %v1065 = vld [vmem:[#allocation2 + $0x268] sm:$0xff]
        %v1066 = vld [vmem:[#allocation2 + $0x270] sm:$0xff]
        %v1067 = vld [vmem:[#allocation2 + $0x278] sm:$0xff]
        %v1068 = vld [vmem:[#allocation2 + $0x280] sm:$0xff]
        %v1069 = vld [vmem:[#allocation2 + $0x288] sm:$0xff]
        %v1070 = vld [vmem:[#allocation2 + $0x290] sm:$0xff]
        %v1071 = vld [vmem:[#allocation2 + $0x298] sm:$0xff]
        %v1072 = vld [vmem:[#allocation2 + $0x2a0] sm:$0xff]
        %v1073 = vld [vmem:[#allocation2 + $0x2a8] sm:$0xff]
        %v1074 = vld [vmem:[#allocation2 + $0x2b0] sm:$0xff]
        %v1075 = vld [vmem:[#allocation2 + $0x2b8] sm:$0xff]
        %v1076 = vld [vmem:[#allocation2 + $0x2c0] sm:$0xff]
        %v1077 = vld [vmem:[#allocation2 + $0x2c8] sm:$0xff]
        %v1078 = vld [vmem:[#allocation2 + $0x2d0] sm:$0xff]
        %v1079 = vld [vmem:[#allocation2 + $0x2d8] sm:$0xff]
        %v1080 = vld [vmem:[#allocation2 + $0x2e0] sm:$0xff]
        %v1081 = vld [vmem:[#allocation2 + $0x2e8] sm:$0xff]
        %v1082 = vld [vmem:[#allocation2 + $0x2f0] sm:$0xff]
        %v1083 = vld [vmem:[#allocation2 + $0x2f8] sm:$0xff]
        %v1084 = vld [vmem:[#allocation2 + $0x300] sm:$0xff]
        %v1085 = vld [vmem:[#allocation2 + $0x308] sm:$0xff]
        %v1086 = vld [vmem:[#allocation2 + $0x310] sm:$0xff]
        %v1087 = vld [vmem:[#allocation2 + $0x318] sm:$0xff]
        %v1088 = vld [vmem:[#allocation2 + $0x320] sm:$0xff]
        %v1089 = vld [vmem:[#allocation2 + $0x328] sm:$0xff]
        %v1090 = vld [vmem:[#allocation2 + $0x330] sm:$0xff]
        %v1091 = vld [vmem:[#allocation2 + $0x338] sm:$0xff]
        %v1092 = vld [vmem:[#allocation2 + $0x340] sm:$0xff]
        %v1093 = vld [vmem:[#allocation2 + $0x348] sm:$0xff]
        %v1094 = vld [vmem:[#allocation2 + $0x350] sm:$0xff]
        %v1095 = vld [vmem:[#allocation2 + $0x358] sm:$0xff]
        %vm1096 = vcmask 719872
        %v1098 = vsel %vm1096, %v987, 0
        %1100 = vmatpush.msra.mxu0 %v1048
        %1101 = vmatpush.msra.mxu0 %v1044
        %1102 = vmatpush.msra.mxu0 %v1040
        %1103 = vmatpush.msra.mxu0 %v1036
        %1104 = vmatpush.msra.mxu0 %v1032
        %1105 = vmatpush.msra.mxu0 %v1028
        %1106 = vmatpush.msra.mxu0 %v1024
        %1107 = vmatpush.msra.mxu0 %v1020
        %1108 = vmatpush.msra.mxu0 %v1016
        %1109 = vmatpush.msra.mxu0 %v1012
        %1110 = vmatpush.msra.mxu0 %v1008
        %1111 = vmatpush.msra.mxu0 %v1004
        %1112 = vmatpush.msra.mxu0 %v1000
        %1113 = vmatpush.msra.mxu0 %v996
        %1114 = vmatpush.msra.mxu0 %v992
        %1115 = vmatpush.msra.mxu0 %v988
        %1116 = vmatmul.f32.gmra.mxu0 %v986
        %v1117 = vpop.f32.mrf.mxu0
        %v1118 = vadd.f32 0.0, %v1117
        %1119 = vdwg.mxu0
        %1120 = vmatpush.msra.mxu0 0.0
        %1121 = vmatpush.msra.mxu0 0.0
        %1122 = vmatpush.msra.mxu0 0.0
        %1123 = vmatpush.msra.mxu0 0.0
        %1124 = vmatpush.msra.mxu0 0.0
        %1125 = vmatpush.msra.mxu0 %v1092
        %1126 = vmatpush.msra.mxu0 %v1088
        %1127 = vmatpush.msra.mxu0 %v1084
        %1128 = vmatpush.msra.mxu0 %v1080
        %1129 = vmatpush.msra.mxu0 %v1076
        %1130 = vmatpush.msra.mxu0 %v1072
        %1131 = vmatpush.msra.mxu0 %v1068
        %1132 = vmatpush.msra.mxu0 %v1064
        %1133 = vmatpush.msra.mxu0 %v1060
        %1134 = vmatpush.msra.mxu0 %v1056
        %1135 = vmatpush.msra.mxu0 %v1052
        %1136 = vmatmul.f32.gmra.mxu0 %v1098
        %v1137 = vpop.f32.mrf.mxu0
        %v1138 = vadd.f32 %v1118, %v1137
        %1139 = vdwg.mxu0
        %1140 = vmatpush.msra.mxu0 %v1049
        %1141 = vmatpush.msra.mxu0 %v1045
        %1142 = vmatpush.msra.mxu0 %v1041
        %1143 = vmatpush.msra.mxu0 %v1037
        %1144 = vmatpush.msra.mxu0 %v1033
        %1145 = vmatpush.msra.mxu0 %v1029
        %1146 = vmatpush.msra.mxu0 %v1025
        %1147 = vmatpush.msra.mxu0 %v1021
        %1148 = vmatpush.msra.mxu0 %v1017
        %1149 = vmatpush.msra.mxu0 %v1013
        %1150 = vmatpush.msra.mxu0 %v1009
        %1151 = vmatpush.msra.mxu0 %v1005
        %1152 = vmatpush.msra.mxu0 %v1001
        %1153 = vmatpush.msra.mxu0 %v997
        %1154 = vmatpush.msra.mxu0 %v993
        %1155 = vmatpush.msra.mxu0 %v989
        %1156 = vmatmul.f32.gmra.mxu0 %v986
        %v1157 = vpop.f32.mrf.mxu0
        %v1158 = vadd.f32 0.0, %v1157
        %1159 = vdwg.mxu0
        %1160 = vmatpush.msra.mxu0 0.0
        %1161 = vmatpush.msra.mxu0 0.0
        %1162 = vmatpush.msra.mxu0 0.0
        %1163 = vmatpush.msra.mxu0 0.0
        %1164 = vmatpush.msra.mxu0 0.0
        %1165 = vmatpush.msra.mxu0 %v1093
        %1166 = vmatpush.msra.mxu0 %v1089
        %1167 = vmatpush.msra.mxu0 %v1085
        %1168 = vmatpush.msra.mxu0 %v1081
        %1169 = vmatpush.msra.mxu0 %v1077
        %1170 = vmatpush.msra.mxu0 %v1073
        %1171 = vmatpush.msra.mxu0 %v1069
        %1172 = vmatpush.msra.mxu0 %v1065
        %1173 = vmatpush.msra.mxu0 %v1061
        %1174 = vmatpush.msra.mxu0 %v1057
        %1175 = vmatpush.msra.mxu0 %v1053
        %1176 = vmatmul.f32.gmra.mxu0 %v1098
        %v1177 = vpop.f32.mrf.mxu0
        %v1178 = vadd.f32 %v1158, %v1177
        %1179 = vdwg.mxu0
        %1180 = vmatpush.msra.mxu0 %v1050
        %1181 = vmatpush.msra.mxu0 %v1046
        %1182 = vmatpush.msra.mxu0 %v1042
        %1183 = vmatpush.msra.mxu0 %v1038
        %1184 = vmatpush.msra.mxu0 %v1034
        %1185 = vmatpush.msra.mxu0 %v1030
        %1186 = vmatpush.msra.mxu0 %v1026
        %1187 = vmatpush.msra.mxu0 %v1022
        %1188 = vmatpush.msra.mxu0 %v1018
        %1189 = vmatpush.msra.mxu0 %v1014
        %1190 = vmatpush.msra.mxu0 %v1010
        %1191 = vmatpush.msra.mxu0 %v1006
        %1192 = vmatpush.msra.mxu0 %v1002
        %1193 = vmatpush.msra.mxu0 %v998
        %1194 = vmatpush.msra.mxu0 %v994
        %1195 = vmatpush.msra.mxu0 %v990
        %1196 = vmatmul.f32.gmra.mxu0 %v986
        %v1197 = vpop.f32.mrf.mxu0
        %v1198 = vadd.f32 0.0, %v1197
        %1199 = vdwg.mxu0
        %1200 = vmatpush.msra.mxu0 0.0
        %1201 = vmatpush.msra.mxu0 0.0
        %1202 = vmatpush.msra.mxu0 0.0
        %1203 = vmatpush.msra.mxu0 0.0
        %1204 = vmatpush.msra.mxu0 0.0
        %1205 = vmatpush.msra.mxu0 %v1094
        %1206 = vmatpush.msra.mxu0 %v1090
        %1207 = vmatpush.msra.mxu0 %v1086
        %1208 = vmatpush.msra.mxu0 %v1082
        %1209 = vmatpush.msra.mxu0 %v1078
        %1210 = vmatpush.msra.mxu0 %v1074
        %1211 = vmatpush.msra.mxu0 %v1070
        %1212 = vmatpush.msra.mxu0 %v1066
        %1213 = vmatpush.msra.mxu0 %v1062
        %1214 = vmatpush.msra.mxu0 %v1058
        %1215 = vmatpush.msra.mxu0 %v1054
        %1216 = vmatmul.f32.gmra.mxu0 %v1098
        %v1217 = vpop.f32.mrf.mxu0
        %v1218 = vadd.f32 %v1198, %v1217
        %1219 = vdwg.mxu0
        %1220 = vmatpush.msra.mxu0 %v1051
        %1221 = vmatpush.msra.mxu0 %v1047
        %1222 = vmatpush.msra.mxu0 %v1043
        %1223 = vmatpush.msra.mxu0 %v1039
        %1224 = vmatpush.msra.mxu0 %v1035
        %1225 = vmatpush.msra.mxu0 %v1031
        %1226 = vmatpush.msra.mxu0 %v1027
        %1227 = vmatpush.msra.mxu0 %v1023
        %1228 = vmatpush.msra.mxu0 %v1019
        %1229 = vmatpush.msra.mxu0 %v1015
        %1230 = vmatpush.msra.mxu0 %v1011
        %1231 = vmatpush.msra.mxu0 %v1007
        %1232 = vmatpush.msra.mxu0 %v1003
        %1233 = vmatpush.msra.mxu0 %v999
        %1234 = vmatpush.msra.mxu0 %v995
        %1235 = vmatpush.msra.mxu0 %v991
        %1236 = vmatmul.f32.gmra.mxu0 %v986
        %v1237 = vpop.f32.mrf.mxu0
        %v1238 = vadd.f32 0.0, %v1237
        %1239 = vdwg.mxu0
        %1240 = vmatpush.msra.mxu0 0.0
        %1241 = vmatpush.msra.mxu0 0.0
        %1242 = vmatpush.msra.mxu0 0.0
        %1243 = vmatpush.msra.mxu0 0.0
        %1244 = vmatpush.msra.mxu0 0.0
        %1245 = vmatpush.msra.mxu0 %v1095
        %1246 = vmatpush.msra.mxu0 %v1091
        %1247 = vmatpush.msra.mxu0 %v1087
        %1248 = vmatpush.msra.mxu0 %v1083
        %1249 = vmatpush.msra.mxu0 %v1079
        %1250 = vmatpush.msra.mxu0 %v1075
        %1251 = vmatpush.msra.mxu0 %v1071
        %1252 = vmatpush.msra.mxu0 %v1067
        %1253 = vmatpush.msra.mxu0 %v1063
        %1254 = vmatpush.msra.mxu0 %v1059
        %1255 = vmatpush.msra.mxu0 %v1055
        %1256 = vmatmul.f32.gmra.mxu0 %v1098
        %v1257 = vpop.f32.mrf.mxu0
        %v1258 = vadd.f32 %v1238, %v1257
        %1259 = vdwg.mxu0
        %v1260 = vadd.f32 %v1138, %v1178
        %v1261 = vadd.f32 %v1260, %v1218
        %v1262 = vadd.f32 %v1261, %v1258
        %1263 = vadd.xlane.f32.xlu0 %v1262
        %v1264 = vpop.xlane.xlu0 %1263
        %v1265 = vmul.f32 %v1264, 0.001953125
        %v1266 = vsub.f32 %v1138, %v1265
        %v1267 = vsub.f32 %v1178, %v1265
        %v1268 = vsub.f32 %v1218, %v1265
        %v1269 = vsub.f32 %v1258, %v1265
        %v1270 = vmul.f32 %v1266, %v1266
        %v1271 = vmul.f32 %v1267, %v1267
        %v1272 = vmul.f32 %v1268, %v1268
        %v1273 = vmul.f32 %v1269, %v1269
        %v1274 = vadd.f32 %v1270, %v1271
        %v1275 = vadd.f32 %v1274, %v1272
        %v1276 = vadd.f32 %v1275, %v1273
        %1277 = vadd.xlane.f32.xlu0 %v1276
        %v1278 = vpop.xlane.xlu0 %1277
        %v1279 = vmul.f32 %v1278, 0.001953125
        %v1280 = vadd.f32 %v1279, 1e-05
        %v1281 = vrsqrt.pop %v1280
        %v1282 = vmul.f32 %v1281, %v1280
        %v1283 = vmul.f32 %v1282, %v1281
        %v1284 = vmul.f32 0.5, %v1283
        %v1285 = vsub.f32 1.5, %v1284
        %v1286 = vmul.f32 %v1281, %v1285
        %vm1287 = vweird.f32 %v1280
        %vm1288 = vweird.f32 %v1281
        %vm1289 = vmor %vm1287, %vm1288
        %v1290 = vsel %vm1289, %v1281, %v1286
        %v1291 = vmul.f32 %v1266, %v1290
        %v1292 = vmul.f32 %v1267, %v1290
        %v1293 = vmul.f32 %v1268, %v1290
        %v1294 = vmul.f32 %v1269, %v1290
        %v1295 = vmax.f32 %v1291, 0.0
        %v1296 = vmax.f32 %v1292, 0.0
        %v1297 = vmax.f32 %v1293, 0.0
        %v1298 = vmax.f32 %v1294, 0.0
        %1299 = vrot.lane.b32.xlu0 %v1295, 73
        %v1300 = vpop.permute.xlu0 %1299
        %1301 = vrot.lane.b32.xlu0 %v1296, 73
        %v1302 = vpop.permute.xlu0 %1301
        %1303 = vrot.lane.b32.xlu0 %v1297, 73
        %v1304 = vpop.permute.xlu0 %1303
        %1305 = vrot.lane.b32.xlu0 %v1298, 73
        %v1306 = vpop.permute.xlu0 %1305
        %v1307 = vsel %vm276, %v1304, %v1306
        %v1308 = vsel %vm276, %v1302, %v1304
        %v1309 = vsel %vm276, %v1300, %v1302
        %v1310 = vsel %vm276, %v1306, %v1300
        %v1311 = vld [vmem:[#allocation9] ss:$8 sm:$0xf]
        %v1313 = vperm.slane %v1311, 0
        %v1314 = vperm.slane %v1311, 1
        %v1315 = vperm.slane %v1311, 2
        %v1316 = vperm.slane %v1311, 3
        %v1321 = vmul.f32 %v1310, %v1313
        %v1322 = vmul.f32 %v1309, %v1314
        %v1323 = vmul.f32 %v1308, %v1315
        %v1324 = vmul.f32 %v1307, %v1316
        %1325 = vst [vmem:[#allocation2] sm:$0xff] %v1321
        %1326 = vst [vmem:[#allocation2 + $0x8] sm:$0xff] %v1322
        %1327 = vst [vmem:[#allocation2 + $0x10] sm:$0xff] %v1323
        %1328 = vst [vmem:[#allocation2 + $0x18] sm:$0xff] %v1324
        %1329 = vrot.lane.b32.xlu0 %v1295, 72
        %v1330 = vpop.permute.xlu0 %1329
        %1331 = vrot.lane.b32.xlu0 %v1296, 72
        %v1332 = vpop.permute.xlu0 %1331
        %1333 = vrot.lane.b32.xlu0 %v1297, 72
        %v1334 = vpop.permute.xlu0 %1333
        %1335 = vrot.lane.b32.xlu0 %v1298, 72
        %v1336 = vpop.permute.xlu0 %1335
        %v1337 = vsel %vm307, %v1334, %v1336
        %v1338 = vsel %vm307, %v1332, %v1334
        %v1339 = vsel %vm307, %v1330, %v1332
        %v1340 = vsel %vm307, %v1336, %v1330
        %v1341 = vld [vmem:[%s312] ss:$8 sm:$0xf]
        %v1343 = vperm.slane %v1341, 0
        %v1344 = vperm.slane %v1341, 1
        %v1345 = vperm.slane %v1341, 2
        %v1346 = vperm.slane %v1341, 3
        %v1351 = vmul.f32 %v1340, %v1343
        %v1352 = vmul.f32 %v1339, %v1344
        %v1353 = vmul.f32 %v1338, %v1345
        %v1354 = vmul.f32 %v1337, %v1346
        %1355 = vst [vmem:[#allocation2 + $0x20] sm:$0xff] %v1351
        %1356 = vst [vmem:[#allocation2 + $0x28] sm:$0xff] %v1352
        %1357 = vst [vmem:[#allocation2 + $0x30] sm:$0xff] %v1353
        %1358 = vst [vmem:[#allocation2 + $0x38] sm:$0xff] %v1354
        %1359 = vrot.lane.b32.xlu0 %v1295, 71
        %v1360 = vpop.permute.xlu0 %1359
        %1361 = vrot.lane.b32.xlu0 %v1296, 71
        %v1362 = vpop.permute.xlu0 %1361
        %1363 = vrot.lane.b32.xlu0 %v1297, 71
        %v1364 = vpop.permute.xlu0 %1363
        %1365 = vrot.lane.b32.xlu0 %v1298, 71
        %v1366 = vpop.permute.xlu0 %1365
        %v1367 = vsel %vm339, %v1364, %v1366
        %v1368 = vsel %vm339, %v1362, %v1364
        %v1369 = vsel %vm339, %v1360, %v1362
        %v1370 = vsel %vm339, %v1366, %v1360
        %v1371 = vld [vmem:[%s344] ss:$8 sm:$0xf]
        %v1373 = vperm.slane %v1371, 0
        %v1374 = vperm.slane %v1371, 1
        %v1375 = vperm.slane %v1371, 2
        %v1376 = vperm.slane %v1371, 3
        %v1381 = vmul.f32 %v1370, %v1373
        %v1382 = vmul.f32 %v1369, %v1374
        %v1383 = vmul.f32 %v1368, %v1375
        %v1384 = vmul.f32 %v1367, %v1376
        %1385 = vst [vmem:[#allocation2 + $0x40] sm:$0xff] %v1381
        %1386 = vst [vmem:[#allocation2 + $0x48] sm:$0xff] %v1382
        %1387 = vst [vmem:[#allocation2 + $0x50] sm:$0xff] %v1383
        %1388 = vst [vmem:[#allocation2 + $0x58] sm:$0xff] %v1384
        %1389 = vrot.lane.b32.xlu0 %v1295, 65
        %v1390 = vpop.permute.xlu0 %1389
        %1391 = vrot.lane.b32.xlu0 %v1296, 65
        %v1392 = vpop.permute.xlu0 %1391
        %1393 = vrot.lane.b32.xlu0 %v1297, 65
        %v1394 = vpop.permute.xlu0 %1393
        %1395 = vrot.lane.b32.xlu0 %v1298, 65
        %v1396 = vpop.permute.xlu0 %1395
        %v1397 = vsel %vm371, %v1394, %v1396
        %v1398 = vsel %vm371, %v1392, %v1394
        %v1399 = vsel %vm371, %v1390, %v1392
        %v1400 = vsel %vm371, %v1396, %v1390
        %v1401 = vld [vmem:[%s376] ss:$8 sm:$0xf]
        %v1403 = vperm.slane %v1401, 0
        %v1404 = vperm.slane %v1401, 1
        %v1405 = vperm.slane %v1401, 2
        %v1406 = vperm.slane %v1401, 3
        %v1411 = vmul.f32 %v1400, %v1403
        %v1412 = vmul.f32 %v1399, %v1404
        %v1413 = vmul.f32 %v1398, %v1405
        %v1414 = vmul.f32 %v1397, %v1406
        %1415 = vst [vmem:[#allocation2 + $0x60] sm:$0xff] %v1411
        %1416 = vst [vmem:[#allocation2 + $0x68] sm:$0xff] %v1412
        %1417 = vst [vmem:[#allocation2 + $0x70] sm:$0xff] %v1413
        %1418 = vst [vmem:[#allocation2 + $0x78] sm:$0xff] %v1414
        %1419 = vrot.lane.b32.xlu0 %v1295, 64
        %v1420 = vpop.permute.xlu0 %1419
        %1421 = vrot.lane.b32.xlu0 %v1296, 64
        %v1422 = vpop.permute.xlu0 %1421
        %1423 = vrot.lane.b32.xlu0 %v1297, 64
        %v1424 = vpop.permute.xlu0 %1423
        %1425 = vrot.lane.b32.xlu0 %v1298, 64
        %v1426 = vpop.permute.xlu0 %1425
        %v1427 = vsel %vm403, %v1424, %v1426
        %v1428 = vsel %vm403, %v1422, %v1424
        %v1429 = vsel %vm403, %v1420, %v1422
        %v1430 = vsel %vm403, %v1426, %v1420
        %v1431 = vld [vmem:[%s408] ss:$8 sm:$0xf]
        %v1433 = vperm.slane %v1431, 0
        %v1434 = vperm.slane %v1431, 1
        %v1435 = vperm.slane %v1431, 2
        %v1436 = vperm.slane %v1431, 3
        %v1441 = vmul.f32 %v1430, %v1433
        %v1442 = vmul.f32 %v1429, %v1434
        %v1443 = vmul.f32 %v1428, %v1435
        %v1444 = vmul.f32 %v1427, %v1436
        %1445 = vst [vmem:[#allocation2 + $0x80] sm:$0xff] %v1441
        %1446 = vst [vmem:[#allocation2 + $0x88] sm:$0xff] %v1442
        %1447 = vst [vmem:[#allocation2 + $0x90] sm:$0xff] %v1443
        %1448 = vst [vmem:[#allocation2 + $0x98] sm:$0xff] %v1444
        %1449 = vrot.lane.b32.xlu0 %v1295, 63
        %v1450 = vpop.permute.xlu0 %1449
        %1451 = vrot.lane.b32.xlu0 %v1296, 63
        %v1452 = vpop.permute.xlu0 %1451
        %1453 = vrot.lane.b32.xlu0 %v1297, 63
        %v1454 = vpop.permute.xlu0 %1453
        %1455 = vrot.lane.b32.xlu0 %v1298, 63
        %v1456 = vpop.permute.xlu0 %1455
        %v1457 = vsel %vm435, %v1454, %v1456
        %v1458 = vsel %vm435, %v1452, %v1454
        %v1459 = vsel %vm435, %v1450, %v1452
        %v1460 = vsel %vm435, %v1456, %v1450
        %v1461 = vld [vmem:[%s440] ss:$8 sm:$0xf]
        %v1463 = vperm.slane %v1461, 0
        %v1464 = vperm.slane %v1461, 1
        %v1465 = vperm.slane %v1461, 2
        %v1466 = vperm.slane %v1461, 3
        %v1471 = vmul.f32 %v1460, %v1463
        %v1472 = vmul.f32 %v1459, %v1464
        %v1473 = vmul.f32 %v1458, %v1465
        %v1474 = vmul.f32 %v1457, %v1466
        %1475 = vst [vmem:[#allocation2 + $0xa0] sm:$0xff] %v1471
        %1476 = vst [vmem:[#allocation2 + $0xa8] sm:$0xff] %v1472
        %1477 = vst [vmem:[#allocation2 + $0xb0] sm:$0xff] %v1473
        %1478 = vst [vmem:[#allocation2 + $0xb8] sm:$0xff] %v1474
        %1479 = vrot.lane.b32.xlu0 %v1295, 57
        %v1480 = vpop.permute.xlu0 %1479
        %1481 = vrot.lane.b32.xlu0 %v1296, 57
        %v1482 = vpop.permute.xlu0 %1481
        %1483 = vrot.lane.b32.xlu0 %v1297, 57
        %v1484 = vpop.permute.xlu0 %1483
        %1485 = vrot.lane.b32.xlu0 %v1298, 57
        %v1486 = vpop.permute.xlu0 %1485
        %v1487 = vsel %vm467, %v1484, %v1486
        %v1488 = vsel %vm467, %v1482, %v1484
        %v1489 = vsel %vm467, %v1480, %v1482
        %v1490 = vsel %vm467, %v1486, %v1480
        %v1491 = vld [vmem:[%s472] ss:$8 sm:$0xf]
        %v1493 = vperm.slane %v1491, 0
        %v1494 = vperm.slane %v1491, 1
        %v1495 = vperm.slane %v1491, 2
        %v1496 = vperm.slane %v1491, 3
        %v1501 = vmul.f32 %v1490, %v1493
        %v1502 = vmul.f32 %v1489, %v1494
        %v1503 = vmul.f32 %v1488, %v1495
        %v1504 = vmul.f32 %v1487, %v1496
        %1505 = vst [vmem:[#allocation2 + $0xc0] sm:$0xff] %v1501
        %1506 = vst [vmem:[#allocation2 + $0xc8] sm:$0xff] %v1502
        %1507 = vst [vmem:[#allocation2 + $0xd0] sm:$0xff] %v1503
        %1508 = vst [vmem:[#allocation2 + $0xd8] sm:$0xff] %v1504
        %1509 = vrot.lane.b32.xlu0 %v1295, 56
        %v1510 = vpop.permute.xlu0 %1509
        %1511 = vrot.lane.b32.xlu0 %v1296, 56
        %v1512 = vpop.permute.xlu0 %1511
        %1513 = vrot.lane.b32.xlu0 %v1297, 56
        %v1514 = vpop.permute.xlu0 %1513
        %1515 = vrot.lane.b32.xlu0 %v1298, 56
        %v1516 = vpop.permute.xlu0 %1515
        %v1517 = vsel %vm499, %v1514, %v1516
        %v1518 = vsel %vm499, %v1512, %v1514
        %v1519 = vsel %vm499, %v1510, %v1512
        %v1520 = vsel %vm499, %v1516, %v1510
        %v1521 = vld [vmem:[%s504] ss:$8 sm:$0xf]
        %v1523 = vperm.slane %v1521, 0
        %v1524 = vperm.slane %v1521, 1
        %v1525 = vperm.slane %v1521, 2
        %v1526 = vperm.slane %v1521, 3
        %v1531 = vmul.f32 %v1520, %v1523
        %v1532 = vmul.f32 %v1519, %v1524
        %v1533 = vmul.f32 %v1518, %v1525
        %v1534 = vmul.f32 %v1517, %v1526
        %1535 = vst [vmem:[#allocation2 + $0xe0] sm:$0xff] %v1531
        %1536 = vst [vmem:[#allocation2 + $0xe8] sm:$0xff] %v1532
        %1537 = vst [vmem:[#allocation2 + $0xf0] sm:$0xff] %v1533
        %1538 = vst [vmem:[#allocation2 + $0xf8] sm:$0xff] %v1534
        %1539 = vrot.lane.b32.xlu0 %v1295, 55
        %v1540 = vpop.permute.xlu0 %1539
        %1541 = vrot.lane.b32.xlu0 %v1296, 55
        %v1542 = vpop.permute.xlu0 %1541
        %1543 = vrot.lane.b32.xlu0 %v1297, 55
        %v1544 = vpop.permute.xlu0 %1543
        %1545 = vrot.lane.b32.xlu0 %v1298, 55
        %v1546 = vpop.permute.xlu0 %1545
        %v1547 = vsel %vm531, %v1544, %v1546
        %v1548 = vsel %vm531, %v1542, %v1544
        %v1549 = vsel %vm531, %v1540, %v1542
        %v1550 = vsel %vm531, %v1546, %v1540
        %v1551 = vld [vmem:[%s536] ss:$8 sm:$0xf]
        %v1553 = vperm.slane %v1551, 0
        %v1554 = vperm.slane %v1551, 1
        %v1555 = vperm.slane %v1551, 2
        %v1556 = vperm.slane %v1551, 3
        %v1561 = vmul.f32 %v1550, %v1553
        %v1562 = vmul.f32 %v1549, %v1554
        %v1563 = vmul.f32 %v1548, %v1555
        %v1564 = vmul.f32 %v1547, %v1556
        %1565 = vst [vmem:[#allocation2 + $0x100] sm:$0xff] %v1561
        %1566 = vst [vmem:[#allocation2 + $0x108] sm:$0xff] %v1562
        %1567 = vst [vmem:[#allocation2 + $0x110] sm:$0xff] %v1563
        %1568 = vst [vmem:[#allocation2 + $0x118] sm:$0xff] %v1564
        %1569 = vrot.lane.b32.xlu0 %v1295, 9
        %v1570 = vpop.permute.xlu0 %1569
        %1571 = vrot.lane.b32.xlu0 %v1296, 9
        %v1572 = vpop.permute.xlu0 %1571
        %1573 = vrot.lane.b32.xlu0 %v1297, 9
        %v1574 = vpop.permute.xlu0 %1573
        %1575 = vrot.lane.b32.xlu0 %v1298, 9
        %v1576 = vpop.permute.xlu0 %1575
        %v1577 = vsel %vm563, %v1574, %v1576
        %v1578 = vsel %vm563, %v1572, %v1574
        %v1579 = vsel %vm563, %v1570, %v1572
        %v1580 = vsel %vm563, %v1576, %v1570
        %v1581 = vld [vmem:[%s568] ss:$8 sm:$0xf]
        %v1583 = vperm.slane %v1581, 0
        %v1584 = vperm.slane %v1581, 1
        %v1585 = vperm.slane %v1581, 2
        %v1586 = vperm.slane %v1581, 3
        %v1591 = vmul.f32 %v1580, %v1583
        %v1592 = vmul.f32 %v1579, %v1584
        %v1593 = vmul.f32 %v1578, %v1585
        %v1594 = vmul.f32 %v1577, %v1586
        %1595 = vst [vmem:[#allocation2 + $0x120] sm:$0xff] %v1591
        %1596 = vst [vmem:[#allocation2 + $0x128] sm:$0xff] %v1592
        %1597 = vst [vmem:[#allocation2 + $0x130] sm:$0xff] %v1593
        %1598 = vst [vmem:[#allocation2 + $0x138] sm:$0xff] %v1594
        %1599 = vrot.lane.b32.xlu0 %v1295, 8
        %v1600 = vpop.permute.xlu0 %1599
        %1601 = vrot.lane.b32.xlu0 %v1296, 8
        %v1602 = vpop.permute.xlu0 %1601
        %1603 = vrot.lane.b32.xlu0 %v1297, 8
        %v1604 = vpop.permute.xlu0 %1603
        %1605 = vrot.lane.b32.xlu0 %v1298, 8
        %v1606 = vpop.permute.xlu0 %1605
        %v1607 = vsel %vm595, %v1604, %v1606
        %v1608 = vsel %vm595, %v1602, %v1604
        %v1609 = vsel %vm595, %v1600, %v1602
        %v1610 = vsel %vm595, %v1606, %v1600
        %v1611 = vld [vmem:[%s600] ss:$8 sm:$0xf]
        %v1613 = vperm.slane %v1611, 0
        %v1614 = vperm.slane %v1611, 1
        %v1615 = vperm.slane %v1611, 2
        %v1616 = vperm.slane %v1611, 3
        %v1621 = vmul.f32 %v1610, %v1613
        %v1622 = vmul.f32 %v1609, %v1614
        %v1623 = vmul.f32 %v1608, %v1615
        %v1624 = vmul.f32 %v1607, %v1616
        %1625 = vst [vmem:[#allocation2 + $0x140] sm:$0xff] %v1621
        %1626 = vst [vmem:[#allocation2 + $0x148] sm:$0xff] %v1622
        %1627 = vst [vmem:[#allocation2 + $0x150] sm:$0xff] %v1623
        %1628 = vst [vmem:[#allocation2 + $0x158] sm:$0xff] %v1624
        %1629 = vrot.lane.b32.xlu0 %v1295, 7
        %v1630 = vpop.permute.xlu0 %1629
        %1631 = vrot.lane.b32.xlu0 %v1296, 7
        %v1632 = vpop.permute.xlu0 %1631
        %1633 = vrot.lane.b32.xlu0 %v1297, 7
        %v1634 = vpop.permute.xlu0 %1633
        %1635 = vrot.lane.b32.xlu0 %v1298, 7
        %v1636 = vpop.permute.xlu0 %1635
        %v1637 = vsel %vm627, %v1634, %v1636
        %v1638 = vsel %vm627, %v1632, %v1634
        %v1639 = vsel %vm627, %v1630, %v1632
        %v1640 = vsel %vm627, %v1636, %v1630
        %v1641 = vld [vmem:[%s632] ss:$8 sm:$0xf]
        %v1643 = vperm.slane %v1641, 0
        %v1644 = vperm.slane %v1641, 1
        %v1645 = vperm.slane %v1641, 2
        %v1646 = vperm.slane %v1641, 3
        %v1651 = vmul.f32 %v1640, %v1643
        %v1652 = vmul.f32 %v1639, %v1644
        %v1653 = vmul.f32 %v1638, %v1645
        %v1654 = vmul.f32 %v1637, %v1646
        %1655 = vst [vmem:[#allocation2 + $0x160] sm:$0xff] %v1651
        %1656 = vst [vmem:[#allocation2 + $0x168] sm:$0xff] %v1652
        %1657 = vst [vmem:[#allocation2 + $0x170] sm:$0xff] %v1653
        %1658 = vst [vmem:[#allocation2 + $0x178] sm:$0xff] %v1654
        %1659 = vrot.lane.b32.xlu0 %v1295, 1
        %v1660 = vpop.permute.xlu0 %1659
        %1661 = vrot.lane.b32.xlu0 %v1296, 1
        %v1662 = vpop.permute.xlu0 %1661
        %1663 = vrot.lane.b32.xlu0 %v1297, 1
        %v1664 = vpop.permute.xlu0 %1663
        %1665 = vrot.lane.b32.xlu0 %v1298, 1
        %v1666 = vpop.permute.xlu0 %1665
        %v1667 = vsel %vm659, %v1664, %v1666
        %v1668 = vsel %vm659, %v1662, %v1664
        %v1669 = vsel %vm659, %v1660, %v1662
        %v1670 = vsel %vm659, %v1666, %v1660
        %v1671 = vld [vmem:[%s664] ss:$8 sm:$0xf]
        %v1673 = vperm.slane %v1671, 0
        %v1674 = vperm.slane %v1671, 1
        %v1675 = vperm.slane %v1671, 2
        %v1676 = vperm.slane %v1671, 3
        %v1681 = vmul.f32 %v1670, %v1673
        %v1682 = vmul.f32 %v1669, %v1674
        %v1683 = vmul.f32 %v1668, %v1675
        %v1684 = vmul.f32 %v1667, %v1676
        %1685 = vst [vmem:[#allocation2 + $0x180] sm:$0xff] %v1681
        %1686 = vst [vmem:[#allocation2 + $0x188] sm:$0xff] %v1682
        %1687 = vst [vmem:[#allocation2 + $0x190] sm:$0xff] %v1683
        %1688 = vst [vmem:[#allocation2 + $0x198] sm:$0xff] %v1684
        %1689 = vst [vmem:[#allocation2 + $0x1a0] sm:$0xff] %v1295
        %1690 = vst [vmem:[#allocation2 + $0x1a8] sm:$0xff] %v1296
        %1691 = vst [vmem:[#allocation2 + $0x1b0] sm:$0xff] %v1297
        %1692 = vst [vmem:[#allocation2 + $0x1b8] sm:$0xff] %v1298
        %1693 = vrot.lane.b32.xlu0 %v1295, 127
        %v1694 = vpop.permute.xlu0 %1693
        %1695 = vrot.lane.b32.xlu0 %v1296, 127
        %v1696 = vpop.permute.xlu0 %1695
        %1697 = vrot.lane.b32.xlu0 %v1297, 127
        %v1698 = vpop.permute.xlu0 %1697
        %1699 = vrot.lane.b32.xlu0 %v1298, 127
        %v1700 = vpop.permute.xlu0 %1699
        %v1701 = vsel %vm695, %v1698, %v1700
        %v1702 = vsel %vm695, %v1696, %v1698
        %v1703 = vsel %vm695, %v1694, %v1696
        %v1704 = vsel %vm695, %v1700, %v1694
        %v1705 = vld [vmem:[%s700] ss:$8 sm:$0xf]
        %v1707 = vperm.slane %v1705, 0
        %v1708 = vperm.slane %v1705, 1
        %v1709 = vperm.slane %v1705, 2
        %v1710 = vperm.slane %v1705, 3
        %v1715 = vmul.f32 %v1703, %v1707
        %v1716 = vmul.f32 %v1702, %v1708
        %v1717 = vmul.f32 %v1701, %v1709
        %v1718 = vmul.f32 %v1704, %v1710
        %1719 = vst [vmem:[#allocation2 + $0x1c0] sm:$0xff] %v1715
        %1720 = vst [vmem:[#allocation2 + $0x1c8] sm:$0xff] %v1716
        %1721 = vst [vmem:[#allocation2 + $0x1d0] sm:$0xff] %v1717
        %1722 = vst [vmem:[#allocation2 + $0x1d8] sm:$0xff] %v1718
        %1723 = vrot.lane.b32.xlu0 %v1295, 121
        %v1724 = vpop.permute.xlu0 %1723
        %1725 = vrot.lane.b32.xlu0 %v1296, 121
        %v1726 = vpop.permute.xlu0 %1725
        %1727 = vrot.lane.b32.xlu0 %v1297, 121
        %v1728 = vpop.permute.xlu0 %1727
        %1729 = vrot.lane.b32.xlu0 %v1298, 121
        %v1730 = vpop.permute.xlu0 %1729
        %v1731 = vsel %vm727, %v1728, %v1730
        %v1732 = vsel %vm727, %v1726, %v1728
        %v1733 = vsel %vm727, %v1724, %v1726
        %v1734 = vsel %vm727, %v1730, %v1724
        %v1735 = vld [vmem:[%s732] ss:$8 sm:$0xf]
        %v1737 = vperm.slane %v1735, 0
        %v1738 = vperm.slane %v1735, 1
        %v1739 = vperm.slane %v1735, 2
        %v1740 = vperm.slane %v1735, 3
        %v1745 = vmul.f32 %v1733, %v1737
        %v1746 = vmul.f32 %v1732, %v1738
        %v1747 = vmul.f32 %v1731, %v1739
        %v1748 = vmul.f32 %v1734, %v1740
        %1749 = vst [vmem:[#allocation2 + $0x1e0] sm:$0xff] %v1745
        %1750 = vst [vmem:[#allocation2 + $0x1e8] sm:$0xff] %v1746
        %1751 = vst [vmem:[#allocation2 + $0x1f0] sm:$0xff] %v1747
        %1752 = vst [vmem:[#allocation2 + $0x1f8] sm:$0xff] %v1748
        %1753 = vrot.lane.b32.xlu0 %v1295, 120
        %v1754 = vpop.permute.xlu0 %1753
        %1755 = vrot.lane.b32.xlu0 %v1296, 120
        %v1756 = vpop.permute.xlu0 %1755
        %1757 = vrot.lane.b32.xlu0 %v1297, 120
        %v1758 = vpop.permute.xlu0 %1757
        %1759 = vrot.lane.b32.xlu0 %v1298, 120
        %v1760 = vpop.permute.xlu0 %1759
        %v1761 = vsel %vm759, %v1758, %v1760
        %v1762 = vsel %vm759, %v1756, %v1758
        %v1763 = vsel %vm759, %v1754, %v1756
        %v1764 = vsel %vm759, %v1760, %v1754
        %v1765 = vld [vmem:[%s764] ss:$8 sm:$0xf]
        %v1767 = vperm.slane %v1765, 0
        %v1768 = vperm.slane %v1765, 1
        %v1769 = vperm.slane %v1765, 2
        %v1770 = vperm.slane %v1765, 3
        %v1775 = vmul.f32 %v1763, %v1767
        %v1776 = vmul.f32 %v1762, %v1768
        %v1777 = vmul.f32 %v1761, %v1769
        %v1778 = vmul.f32 %v1764, %v1770
        %1779 = vst [vmem:[#allocation2 + $0x200] sm:$0xff] %v1775
        %1780 = vst [vmem:[#allocation2 + $0x208] sm:$0xff] %v1776
        %1781 = vst [vmem:[#allocation2 + $0x210] sm:$0xff] %v1777
        %1782 = vst [vmem:[#allocation2 + $0x218] sm:$0xff] %v1778
        %1783 = vrot.lane.b32.xlu0 %v1295, 119
        %v1784 = vpop.permute.xlu0 %1783
        %1785 = vrot.lane.b32.xlu0 %v1296, 119
        %v1786 = vpop.permute.xlu0 %1785
        %1787 = vrot.lane.b32.xlu0 %v1297, 119
        %v1788 = vpop.permute.xlu0 %1787
        %1789 = vrot.lane.b32.xlu0 %v1298, 119
        %v1790 = vpop.permute.xlu0 %1789
        %v1791 = vsel %vm791, %v1788, %v1790
        %v1792 = vsel %vm791, %v1786, %v1788
        %v1793 = vsel %vm791, %v1784, %v1786
        %v1794 = vsel %vm791, %v1790, %v1784
        %v1795 = vld [vmem:[%s796] ss:$8 sm:$0xf]
        %v1797 = vperm.slane %v1795, 0
        %v1798 = vperm.slane %v1795, 1
        %v1799 = vperm.slane %v1795, 2
        %v1800 = vperm.slane %v1795, 3
        %v1805 = vmul.f32 %v1793, %v1797
        %v1806 = vmul.f32 %v1792, %v1798
        %v1807 = vmul.f32 %v1791, %v1799
        %v1808 = vmul.f32 %v1794, %v1800
        %1809 = vst [vmem:[#allocation2 + $0x220] sm:$0xff] %v1805
        %1810 = vst [vmem:[#allocation2 + $0x228] sm:$0xff] %v1806
        %1811 = vst [vmem:[#allocation2 + $0x230] sm:$0xff] %v1807
        %1812 = vst [vmem:[#allocation2 + $0x238] sm:$0xff] %v1808
        %v1813 = vld [vmem:[%s815] ss:$8 sm:$0xf]
        %v1815 = vperm.slane %v1813, 0
        %v1816 = vperm.slane %v1813, 1
        %v1817 = vperm.slane %v1813, 2
        %v1818 = vperm.slane %v1813, 3
        %v1823 = vmul.f32 %v1309, %v1815
        %v1824 = vmul.f32 %v1308, %v1816
        %v1825 = vmul.f32 %v1307, %v1817
        %v1826 = vmul.f32 %v1310, %v1818
        %1827 = vst [vmem:[#allocation2 + $0x240] sm:$0xff] %v1823
        %1828 = vst [vmem:[#allocation2 + $0x248] sm:$0xff] %v1824
        %1829 = vst [vmem:[#allocation2 + $0x250] sm:$0xff] %v1825
        %1830 = vst [vmem:[#allocation2 + $0x258] sm:$0xff] %v1826
        %v1831 = vld [vmem:[%s834] ss:$8 sm:$0xf]
        %v1833 = vperm.slane %v1831, 0
        %v1834 = vperm.slane %v1831, 1
        %v1835 = vperm.slane %v1831, 2
        %v1836 = vperm.slane %v1831, 3
        %v1841 = vmul.f32 %v1339, %v1833
        %v1842 = vmul.f32 %v1338, %v1834
        %v1843 = vmul.f32 %v1337, %v1835
        %v1844 = vmul.f32 %v1340, %v1836
        %1845 = vst [vmem:[#allocation2 + $0x260] sm:$0xff] %v1841
        %1846 = vst [vmem:[#allocation2 + $0x268] sm:$0xff] %v1842
        %1847 = vst [vmem:[#allocation2 + $0x270] sm:$0xff] %v1843
        %1848 = vst [vmem:[#allocation2 + $0x278] sm:$0xff] %v1844
        %v1849 = vld [vmem:[%s853] ss:$8 sm:$0xf]
        %v1851 = vperm.slane %v1849, 0
        %v1852 = vperm.slane %v1849, 1
        %v1853 = vperm.slane %v1849, 2
        %v1854 = vperm.slane %v1849, 3
        %v1859 = vmul.f32 %v1369, %v1851
        %v1860 = vmul.f32 %v1368, %v1852
        %v1861 = vmul.f32 %v1367, %v1853
        %v1862 = vmul.f32 %v1370, %v1854
        %1863 = vst [vmem:[#allocation2 + $0x280] sm:$0xff] %v1859
        %1864 = vst [vmem:[#allocation2 + $0x288] sm:$0xff] %v1860
        %1865 = vst [vmem:[#allocation2 + $0x290] sm:$0xff] %v1861
        %1866 = vst [vmem:[#allocation2 + $0x298] sm:$0xff] %v1862
        %v1867 = vld [vmem:[%s872] ss:$8 sm:$0xf]
        %v1869 = vperm.slane %v1867, 0
        %v1870 = vperm.slane %v1867, 1
        %v1871 = vperm.slane %v1867, 2
        %v1872 = vperm.slane %v1867, 3
        %v1877 = vmul.f32 %v1399, %v1869
        %v1878 = vmul.f32 %v1398, %v1870
        %v1879 = vmul.f32 %v1397, %v1871
        %v1880 = vmul.f32 %v1400, %v1872
        %1881 = vst [vmem:[#allocation2 + $0x2a0] sm:$0xff] %v1877
        %1882 = vst [vmem:[#allocation2 + $0x2a8] sm:$0xff] %v1878
        %1883 = vst [vmem:[#allocation2 + $0x2b0] sm:$0xff] %v1879
        %1884 = vst [vmem:[#allocation2 + $0x2b8] sm:$0xff] %v1880
        %v1885 = vld [vmem:[%s891] ss:$8 sm:$0xf]
        %v1887 = vperm.slane %v1885, 0
        %v1888 = vperm.slane %v1885, 1
        %v1889 = vperm.slane %v1885, 2
        %v1890 = vperm.slane %v1885, 3
        %v1895 = vmul.f32 %v1429, %v1887
        %v1896 = vmul.f32 %v1428, %v1888
        %v1897 = vmul.f32 %v1427, %v1889
        %v1898 = vmul.f32 %v1430, %v1890
        %1899 = vst [vmem:[#allocation2 + $0x2c0] sm:$0xff] %v1895
        %1900 = vst [vmem:[#allocation2 + $0x2c8] sm:$0xff] %v1896
        %1901 = vst [vmem:[#allocation2 + $0x2d0] sm:$0xff] %v1897
        %1902 = vst [vmem:[#allocation2 + $0x2d8] sm:$0xff] %v1898
        %v1903 = vld [vmem:[%s910] ss:$8 sm:$0xf]
        %v1905 = vperm.slane %v1903, 0
        %v1906 = vperm.slane %v1903, 1
        %v1907 = vperm.slane %v1903, 2
        %v1908 = vperm.slane %v1903, 3
        %v1913 = vmul.f32 %v1459, %v1905
        %v1914 = vmul.f32 %v1458, %v1906
        %v1915 = vmul.f32 %v1457, %v1907
        %v1916 = vmul.f32 %v1460, %v1908
        %1917 = vst [vmem:[#allocation2 + $0x2e0] sm:$0xff] %v1913
        %1918 = vst [vmem:[#allocation2 + $0x2e8] sm:$0xff] %v1914
        %1919 = vst [vmem:[#allocation2 + $0x2f0] sm:$0xff] %v1915
        %1920 = vst [vmem:[#allocation2 + $0x2f8] sm:$0xff] %v1916
        %v1921 = vld [vmem:[%s929] ss:$8 sm:$0xf]
        %v1923 = vperm.slane %v1921, 0
        %v1924 = vperm.slane %v1921, 1
        %v1925 = vperm.slane %v1921, 2
        %v1926 = vperm.slane %v1921, 3
        %v1931 = vmul.f32 %v1489, %v1923
        %v1932 = vmul.f32 %v1488, %v1924
        %v1933 = vmul.f32 %v1487, %v1925
        %v1934 = vmul.f32 %v1490, %v1926
        %1935 = vst [vmem:[#allocation2 + $0x300] sm:$0xff] %v1931
        %1936 = vst [vmem:[#allocation2 + $0x308] sm:$0xff] %v1932
        %1937 = vst [vmem:[#allocation2 + $0x310] sm:$0xff] %v1933
        %1938 = vst [vmem:[#allocation2 + $0x318] sm:$0xff] %v1934
        %v1939 = vld [vmem:[%s948] ss:$8 sm:$0xf]
        %v1941 = vperm.slane %v1939, 0
        %v1942 = vperm.slane %v1939, 1
        %v1943 = vperm.slane %v1939, 2
        %v1944 = vperm.slane %v1939, 3
        %v1949 = vmul.f32 %v1519, %v1941
        %v1950 = vmul.f32 %v1518, %v1942
        %v1951 = vmul.f32 %v1517, %v1943
        %v1952 = vmul.f32 %v1520, %v1944
        %1953 = vst [vmem:[#allocation2 + $0x320] sm:$0xff] %v1949
        %1954 = vst [vmem:[#allocation2 + $0x328] sm:$0xff] %v1950
        %1955 = vst [vmem:[#allocation2 + $0x330] sm:$0xff] %v1951
        %1956 = vst [vmem:[#allocation2 + $0x338] sm:$0xff] %v1952
        %v1957 = vld [vmem:[%s967] ss:$8 sm:$0xf]
        %v1959 = vperm.slane %v1957, 0
        %v1960 = vperm.slane %v1957, 1
        %v1961 = vperm.slane %v1957, 2
        %v1962 = vperm.slane %v1957, 3
        %v1967 = vmul.f32 %v1549, %v1959
        %v1968 = vmul.f32 %v1548, %v1960
        %v1969 = vmul.f32 %v1547, %v1961
        %v1970 = vmul.f32 %v1550, %v1962
        %1971 = vst [vmem:[#allocation2 + $0x340] sm:$0xff] %v1967
        %1972 = vst [vmem:[#allocation2 + $0x348] sm:$0xff] %v1968
        %1973 = vst [vmem:[#allocation2 + $0x350] sm:$0xff] %v1969
        %1974 = vst [vmem:[#allocation2 + $0x358] sm:$0xff] %v1970
        %v1975 = vld [vmem:[#allocation8] sm:$0xff]
        %v1976 = vld [vmem:[#allocation2] sm:$0xff]
        %v1977 = vld [vmem:[#allocation2 + $0x8] sm:$0xff]
        %v1978 = vld [vmem:[#allocation2 + $0x10] sm:$0xff]
        %v1979 = vld [vmem:[#allocation2 + $0x18] sm:$0xff]
        %v1980 = vld [vmem:[#allocation2 + $0x20] sm:$0xff]
        %v1981 = vld [vmem:[#allocation2 + $0x28] sm:$0xff]
        %v1982 = vld [vmem:[#allocation2 + $0x30] sm:$0xff]
        %v1983 = vld [vmem:[#allocation2 + $0x38] sm:$0xff]
        %v1984 = vld [vmem:[#allocation2 + $0x40] sm:$0xff]
        %v1985 = vld [vmem:[#allocation2 + $0x48] sm:$0xff]
        %v1986 = vld [vmem:[#allocation2 + $0x50] sm:$0xff]
        %v1987 = vld [vmem:[#allocation2 + $0x58] sm:$0xff]
        %v1988 = vld [vmem:[#allocation2 + $0x60] sm:$0xff]
        %v1989 = vld [vmem:[#allocation2 + $0x68] sm:$0xff]
        %v1990 = vld [vmem:[#allocation2 + $0x70] sm:$0xff]
        %v1991 = vld [vmem:[#allocation2 + $0x78] sm:$0xff]
        %v1992 = vld [vmem:[#allocation2 + $0x80] sm:$0xff]
        %v1993 = vld [vmem:[#allocation2 + $0x88] sm:$0xff]
        %v1994 = vld [vmem:[#allocation2 + $0x90] sm:$0xff]
        %v1995 = vld [vmem:[#allocation2 + $0x98] sm:$0xff]
        %v1996 = vld [vmem:[#allocation2 + $0xa0] sm:$0xff]
        %v1997 = vld [vmem:[#allocation2 + $0xa8] sm:$0xff]
        %v1998 = vld [vmem:[#allocation2 + $0xb0] sm:$0xff]
        %v1999 = vld [vmem:[#allocation2 + $0xb8] sm:$0xff]
        %v2000 = vld [vmem:[#allocation2 + $0xc0] sm:$0xff]
        %v2001 = vld [vmem:[#allocation2 + $0xc8] sm:$0xff]
        %v2002 = vld [vmem:[#allocation2 + $0xd0] sm:$0xff]
        %v2003 = vld [vmem:[#allocation2 + $0xd8] sm:$0xff]
        %v2004 = vld [vmem:[#allocation2 + $0xe0] sm:$0xff]
        %v2005 = vld [vmem:[#allocation2 + $0xe8] sm:$0xff]
        %v2006 = vld [vmem:[#allocation2 + $0xf0] sm:$0xff]
        %v2007 = vld [vmem:[#allocation2 + $0xf8] sm:$0xff]
        %v2008 = vld [vmem:[#allocation2 + $0x100] sm:$0xff]
        %v2009 = vld [vmem:[#allocation2 + $0x108] sm:$0xff]
        %v2010 = vld [vmem:[#allocation2 + $0x110] sm:$0xff]
        %v2011 = vld [vmem:[#allocation2 + $0x118] sm:$0xff]
        %v2012 = vld [vmem:[#allocation2 + $0x120] sm:$0xff]
        %v2013 = vld [vmem:[#allocation2 + $0x128] sm:$0xff]
        %v2014 = vld [vmem:[#allocation2 + $0x130] sm:$0xff]
        %v2015 = vld [vmem:[#allocation2 + $0x138] sm:$0xff]
        %v2016 = vld [vmem:[#allocation2 + $0x140] sm:$0xff]
        %v2017 = vld [vmem:[#allocation2 + $0x148] sm:$0xff]
        %v2018 = vld [vmem:[#allocation2 + $0x150] sm:$0xff]
        %v2019 = vld [vmem:[#allocation2 + $0x158] sm:$0xff]
        %v2020 = vld [vmem:[#allocation2 + $0x160] sm:$0xff]
        %v2021 = vld [vmem:[#allocation2 + $0x168] sm:$0xff]
        %v2022 = vld [vmem:[#allocation2 + $0x170] sm:$0xff]
        %v2023 = vld [vmem:[#allocation2 + $0x178] sm:$0xff]
        %v2024 = vld [vmem:[#allocation2 + $0x180] sm:$0xff]
        %v2025 = vld [vmem:[#allocation2 + $0x188] sm:$0xff]
        %v2026 = vld [vmem:[#allocation2 + $0x190] sm:$0xff]
        %v2027 = vld [vmem:[#allocation2 + $0x198] sm:$0xff]
        %v2028 = vld [vmem:[#allocation2 + $0x1a0] sm:$0xff]
        %v2029 = vld [vmem:[#allocation2 + $0x1a8] sm:$0xff]
        %v2030 = vld [vmem:[#allocation2 + $0x1b0] sm:$0xff]
        %v2031 = vld [vmem:[#allocation2 + $0x1b8] sm:$0xff]
        %v2032 = vld [vmem:[#allocation2 + $0x1c0] sm:$0xff]
        %v2033 = vld [vmem:[#allocation2 + $0x1c8] sm:$0xff]
        %v2034 = vld [vmem:[#allocation2 + $0x1d0] sm:$0xff]
        %v2035 = vld [vmem:[#allocation2 + $0x1d8] sm:$0xff]
        %v2036 = vld [vmem:[#allocation2 + $0x1e0] sm:$0xff]
        %v2037 = vld [vmem:[#allocation2 + $0x1e8] sm:$0xff]
        %v2038 = vld [vmem:[#allocation2 + $0x1f0] sm:$0xff]
        %v2039 = vld [vmem:[#allocation2 + $0x1f8] sm:$0xff]
        %v2040 = vld [vmem:[#allocation2 + $0x200] sm:$0xff]
        %v2041 = vld [vmem:[#allocation2 + $0x208] sm:$0xff]
        %v2042 = vld [vmem:[#allocation2 + $0x210] sm:$0xff]
        %v2043 = vld [vmem:[#allocation2 + $0x218] sm:$0xff]
        %v2044 = vld [vmem:[#allocation2 + $0x220] sm:$0xff]
        %v2045 = vld [vmem:[#allocation2 + $0x228] sm:$0xff]
        %v2046 = vld [vmem:[#allocation2 + $0x230] sm:$0xff]
        %v2047 = vld [vmem:[#allocation2 + $0x238] sm:$0xff]
        %v2048 = vld [vmem:[#allocation2 + $0x240] sm:$0xff]
        %v2049 = vld [vmem:[#allocation2 + $0x248] sm:$0xff]
        %v2050 = vld [vmem:[#allocation2 + $0x250] sm:$0xff]
        %v2051 = vld [vmem:[#allocation2 + $0x258] sm:$0xff]
        %v2052 = vld [vmem:[#allocation2 + $0x260] sm:$0xff]
        %v2053 = vld [vmem:[#allocation2 + $0x268] sm:$0xff]
        %v2054 = vld [vmem:[#allocation2 + $0x270] sm:$0xff]
        %v2055 = vld [vmem:[#allocation2 + $0x278] sm:$0xff]
        %v2056 = vld [vmem:[#allocation2 + $0x280] sm:$0xff]
        %v2057 = vld [vmem:[#allocation2 + $0x288] sm:$0xff]
        %v2058 = vld [vmem:[#allocation2 + $0x290] sm:$0xff]
        %v2059 = vld [vmem:[#allocation2 + $0x298] sm:$0xff]
        %v2060 = vld [vmem:[#allocation2 + $0x2a0] sm:$0xff]
        %v2061 = vld [vmem:[#allocation2 + $0x2a8] sm:$0xff]
        %v2062 = vld [vmem:[#allocation2 + $0x2b0] sm:$0xff]
        %v2063 = vld [vmem:[#allocation2 + $0x2b8] sm:$0xff]
        %v2064 = vld [vmem:[#allocation2 + $0x2c0] sm:$0xff]
        %v2065 = vld [vmem:[#allocation2 + $0x2c8] sm:$0xff]
        %v2066 = vld [vmem:[#allocation2 + $0x2d0] sm:$0xff]
        %v2067 = vld [vmem:[#allocation2 + $0x2d8] sm:$0xff]
        %v2068 = vld [vmem:[#allocation2 + $0x2e0] sm:$0xff]
        %v2069 = vld [vmem:[#allocation2 + $0x2e8] sm:$0xff]
        %v2070 = vld [vmem:[#allocation2 + $0x2f0] sm:$0xff]
        %v2071 = vld [vmem:[#allocation2 + $0x2f8] sm:$0xff]
        %v2072 = vld [vmem:[#allocation2 + $0x300] sm:$0xff]
        %v2073 = vld [vmem:[#allocation2 + $0x308] sm:$0xff]
        %v2074 = vld [vmem:[#allocation2 + $0x310] sm:$0xff]
        %v2075 = vld [vmem:[#allocation2 + $0x318] sm:$0xff]
        %v2076 = vld [vmem:[#allocation2 + $0x320] sm:$0xff]
        %v2077 = vld [vmem:[#allocation2 + $0x328] sm:$0xff]
        %v2078 = vld [vmem:[#allocation2 + $0x330] sm:$0xff]
        %v2079 = vld [vmem:[#allocation2 + $0x338] sm:$0xff]
        %v2080 = vld [vmem:[#allocation2 + $0x340] sm:$0xff]
        %v2081 = vld [vmem:[#allocation2 + $0x348] sm:$0xff]
        %v2082 = vld [vmem:[#allocation2 + $0x350] sm:$0xff]
        %v2083 = vld [vmem:[#allocation2 + $0x358] sm:$0xff]
        %2085 = vst [vmem:[#allocation1] ss:$2 sm:$0xff] %v1975
        %v2086 = vld.sshfl [vmem:[#allocation1] sm:$0xff pattern:$0x75316420]
        %v2087 = vld.sshfl [vmem:[#allocation1 + $0x8] sm:$0xff pattern:$0x75316420]
        %v2089 = vsel %vm1096, %v2087, 0
        %2091 = vmatpush.msra.mxu0 %v2036
        %2092 = vmatpush.msra.mxu0 %v2032
        %2093 = vmatpush.msra.mxu0 %v2028
        %2094 = vmatpush.msra.mxu0 %v2024
        %2095 = vmatpush.msra.mxu0 %v2020
        %2096 = vmatpush.msra.mxu0 %v2016
        %2097 = vmatpush.msra.mxu0 %v2012
        %2098 = vmatpush.msra.mxu0 %v2008
        %2099 = vmatpush.msra.mxu0 %v2004
        %2100 = vmatpush.msra.mxu0 %v2000
        %2101 = vmatpush.msra.mxu0 %v1996
        %2102 = vmatpush.msra.mxu0 %v1992
        %2103 = vmatpush.msra.mxu0 %v1988
        %2104 = vmatpush.msra.mxu0 %v1984
        %2105 = vmatpush.msra.mxu0 %v1980
        %2106 = vmatpush.msra.mxu0 %v1976
        %2107 = vmatmul.f32.gmra.mxu0 %v2086
        %v2108 = vpop.f32.mrf.mxu0
        %v2109 = vadd.f32 0.0, %v2108
        %2110 = vdwg.mxu0
        %2111 = vmatpush.msra.mxu0 0.0
        %2112 = vmatpush.msra.mxu0 0.0
        %2113 = vmatpush.msra.mxu0 0.0
        %2114 = vmatpush.msra.mxu0 0.0
        %2115 = vmatpush.msra.mxu0 0.0
        %2116 = vmatpush.msra.mxu0 %v2080
        %2117 = vmatpush.msra.mxu0 %v2076
        %2118 = vmatpush.msra.mxu0 %v2072
        %2119 = vmatpush.msra.mxu0 %v2068
        %2120 = vmatpush.msra.mxu0 %v2064
        %2121 = vmatpush.msra.mxu0 %v2060
        %2122 = vmatpush.msra.mxu0 %v2056
        %2123 = vmatpush.msra.mxu0 %v2052
        %2124 = vmatpush.msra.mxu0 %v2048
        %2125 = vmatpush.msra.mxu0 %v2044
        %2126 = vmatpush.msra.mxu0 %v2040
        %2127 = vmatmul.f32.gmra.mxu0 %v2089
        %v2128 = vpop.f32.mrf.mxu0
        %v2129 = vadd.f32 %v2109, %v2128
        %2130 = vdwg.mxu0
        %2131 = vmatpush.msra.mxu0 %v2037
        %2132 = vmatpush.msra.mxu0 %v2033
        %2133 = vmatpush.msra.mxu0 %v2029
        %2134 = vmatpush.msra.mxu0 %v2025
        %2135 = vmatpush.msra.mxu0 %v2021
        %2136 = vmatpush.msra.mxu0 %v2017
        %2137 = vmatpush.msra.mxu0 %v2013
        %2138 = vmatpush.msra.mxu0 %v2009
        %2139 = vmatpush.msra.mxu0 %v2005
        %2140 = vmatpush.msra.mxu0 %v2001
        %2141 = vmatpush.msra.mxu0 %v1997
        %2142 = vmatpush.msra.mxu0 %v1993
        %2143 = vmatpush.msra.mxu0 %v1989
        %2144 = vmatpush.msra.mxu0 %v1985
        %2145 = vmatpush.msra.mxu0 %v1981
        %2146 = vmatpush.msra.mxu0 %v1977
        %2147 = vmatmul.f32.gmra.mxu0 %v2086
        %v2148 = vpop.f32.mrf.mxu0
        %v2149 = vadd.f32 0.0, %v2148
        %2150 = vdwg.mxu0
        %2151 = vmatpush.msra.mxu0 0.0
        %2152 = vmatpush.msra.mxu0 0.0
        %2153 = vmatpush.msra.mxu0 0.0
        %2154 = vmatpush.msra.mxu0 0.0
        %2155 = vmatpush.msra.mxu0 0.0
        %2156 = vmatpush.msra.mxu0 %v2081
        %2157 = vmatpush.msra.mxu0 %v2077
        %2158 = vmatpush.msra.mxu0 %v2073
        %2159 = vmatpush.msra.mxu0 %v2069
        %2160 = vmatpush.msra.mxu0 %v2065
        %2161 = vmatpush.msra.mxu0 %v2061
        %2162 = vmatpush.msra.mxu0 %v2057
        %2163 = vmatpush.msra.mxu0 %v2053
        %2164 = vmatpush.msra.mxu0 %v2049
        %2165 = vmatpush.msra.mxu0 %v2045
        %2166 = vmatpush.msra.mxu0 %v2041
        %2167 = vmatmul.f32.gmra.mxu0 %v2089
        %v2168 = vpop.f32.mrf.mxu0
        %v2169 = vadd.f32 %v2149, %v2168
        %2170 = vdwg.mxu0
        %2171 = vmatpush.msra.mxu0 %v2038
        %2172 = vmatpush.msra.mxu0 %v2034
        %2173 = vmatpush.msra.mxu0 %v2030
        %2174 = vmatpush.msra.mxu0 %v2026
        %2175 = vmatpush.msra.mxu0 %v2022
        %2176 = vmatpush.msra.mxu0 %v2018
        %2177 = vmatpush.msra.mxu0 %v2014
        %2178 = vmatpush.msra.mxu0 %v2010
        %2179 = vmatpush.msra.mxu0 %v2006
        %2180 = vmatpush.msra.mxu0 %v2002
        %2181 = vmatpush.msra.mxu0 %v1998
        %2182 = vmatpush.msra.mxu0 %v1994
        %2183 = vmatpush.msra.mxu0 %v1990
        %2184 = vmatpush.msra.mxu0 %v1986
        %2185 = vmatpush.msra.mxu0 %v1982
        %2186 = vmatpush.msra.mxu0 %v1978
        %2187 = vmatmul.f32.gmra.mxu0 %v2086
        %v2188 = vpop.f32.mrf.mxu0
        %v2189 = vadd.f32 0.0, %v2188
        %2190 = vdwg.mxu0
        %2191 = vmatpush.msra.mxu0 0.0
        %2192 = vmatpush.msra.mxu0 0.0
        %2193 = vmatpush.msra.mxu0 0.0
        %2194 = vmatpush.msra.mxu0 0.0
        %2195 = vmatpush.msra.mxu0 0.0
        %2196 = vmatpush.msra.mxu0 %v2082
        %2197 = vmatpush.msra.mxu0 %v2078
        %2198 = vmatpush.msra.mxu0 %v2074
        %2199 = vmatpush.msra.mxu0 %v2070
        %2200 = vmatpush.msra.mxu0 %v2066
        %2201 = vmatpush.msra.mxu0 %v2062
        %2202 = vmatpush.msra.mxu0 %v2058
        %2203 = vmatpush.msra.mxu0 %v2054
        %2204 = vmatpush.msra.mxu0 %v2050
        %2205 = vmatpush.msra.mxu0 %v2046
        %2206 = vmatpush.msra.mxu0 %v2042
        %2207 = vmatmul.f32.gmra.mxu0 %v2089
        %v2208 = vpop.f32.mrf.mxu0
        %v2209 = vadd.f32 %v2189, %v2208
        %2210 = vdwg.mxu0
        %2211 = vmatpush.msra.mxu0 %v2039
        %2212 = vmatpush.msra.mxu0 %v2035
        %2213 = vmatpush.msra.mxu0 %v2031
        %2214 = vmatpush.msra.mxu0 %v2027
        %2215 = vmatpush.msra.mxu0 %v2023
        %2216 = vmatpush.msra.mxu0 %v2019
        %2217 = vmatpush.msra.mxu0 %v2015
        %2218 = vmatpush.msra.mxu0 %v2011
        %2219 = vmatpush.msra.mxu0 %v2007
        %2220 = vmatpush.msra.mxu0 %v2003
        %2221 = vmatpush.msra.mxu0 %v1999
        %2222 = vmatpush.msra.mxu0 %v1995
        %2223 = vmatpush.msra.mxu0 %v1991
        %2224 = vmatpush.msra.mxu0 %v1987
        %2225 = vmatpush.msra.mxu0 %v1983
        %2226 = vmatpush.msra.mxu0 %v1979
        %2227 = vmatmul.f32.gmra.mxu0 %v2086
        %v2228 = vpop.f32.mrf.mxu0
        %v2229 = vadd.f32 0.0, %v2228
        %2230 = vdwg.mxu0
        %2231 = vmatpush.msra.mxu0 0.0
        %2232 = vmatpush.msra.mxu0 0.0
        %2233 = vmatpush.msra.mxu0 0.0
        %2234 = vmatpush.msra.mxu0 0.0
        %2235 = vmatpush.msra.mxu0 0.0
        %2236 = vmatpush.msra.mxu0 %v2083
        %2237 = vmatpush.msra.mxu0 %v2079
        %2238 = vmatpush.msra.mxu0 %v2075
        %2239 = vmatpush.msra.mxu0 %v2071
        %2240 = vmatpush.msra.mxu0 %v2067
        %2241 = vmatpush.msra.mxu0 %v2063
        %2242 = vmatpush.msra.mxu0 %v2059
        %2243 = vmatpush.msra.mxu0 %v2055
        %2244 = vmatpush.msra.mxu0 %v2051
        %2245 = vmatpush.msra.mxu0 %v2047
        %2246 = vmatpush.msra.mxu0 %v2043
        %2247 = vmatmul.f32.gmra.mxu0 %v2089
        %v2248 = vpop.f32.mrf.mxu0
        %v2249 = vadd.f32 %v2229, %v2248
        %2250 = vdwg.mxu0
        %vm2251 = vcmask 1043456
        %v2252 = vsel %vm2251, %v2129, 0.0
        %v2253 = vsel %vm2251, %v2169, 0.0
        %v2254 = vadd.f32 %v2252, %v2253
        %v2255 = vsel %vm2251, %v2209, 0.0
        %v2256 = vadd.f32 %v2254, %v2255
        %v2257 = vsel %vm2251, %v2249, 0.0
        %v2258 = vadd.f32 %v2256, %v2257
        %2259 = vadd.xlane.f32.xlu0 %v2258
        %v2260 = vpop.xlane.xlu0 %2259
        %v2261 = vmul.f32 %v2260, 0.001953125
        %v2262 = vsub.f32 %v2129, %v2261
        %v2263 = vsub.f32 %v2169, %v2261
        %v2264 = vsub.f32 %v2209, %v2261
        %v2265 = vsub.f32 %v2249, %v2261
        %v2266 = vmul.f32 %v2262, %v2262
        %v2267 = vmul.f32 %v2263, %v2263
        %v2268 = vmul.f32 %v2264, %v2264
        %v2269 = vmul.f32 %v2265, %v2265
        %v2270 = vsel %vm2251, %v2266, 0.0
        %v2271 = vsel %vm2251, %v2267, 0.0
        %v2272 = vadd.f32 %v2270, %v2271
        %v2273 = vsel %vm2251, %v2268, 0.0
        %v2274 = vadd.f32 %v2272, %v2273
        %v2275 = vsel %vm2251, %v2269, 0.0
        %v2276 = vadd.f32 %v2274, %v2275
        %2277 = vadd.xlane.f32.xlu0 %v2276
        %v2278 = vpop.xlane.xlu0 %2277
        %v2279 = vmul.f32 %v2278, 0.001953125
        %v2280 = vadd.f32 %v2279, 1e-05
        %v2281 = vrsqrt.pop %v2280
        %v2282 = vmul.f32 %v2281, %v2280
        %v2283 = vmul.f32 %v2282, %v2281
        %v2284 = vmul.f32 0.5, %v2283
        %v2285 = vsub.f32 1.5, %v2284
        %v2286 = vmul.f32 %v2281, %v2285
        %vm2287 = vweird.f32 %v2280
        %vm2288 = vweird.f32 %v2281
        %vm2289 = vmor %vm2287, %vm2288
        %v2290 = vsel %vm2289, %v2281, %v2286
        %v2291 = vmul.f32 %v2262, %v2290
        %v2292 = vmul.f32 %v2263, %v2290
        %v2293 = vmul.f32 %v2264, %v2290
        %v2294 = vmul.f32 %v2265, %v2290
        %v2295 = vmax.f32 %v2291, 0.0
        %v2296 = vmax.f32 %v2292, 0.0
        %v2297 = vmax.f32 %v2293, 0.0
        %v2298 = vmax.f32 %v2294, 0.0
        %v2303 = vrot.slane %v2296, 4
        %v2304 = vrot.slane %v2298, 4
        %v2305 = vsel %vm2251, %v2295, %v2303
        %v2306 = vsel %vm2251, %v2297, %v2304
        %2309 = vst [vmem:[%s261] sm:$0xff] %v2305
        %2310 = vst [vmem:[%s261 + $0x8] sm:$0xff] %v2306
        %s2311 = sand.u32 %s120, 1
        %s2312 = scalar_lea.sflag [#allocation5], %s2311
        %s2313 = sand.u32 %s120, 1
        %s2314 = smul.addr %s2313, 16
        %s2315 = scalar_lea.vmem [#allocation11], %s2314
        // Predicated region
        $region53: #{tpu_custom_call.1} parent=35 // pred_check
          %p2316 = pneg %p130
        $region54: #{tpu_custom_call.1} parent=35 // pred_check_branch
          %2318 = sbr.rel (%p2316) target = $region56
        $region55: #{tpu_custom_call.1} parent=35 // pred_region
          %2320 = vsyncadd %s2312, 0
          %s2321 = smul.addr %s23, 4
          %s2322 = smul.addr %s2321, 4
          %s2323 = scalar_lea.hbm %s4, %s2322
          %s2325 = sshll.u32 %s2315, 4
          %s2326 = int_to_ptr.vmem [resolvable:$true] %s2325
          %s2327 = sshll.u32 %s2323, 4
          %s2328 = int_to_ptr.hbm [resolvable:$true] %s2327
          %2330 = dma.vmem_to_hbm [thread:$0]  %s2326, 256, %s2328, %s2312
        $region56: #{tpu_custom_call.1} parent=35 // pred_fallthru
          _
      $region36: #{tpu_custom_call.1} parent=5 // pred_fallthru
        _
      %p2331 = scmp.le.s32.totalorder 2, %s18
      // Predicated region
      $region57: #{tpu_custom_call.1} parent=5 // pred_check
        %p2332 = pneg %p2331
      $region58: #{tpu_custom_call.1} parent=5 // pred_check_branch
        %2334 = sbr.rel (%p2332) target = $region60
      $region59: #{tpu_custom_call.1} parent=5 // pred_region
        %s2335 = ssub.s32 %s18, 2
        // Predicated region
        $region61: #{tpu_custom_call.1} parent=59 // pred_check
          %p2336 = pneg %p136
        $region62: #{tpu_custom_call.1} parent=59 // pred_check_branch
          %2338 = sbr.rel (%p2336) target = $region64
        $region63: #{tpu_custom_call.1} parent=59 // pred_region
          %s2339 = sand.u32 %s121, 1
          %s2340 = scalar_lea.sflag [#allocation5], %s2339
          %s2341 = sand.u32 %s121, 1
          %s2342 = smul.addr %s2341, 16
          %s2343 = scalar_lea.vmem [#allocation11], %s2342
          %2345 = dma.done %s2340, 256
        $region64: #{tpu_custom_call.1} parent=59 // pred_fallthru
          _
      $region60: #{tpu_custom_call.1} parent=5 // pred_fallthru
        _
    $region6: #{tpu_custom_call.1} parent=1 // loop_footer
      %s22 = sadd.s32 1, %s18
    $region7: #{tpu_custom_call.1} parent=1 // loop_footer_branch
      %17 = sbr.rel target = $region3
    $region8: #{tpu_custom_call.1} parent=1 // loop_exit
      _
    %2346 = vsyncpa [#allocation4], 1
    %s2347 = scalar_lea.sflag [#allocation4], 1
    %2348 = vsyncpa %s2347, 1
    %2349 = vsyncpa [#allocation7], 1
    %2350 = vsyncpa [#allocation10], 1
    %2351 = vsyncpa [#allocation5], 1
    %s2352 = scalar_lea.sflag [#allocation5], 1
    %2353 = vsyncpa %s2352, 1

</llo_original>
